<compile_context>
chip_gen: v7x
topology: tpu7x:2x2x1
jax: 0.10.0
libtpu: 0.0.40
codegen_flags: <defaults>
</compile_context>

<pallas_src>
import jax
import jax.numpy as jnp
from jax import lax
from jax.experimental import pallas as pl
from jax.experimental.pallas import tpu as pltpu

_LANES = 128


def _round_up(x, m):
    return ((x + m - 1) // m) * m


def _decoder_kernel(sos_ref, ench_ref, encc_ref, emb_ref,
                    w_ih_e_ref, w_ih_h_ref, w_hh_ref, b_ref,
                    w_out_ref, b_out_ref,
                    logp_ref, ixs_ref, h_seq_ref, c_seq_ref):
    B, Hp = ench_ref.shape
    V, E = emb_ref.shape
    gen = logp_ref.shape[0]

    # ---- step-invariant work, hoisted out of the recurrence ----------------
    # enc_h is concatenated to the LSTM input at every step in the reference;
    # algebraically that is a constant additive term on the gates.
    enc_gates = (jnp.dot(ench_ref[...], w_ih_h_ref[...],
                         preferred_element_type=jnp.float32)
                 + b_ref[...])                                   # (B, 4*Hp)
    bias_out = jnp.broadcast_to(b_out_ref[...], (B, V))          # hoisted broadcast
    emb_tbl = emb_ref[...]
    w_ih_e = w_ih_e_ref[...]
    w_hh = w_hh_ref[...]
    w_out = w_out_ref[...]
    iota = lax.broadcasted_iota(jnp.int32, (B, V), 1)

    # Recurrent state carried as values (vregs), not VMEM scratch.
    h = ench_ref[...]
    c = encc_ref[...]
    e = sos_ref[...]

    # Short static loop -> full trace-time unroll: lets the scheduler overlap
    # step i's softmax / output stores with step i+1's matmuls.
    for i in range(gen):
        # ---- LSTM step (PyTorch gate order i, f, g, o) ----
        gates = (jnp.dot(e, w_ih_e, preferred_element_type=jnp.float32)
                 + jnp.dot(h, w_hh, preferred_element_type=jnp.float32)
                 + enc_gates)                                    # (B, 4*Hp)
        # Hp is a multiple of 128, so each gate slice is whole lane tiles
        # (no lane-shift relayouts on the recurrence critical path).
        gi = jax.nn.sigmoid(gates[:, 0 * Hp:1 * Hp])
        gf = jax.nn.sigmoid(gates[:, 1 * Hp:2 * Hp])
        gg = jnp.tanh(gates[:, 2 * Hp:3 * Hp])
        go = jax.nn.sigmoid(gates[:, 3 * Hp:4 * Hp])
        c = gf * c + gi * gg
        h = go * jnp.tanh(c)

        # ---- vocab projection + log-softmax (all f32) ----
        logits = jnp.dot(h, w_out, preferred_element_type=jnp.float32) + bias_out
        m = jnp.max(logits, axis=-1, keepdims=True)
        z = logits - m
        logp = z - jnp.log(jnp.sum(jnp.exp(z), axis=-1, keepdims=True))

        # ---- greedy argmax (first-max index, matches jnp.argmax) ----
        idx = jnp.min(jnp.where(logits == m, iota, V), axis=-1, keepdims=True)  # (B, 1)

        # ---- embedding lookup of chosen ids via one-hot matmul (MXU-friendly)
        # TODO(synk): replace with a DMA row gather at realistic vocab sizes.
        onehot = (iota == idx).astype(jnp.float32)               # (B, V)
        e = jnp.dot(onehot, emb_tbl, preferred_element_type=jnp.float32)

        # ---- per-step outputs (static indices => static stores) ----
        logp_ref[i] = logp
        # TODO(synk): width-1 index store is masked; SMEM-stage for large shapes.
        ixs_ref[i] = idx.astype(jnp.int32)
        h_seq_ref[i] = h
        c_seq_ref[i] = c


def _gate_pad_cols(w, H, Hp):
    """(in, 4*H) -> (in, 4*Hp): gate k's block placed at [k*Hp : k*Hp+H], zeros elsewhere."""
    if Hp == H:
        return w
    out = jnp.zeros((w.shape[0], 4 * Hp), w.dtype)
    for k in range(4):
        out = out.at[:, k * Hp:k * Hp + H].set(w[:, k * H:(k + 1) * H])
    return out


def _pad_rows(w, Hp):
    H = w.shape[0]
    return w if Hp == H else jnp.pad(w, ((0, Hp - H), (0, 0)))


def _pad_cols(x, Hp):
    H = x.shape[1]
    return x if Hp == H else jnp.pad(x, ((0, 0), (0, Hp - H)))


def decoder_forward(sos_embed, enc_h, enc_c, emb, w_ih, w_hh, b, w_out, b_out, gen_seq_len):
    B, H = enc_h.shape
    V, E = emb.shape
    Hp = _round_up(H, _LANES)

    # Split w_ih into embed / enc_h blocks and pad the hidden dim so every LSTM
    # gate occupies whole 128-lane tiles. The zero pads provably stay zero
    # through the recurrence (sigmoid(0)*0 + sigmoid(0)*tanh(0) = 0).
    w_ih_e = _gate_pad_cols(w_ih[:E], H, Hp)                  # (E, 4*Hp)
    w_ih_h = _pad_rows(_gate_pad_cols(w_ih[E:], H, Hp), Hp)   # (Hp, 4*Hp)
    w_hh_p = _pad_rows(_gate_pad_cols(w_hh, H, Hp), Hp)       # (Hp, 4*Hp)
    b_p = _gate_pad_cols(b, H, Hp)                            # (1, 4*Hp)
    w_out_p = _pad_rows(w_out, Hp)                            # (Hp, V)
    enc_h_p = _pad_cols(enc_h, Hp)                            # (B, Hp)
    enc_c_p = _pad_cols(enc_c, Hp)                            # (B, Hp)

    vmem = pl.BlockSpec(memory_space=pltpu.MemorySpace.VMEM)
    out_shapes = (
        jax.ShapeDtypeStruct((gen_seq_len, B, V), jnp.float32),   # seq_softmaxes (log-probs)
        jax.ShapeDtypeStruct((gen_seq_len, B, 1), jnp.int32),     # seq_chosen_ixs
        jax.ShapeDtypeStruct((gen_seq_len, B, Hp), jnp.float32),  # h per step (= lstm output)
        jax.ShapeDtypeStruct((gen_seq_len, B, Hp), jnp.float32),  # c per step
    )
    logp, ixs, h_seq, c_seq = pl.pallas_call(
        _decoder_kernel,
        out_shape=out_shapes,
        in_specs=[vmem] * 10,
        out_specs=tuple([vmem] * 4),
    )(sos_embed, enc_h_p, enc_c_p, emb, w_ih_e, w_ih_h, w_hh_p, b_p, w_out_p, b_out)

    h_seq = h_seq[:, :, :H]
    c_seq = c_seq[:, :, :H]
    # `outputs` and `hiddens.h` are the same tensor; duplicate output removed from the kernel.
    return logp, jnp.squeeze(ixs, axis=-1), h_seq, h_seq, c_seq


def decoder_reference(sos_embed, enc_h, enc_c, emb, w_ih, w_hh, b, w_out, b_out, gen_seq_len):
    """Pure-JAX reference of the same greedy decode loop."""
    H = enc_h.shape[1]

    def step(carry, _):
        h, c, e = carry
        x = jnp.concatenate([e, enc_h], axis=1)
        gates = x @ w_ih + h @ w_hh + b
        gi = jax.nn.sigmoid(gates[:, 0 * H:1 * H])
        gf = jax.nn.sigmoid(gates[:, 1 * H:2 * H])
        gg = jnp.tanh(gates[:, 2 * H:3 * H])
        go = jax.nn.sigmoid(gates[:, 3 * H:4 * H])
        c_new = gf * c + gi * gg
        h_new = go * jnp.tanh(c_new)
        logits = h_new @ w_out + b_out
        logp = jax.nn.log_softmax(logits, axis=-1)
        idx = jnp.argmax(logits, axis=-1).astype(jnp.int32)
        new_e = emb[idx]
        return (h_new, c_new, new_e), (logp, idx, h_new, c_new)

    _, (logp, idx, hs, cs) = lax.scan(step, (enc_h, enc_c, sos_embed), None, length=gen_seq_len)
    return logp, idx, hs, hs, cs


if __name__ == "__main__":
    # Small shapes consistent with the module: vocab=128, embed=32, hidden=32,
    # batch=8, max_len=6 (=> 5 generated steps).
    B, E, H, V = 8, 32, 32, 128
    MAX_LEN = 6
    GEN = MAX_LEN - 1
    SOS_IX = 1

    key = jax.random.PRNGKey(0)
    ks = jax.random.split(key, 8)
    s = 0.1
    emb = (jax.random.normal(ks[0], (V, E), jnp.float32) * s)
    w_ih = (jax.random.normal(ks[1], (E + H, 4 * H), jnp.float32) * s)   # LSTM input weights (transposed)
    w_hh = (jax.random.normal(ks[2], (H, 4 * H), jnp.float32) * s)       # LSTM recurrent weights (transposed)
    b = (jax.random.normal(ks[3], (1, 4 * H), jnp.float32) * s)          # b_ih + b_hh combined
    w_out = (jax.random.normal(ks[4], (H, V), jnp.float32) * s)          # vocab linear (transposed)
    b_out = (jax.random.normal(ks[5], (1, V), jnp.float32) * s)
    enc_h = (jax.random.normal(ks[6], (B, H), jnp.float32) * s)
    enc_c = (jax.random.normal(ks[7], (B, H), jnp.float32) * s)

    sos_embed = jnp.tile(emb[SOS_IX][None, :], (B, 1))                   # (B, E), glue

    logp, ixs, outs, hs, cs = decoder_forward(
        sos_embed, enc_h, enc_c, emb, w_ih, w_hh, b, w_out, b_out, GEN)
    jax.block_until_ready(logp)

    r_logp, r_ixs, r_outs, r_hs, r_cs = decoder_reference(
        sos_embed, enc_h, enc_c, emb, w_ih, w_hh, b, w_out, b_out, GEN)

    assert jnp.array_equal(ixs, r_ixs), "chosen indices mismatch"
    assert jnp.allclose(logp, r_logp, rtol=1e-3, atol=1e-3), "log-softmax mismatch"
    assert jnp.allclose(outs, r_outs, rtol=1e-3, atol=1e-3), "lstm outputs mismatch"
    assert jnp.allclose(hs, r_hs, rtol=1e-3, atol=1e-3), "hidden h mismatch"
    assert jnp.allclose(cs, r_cs, rtol=1e-3, atol=1e-3), "hidden c mismatch"

    print("KERNEL_OK")
</pallas_src>

<mosaic_0001>
module attributes {stable_mosaic.version = 11 : i64} {
  func.func @_decoder_kernel(%arg0: memref<8x32xf32, #tpu.memory_space<vmem>>, %arg1: memref<8x128xf32, #tpu.memory_space<vmem>>, %arg2: memref<8x128xf32, #tpu.memory_space<vmem>>, %arg3: memref<128x32xf32, #tpu.memory_space<vmem>>, %arg4: memref<32x512xf32, #tpu.memory_space<vmem>>, %arg5: memref<128x512xf32, #tpu.memory_space<vmem>>, %arg6: memref<128x512xf32, #tpu.memory_space<vmem>>, %arg7: memref<1x512xf32, #tpu.memory_space<vmem>>, %arg8: memref<128x128xf32, #tpu.memory_space<vmem>>, %arg9: memref<1x128xf32, #tpu.memory_space<vmem>>, %arg10: memref<5x8x128xf32, #tpu.memory_space<vmem>>, %arg11: memref<5x8x1xi32, #tpu.memory_space<vmem>>, %arg12: memref<5x8x128xf32, #tpu.memory_space<vmem>>, %arg13: memref<5x8x128xf32, #tpu.memory_space<vmem>>) attributes {dimension_semantics = [], scalar_prefetch = 0 : i64, scratch_operands = 0 : i64, tpu.core_type = #tpu.core_type<tc>} {
    %c0 = arith.constant 0 : index
    %c0_0 = arith.constant 0 : index
    %0 = vector.load %arg1[%c0, %c0_0] : memref<8x128xf32, #tpu.memory_space<vmem>>, vector<8x128xf32>
    %c0_1 = arith.constant 0 : index
    %c0_2 = arith.constant 0 : index
    %1 = vector.load %arg5[%c0_1, %c0_2] : memref<128x512xf32, #tpu.memory_space<vmem>>, vector<128x512xf32>
    %cst = arith.constant dense<0.000000e+00> : vector<8x512xf32>
    %2 = tpu.matmul %0, %1, %cst {dimension_numbers = #tpu.dot_dimension_numbers<[1], [0], [0], [1], [0, 0, 1, 1], [], []>} : vector<8x128xf32>, vector<128x512xf32>, vector<8x512xf32> -> vector<8x512xf32>
    %c0_3 = arith.constant 0 : index
    %c0_4 = arith.constant 0 : index
    %3 = vector.load %arg7[%c0_3, %c0_4] : memref<1x512xf32, #tpu.memory_space<vmem>>, vector<1x512xf32>
    %4 = vector.broadcast %3 : vector<1x512xf32> to vector<8x512xf32>
    %5 = arith.addf %2, %4 : vector<8x512xf32>
    %c0_5 = arith.constant 0 : index
    %c0_6 = arith.constant 0 : index
    %6 = vector.load %arg9[%c0_5, %c0_6] : memref<1x128xf32, #tpu.memory_space<vmem>>, vector<1x128xf32>
    %7 = vector.shape_cast %6 : vector<1x128xf32> to vector<1x128xf32>
    %8 = vector.broadcast %7 : vector<1x128xf32> to vector<8x128xf32>
    %c0_7 = arith.constant 0 : index
    %c0_8 = arith.constant 0 : index
    %9 = vector.load %arg3[%c0_7, %c0_8] : memref<128x32xf32, #tpu.memory_space<vmem>>, vector<128x32xf32>
    %c0_9 = arith.constant 0 : index
    %c0_10 = arith.constant 0 : index
    %10 = vector.load %arg4[%c0_9, %c0_10] : memref<32x512xf32, #tpu.memory_space<vmem>>, vector<32x512xf32>
    %c0_11 = arith.constant 0 : index
    %c0_12 = arith.constant 0 : index
    %11 = vector.load %arg6[%c0_11, %c0_12] : memref<128x512xf32, #tpu.memory_space<vmem>>, vector<128x512xf32>
    %c0_13 = arith.constant 0 : index
    %c0_14 = arith.constant 0 : index
    %12 = vector.load %arg8[%c0_13, %c0_14] : memref<128x128xf32, #tpu.memory_space<vmem>>, vector<128x128xf32>
    %13 = tpu.iota {dimensions = array<i32: 1>} : vector<8x128xi32>
    %c0_15 = arith.constant 0 : index
    %c0_16 = arith.constant 0 : index
    %14 = vector.load %arg1[%c0_15, %c0_16] : memref<8x128xf32, #tpu.memory_space<vmem>>, vector<8x128xf32>
    %c0_17 = arith.constant 0 : index
    %c0_18 = arith.constant 0 : index
    %15 = vector.load %arg2[%c0_17, %c0_18] : memref<8x128xf32, #tpu.memory_space<vmem>>, vector<8x128xf32>
    %c0_19 = arith.constant 0 : index
    %c0_20 = arith.constant 0 : index
    %16 = vector.load %arg0[%c0_19, %c0_20] : memref<8x32xf32, #tpu.memory_space<vmem>>, vector<8x32xf32>
    %cst_21 = arith.constant dense<0.000000e+00> : vector<8x512xf32>
    %17 = tpu.matmul %16, %10, %cst_21 {dimension_numbers = #tpu.dot_dimension_numbers<[1], [0], [0], [1], [0, 0, 1, 1], [], []>} : vector<8x32xf32>, vector<32x512xf32>, vector<8x512xf32> -> vector<8x512xf32>
    %cst_22 = arith.constant dense<0.000000e+00> : vector<8x512xf32>
    %18 = tpu.matmul %14, %11, %cst_22 {dimension_numbers = #tpu.dot_dimension_numbers<[1], [0], [0], [1], [0, 0, 1, 1], [], []>} : vector<8x128xf32>, vector<128x512xf32>, vector<8x512xf32> -> vector<8x512xf32>
    %19 = arith.addf %17, %18 : vector<8x512xf32>
    %20 = arith.addf %19, %5 : vector<8x512xf32>
    %21 = vector.extract_strided_slice %20 {offsets = [0, 0], sizes = [8, 128], strides = [1, 1]} : vector<8x512xf32> to vector<8x128xf32>
    %22 = arith.negf %21 : vector<8x128xf32>
    %23 = math.exp %22 : vector<8x128xf32>
    %cst_23 = arith.constant 1.000000e+00 : f32
    %24 = vector.broadcast %cst_23 : f32 to vector<8x128xf32>
    %25 = arith.addf %24, %23 : vector<8x128xf32>
    %26 = arith.divf %24, %25 : vector<8x128xf32>
    %27 = vector.extract_strided_slice %20 {offsets = [0, 128], sizes = [8, 128], strides = [1, 1]} : vector<8x512xf32> to vector<8x128xf32>
    %28 = arith.negf %27 : vector<8x128xf32>
    %29 = math.exp %28 : vector<8x128xf32>
    %cst_24 = arith.constant 1.000000e+00 : f32
    %30 = vector.broadcast %cst_24 : f32 to vector<8x128xf32>
    %31 = arith.addf %30, %29 : vector<8x128xf32>
    %32 = arith.divf %30, %31 : vector<8x128xf32>
    %33 = vector.extract_strided_slice %20 {offsets = [0, 256], sizes = [8, 128], strides = [1, 1]} : vector<8x512xf32> to vector<8x128xf32>
    %34 = math.tanh %33 : vector<8x128xf32>
    %35 = vector.extract_strided_slice %20 {offsets = [0, 384], sizes = [8, 128], strides = [1, 1]} : vector<8x512xf32> to vector<8x128xf32>
    %36 = arith.negf %35 : vector<8x128xf32>
    %37 = math.exp %36 : vector<8x128xf32>
    %cst_25 = arith.constant 1.000000e+00 : f32
    %38 = vector.broadcast %cst_25 : f32 to vector<8x128xf32>
    %39 = arith.addf %38, %37 : vector<8x128xf32>
    %40 = arith.divf %38, %39 : vector<8x128xf32>
    %41 = arith.mulf %32, %15 : vector<8x128xf32>
    %42 = arith.mulf %26, %34 : vector<8x128xf32>
    %43 = arith.addf %41, %42 : vector<8x128xf32>
    %44 = math.tanh %43 : vector<8x128xf32>
    %45 = arith.mulf %40, %44 : vector<8x128xf32>
    %cst_26 = arith.constant dense<0.000000e+00> : vector<8x128xf32>
    %46 = tpu.matmul %45, %12, %cst_26 {dimension_numbers = #tpu.dot_dimension_numbers<[1], [0], [0], [1], [0, 0, 1, 1], [], []>} : vector<8x128xf32>, vector<128x128xf32>, vector<8x128xf32> -> vector<8x128xf32>
    %47 = arith.addf %46, %8 : vector<8x128xf32>
    %cst_27 = arith.constant dense<0xFF800000> : vector<8xf32>
    %48 = vector.multi_reduction <maximumf>, %47, %cst_27 [1] : vector<8x128xf32> to vector<8xf32>
    %49 = vector.shape_cast %48 : vector<8xf32> to vector<8x1xf32>
    %50 = vector.broadcast %49 : vector<8x1xf32> to vector<8x128xf32>
    %51 = arith.subf %47, %50 : vector<8x128xf32>
    %52 = math.exp %51 : vector<8x128xf32>
    %cst_28 = arith.constant dense<0.000000e+00> : vector<8xf32>
    %53 = vector.multi_reduction <add>, %52, %cst_28 [1] : vector<8x128xf32> to vector<8xf32>
    %54 = vector.shape_cast %53 : vector<8xf32> to vector<8x1xf32>
    %55 = math.log %54 : vector<8x1xf32>
    %56 = vector.broadcast %55 : vector<8x1xf32> to vector<8x128xf32>
    %57 = arith.subf %51, %56 : vector<8x128xf32>
    %58 = vector.broadcast %49 : vector<8x1xf32> to vector<8x128xf32>
    %59 = arith.cmpf oeq, %47, %58 : vector<8x128xf32>
    %c128_i32 = arith.constant 128 : i32
    %60 = vector.broadcast %c128_i32 : i32 to vector<8x128xi32>
    %61 = arith.select %59, %13, %60 : vector<8x128xi1>, vector<8x128xi32>
    %cst_29 = arith.constant dense<2147483647> : vector<8xi32>
    %62 = vector.multi_reduction <minsi>, %61, %cst_29 [1] : vector<8x128xi32> to vector<8xi32>
    %63 = vector.shape_cast %62 : vector<8xi32> to vector<8x1xi32>
    %64 = vector.broadcast %63 : vector<8x1xi32> to vector<8x128xi32>
    %65 = arith.cmpi eq, %13, %64 : vector<8x128xi32>
    %66 = arith.extui %65 : vector<8x128xi1> to vector<8x128xi32>
    %67 = arith.sitofp %66 : vector<8x128xi32> to vector<8x128xf32>
    %cst_30 = arith.constant dense<0.000000e+00> : vector<8x32xf32>
    %68 = tpu.matmul %67, %9, %cst_30 {dimension_numbers = #tpu.dot_dimension_numbers<[1], [0], [0], [1], [0, 0, 1, 1], [], []>} : vector<8x128xf32>, vector<128x32xf32>, vector<8x32xf32> -> vector<8x32xf32>
    %c0_31 = arith.constant 0 : index
    %c0_32 = arith.constant 0 : index
    %c0_33 = arith.constant 0 : index
    %69 = vector.load %arg10[%c0_31, %c0_32, %c0_33] : memref<5x8x128xf32, #tpu.memory_space<vmem>>, vector<1x8x128xf32>
    %70 = vector.shape_cast %69 : vector<1x8x128xf32> to vector<8x128xf32>
    %71 = vector.shape_cast %57 : vector<8x128xf32> to vector<1x8x128xf32>
    tpu.vector_store %arg10[%c0_31, %c0_32, %c0_33], %71 {strides = array<i32>} : memref<5x8x128xf32, #tpu.memory_space<vmem>>, vector<1x8x128xf32>,
    %c0_34 = arith.constant 0 : index
    %c0_35 = arith.constant 0 : index
    %c0_36 = arith.constant 0 : index
    %72 = vector.load %arg11[%c0_34, %c0_35, %c0_36] : memref<5x8x1xi32, #tpu.memory_space<vmem>>, vector<1x8x1xi32>
    %73 = vector.shape_cast %72 : vector<1x8x1xi32> to vector<8x1xi32>
    %74 = vector.shape_cast %63 : vector<8x1xi32> to vector<1x8x1xi32>
    tpu.vector_store %arg11[%c0_34, %c0_35, %c0_36], %74 {strides = array<i32>} : memref<5x8x1xi32, #tpu.memory_space<vmem>>, vector<1x8x1xi32>,
    %c0_37 = arith.constant 0 : index
    %c0_38 = arith.constant 0 : index
    %c0_39 = arith.constant 0 : index
    %75 = vector.load %arg12[%c0_37, %c0_38, %c0_39] : memref<5x8x128xf32, #tpu.memory_space<vmem>>, vector<1x8x128xf32>
    %76 = vector.shape_cast %75 : vector<1x8x128xf32> to vector<8x128xf32>
    %77 = vector.shape_cast %45 : vector<8x128xf32> to vector<1x8x128xf32>
    tpu.vector_store %arg12[%c0_37, %c0_38, %c0_39], %77 {strides = array<i32>} : memref<5x8x128xf32, #tpu.memory_space<vmem>>, vector<1x8x128xf32>,
    %c0_40 = arith.constant 0 : index
    %c0_41 = arith.constant 0 : index
    %c0_42 = arith.constant 0 : index
    %78 = vector.load %arg13[%c0_40, %c0_41, %c0_42] : memref<5x8x128xf32, #tpu.memory_space<vmem>>, vector<1x8x128xf32>
    %79 = vector.shape_cast %78 : vector<1x8x128xf32> to vector<8x128xf32>
    %80 = vector.shape_cast %43 : vector<8x128xf32> to vector<1x8x128xf32>
    tpu.vector_store %arg13[%c0_40, %c0_41, %c0_42], %80 {strides = array<i32>} : memref<5x8x128xf32, #tpu.memory_space<vmem>>, vector<1x8x128xf32>,
    %cst_43 = arith.constant dense<0.000000e+00> : vector<8x512xf32>
    %81 = tpu.matmul %68, %10, %cst_43 {dimension_numbers = #tpu.dot_dimension_numbers<[1], [0], [0], [1], [0, 0, 1, 1], [], []>} : vector<8x32xf32>, vector<32x512xf32>, vector<8x512xf32> -> vector<8x512xf32>
    %cst_44 = arith.constant dense<0.000000e+00> : vector<8x512xf32>
    %82 = tpu.matmul %45, %11, %cst_44 {dimension_numbers = #tpu.dot_dimension_numbers<[1], [0], [0], [1], [0, 0, 1, 1], [], []>} : vector<8x128xf32>, vector<128x512xf32>, vector<8x512xf32> -> vector<8x512xf32>
    %83 = arith.addf %81, %82 : vector<8x512xf32>
    %84 = arith.addf %83, %5 : vector<8x512xf32>
    %85 = vector.extract_strided_slice %84 {offsets = [0, 0], sizes = [8, 128], strides = [1, 1]} : vector<8x512xf32> to vector<8x128xf32>
    %86 = arith.negf %85 : vector<8x128xf32>
    %87 = math.exp %86 : vector<8x128xf32>
    %cst_45 = arith.constant 1.000000e+00 : f32
    %88 = vector.broadcast %cst_45 : f32 to vector<8x128xf32>
    %89 = arith.addf %88, %87 : vector<8x128xf32>
    %90 = arith.divf %88, %89 : vector<8x128xf32>
    %91 = vector.extract_strided_slice %84 {offsets = [0, 128], sizes = [8, 128], strides = [1, 1]} : vector<8x512xf32> to vector<8x128xf32>
    %92 = arith.negf %91 : vector<8x128xf32>
    %93 = math.exp %92 : vector<8x128xf32>
    %cst_46 = arith.constant 1.000000e+00 : f32
    %94 = vector.broadcast %cst_46 : f32 to vector<8x128xf32>
    %95 = arith.addf %94, %93 : vector<8x128xf32>
    %96 = arith.divf %94, %95 : vector<8x128xf32>
    %97 = vector.extract_strided_slice %84 {offsets = [0, 256], sizes = [8, 128], strides = [1, 1]} : vector<8x512xf32> to vector<8x128xf32>
    %98 = math.tanh %97 : vector<8x128xf32>
    %99 = vector.extract_strided_slice %84 {offsets = [0, 384], sizes = [8, 128], strides = [1, 1]} : vector<8x512xf32> to vector<8x128xf32>
    %100 = arith.negf %99 : vector<8x128xf32>
    %101 = math.exp %100 : vector<8x128xf32>
    %cst_47 = arith.constant 1.000000e+00 : f32
    %102 = vector.broadcast %cst_47 : f32 to vector<8x128xf32>
    %103 = arith.addf %102, %101 : vector<8x128xf32>
    %104 = arith.divf %102, %103 : vector<8x128xf32>
    %105 = arith.mulf %96, %43 : vector<8x128xf32>
    %106 = arith.mulf %90, %98 : vector<8x128xf32>
    %107 = arith.addf %105, %106 : vector<8x128xf32>
    %108 = math.tanh %107 : vector<8x128xf32>
    %109 = arith.mulf %104, %108 : vector<8x128xf32>
    %cst_48 = arith.constant dense<0.000000e+00> : vector<8x128xf32>
    %110 = tpu.matmul %109, %12, %cst_48 {dimension_numbers = #tpu.dot_dimension_numbers<[1], [0], [0], [1], [0, 0, 1, 1], [], []>} : vector<8x128xf32>, vector<128x128xf32>, vector<8x128xf32> -> vector<8x128xf32>
    %111 = arith.addf %110, %8 : vector<8x128xf32>
    %cst_49 = arith.constant dense<0xFF800000> : vector<8xf32>
    %112 = vector.multi_reduction <maximumf>, %111, %cst_49 [1] : vector<8x128xf32> to vector<8xf32>
    %113 = vector.shape_cast %112 : vector<8xf32> to vector<8x1xf32>
    %114 = vector.broadcast %113 : vector<8x1xf32> to vector<8x128xf32>
    %115 = arith.subf %111, %114 : vector<8x128xf32>
    %116 = math.exp %115 : vector<8x128xf32>
    %cst_50 = arith.constant dense<0.000000e+00> : vector<8xf32>
    %117 = vector.multi_reduction <add>, %116, %cst_50 [1] : vector<8x128xf32> to vector<8xf32>
    %118 = vector.shape_cast %117 : vector<8xf32> to vector<8x1xf32>
    %119 = math.log %118 : vector<8x1xf32>
    %120 = vector.broadcast %119 : vector<8x1xf32> to vector<8x128xf32>
    %121 = arith.subf %115, %120 : vector<8x128xf32>
    %122 = vector.broadcast %113 : vector<8x1xf32> to vector<8x128xf32>
    %123 = arith.cmpf oeq, %111, %122 : vector<8x128xf32>
    %c128_i32_51 = arith.constant 128 : i32
    %124 = vector.broadcast %c128_i32_51 : i32 to vector<8x128xi32>
    %125 = arith.select %123, %13, %124 : vector<8x128xi1>, vector<8x128xi32>
    %cst_52 = arith.constant dense<2147483647> : vector<8xi32>
    %126 = vector.multi_reduction <minsi>, %125, %cst_52 [1] : vector<8x128xi32> to vector<8xi32>
    %127 = vector.shape_cast %126 : vector<8xi32> to vector<8x1xi32>
    %128 = vector.broadcast %127 : vector<8x1xi32> to vector<8x128xi32>
    %129 = arith.cmpi eq, %13, %128 : vector<8x128xi32>
    %130 = arith.extui %129 : vector<8x128xi1> to vector<8x128xi32>
    %131 = arith.sitofp %130 : vector<8x128xi32> to vector<8x128xf32>
    %cst_53 = arith.constant dense<0.000000e+00> : vector<8x32xf32>
    %132 = tpu.matmul %131, %9, %cst_53 {dimension_numbers = #tpu.dot_dimension_numbers<[1], [0], [0], [1], [0, 0, 1, 1], [], []>} : vector<8x128xf32>, vector<128x32xf32>, vector<8x32xf32> -> vector<8x32xf32>
    %c1 = arith.constant 1 : index
    %c0_54 = arith.constant 0 : index
    %c0_55 = arith.constant 0 : index
    %133 = vector.load %arg10[%c1, %c0_54, %c0_55] : memref<5x8x128xf32, #tpu.memory_space<vmem>>, vector<1x8x128xf32>
    %134 = vector.shape_cast %133 : vector<1x8x128xf32> to vector<8x128xf32>
    %135 = vector.shape_cast %121 : vector<8x128xf32> to vector<1x8x128xf32>
    tpu.vector_store %arg10[%c1, %c0_54, %c0_55], %135 {strides = array<i32>} : memref<5x8x128xf32, #tpu.memory_space<vmem>>, vector<1x8x128xf32>,
    %c1_56 = arith.constant 1 : index
    %c0_57 = arith.constant 0 : index
    %c0_58 = arith.constant 0 : index
    %136 = vector.load %arg11[%c1_56, %c0_57, %c0_58] : memref<5x8x1xi32, #tpu.memory_space<vmem>>, vector<1x8x1xi32>
    %137 = vector.shape_cast %136 : vector<1x8x1xi32> to vector<8x1xi32>
    %138 = vector.shape_cast %127 : vector<8x1xi32> to vector<1x8x1xi32>
    tpu.vector_store %arg11[%c1_56, %c0_57, %c0_58], %138 {strides = array<i32>} : memref<5x8x1xi32, #tpu.memory_space<vmem>>, vector<1x8x1xi32>,
    %c1_59 = arith.constant 1 : index
    %c0_60 = arith.constant 0 : index
    %c0_61 = arith.constant 0 : index
    %139 = vector.load %arg12[%c1_59, %c0_60, %c0_61] : memref<5x8x128xf32, #tpu.memory_space<vmem>>, vector<1x8x128xf32>
    %140 = vector.shape_cast %139 : vector<1x8x128xf32> to vector<8x128xf32>
    %141 = vector.shape_cast %109 : vector<8x128xf32> to vector<1x8x128xf32>
    tpu.vector_store %arg12[%c1_59, %c0_60, %c0_61], %141 {strides = array<i32>} : memref<5x8x128xf32, #tpu.memory_space<vmem>>, vector<1x8x128xf32>,
    %c1_62 = arith.constant 1 : index
    %c0_63 = arith.constant 0 : index
    %c0_64 = arith.constant 0 : index
    %142 = vector.load %arg13[%c1_62, %c0_63, %c0_64] : memref<5x8x128xf32, #tpu.memory_space<vmem>>, vector<1x8x128xf32>
    %143 = vector.shape_cast %142 : vector<1x8x128xf32> to vector<8x128xf32>
    %144 = vector.shape_cast %107 : vector<8x128xf32> to vector<1x8x128xf32>
    tpu.vector_store %arg13[%c1_62, %c0_63, %c0_64], %144 {strides = array<i32>} : memref<5x8x128xf32, #tpu.memory_space<vmem>>, vector<1x8x128xf32>,
    %cst_65 = arith.constant dense<0.000000e+00> : vector<8x512xf32>
    %145 = tpu.matmul %132, %10, %cst_65 {dimension_numbers = #tpu.dot_dimension_numbers<[1], [0], [0], [1], [0, 0, 1, 1], [], []>} : vector<8x32xf32>, vector<32x512xf32>, vector<8x512xf32> -> vector<8x512xf32>
    %cst_66 = arith.constant dense<0.000000e+00> : vector<8x512xf32>
    %146 = tpu.matmul %109, %11, %cst_66 {dimension_numbers = #tpu.dot_dimension_numbers<[1], [0], [0], [1], [0, 0, 1, 1], [], []>} : vector<8x128xf32>, vector<128x512xf32>, vector<8x512xf32> -> vector<8x512xf32>
    %147 = arith.addf %145, %146 : vector<8x512xf32>
    %148 = arith.addf %147, %5 : vector<8x512xf32>
    %149 = vector.extract_strided_slice %148 {offsets = [0, 0], sizes = [8, 128], strides = [1, 1]} : vector<8x512xf32> to vector<8x128xf32>
    %150 = arith.negf %149 : vector<8x128xf32>
    %151 = math.exp %150 : vector<8x128xf32>
    %cst_67 = arith.constant 1.000000e+00 : f32
    %152 = vector.broadcast %cst_67 : f32 to vector<8x128xf32>
    %153 = arith.addf %152, %151 : vector<8x128xf32>
    %154 = arith.divf %152, %153 : vector<8x128xf32>
    %155 = vector.extract_strided_slice %148 {offsets = [0, 128], sizes = [8, 128], strides = [1, 1]} : vector<8x512xf32> to vector<8x128xf32>
    %156 = arith.negf %155 : vector<8x128xf32>
    %157 = math.exp %156 : vector<8x128xf32>
    %cst_68 = arith.constant 1.000000e+00 : f32
    %158 = vector.broadcast %cst_68 : f32 to vector<8x128xf32>
    %159 = arith.addf %158, %157 : vector<8x128xf32>
    %160 = arith.divf %158, %159 : vector<8x128xf32>
    %161 = vector.extract_strided_slice %148 {offsets = [0, 256], sizes = [8, 128], strides = [1, 1]} : vector<8x512xf32> to vector<8x128xf32>
    %162 = math.tanh %161 : vector<8x128xf32>
    %163 = vector.extract_strided_slice %148 {offsets = [0, 384], sizes = [8, 128], strides = [1, 1]} : vector<8x512xf32> to vector<8x128xf32>
    %164 = arith.negf %163 : vector<8x128xf32>
    %165 = math.exp %164 : vector<8x128xf32>
    %cst_69 = arith.constant 1.000000e+00 : f32
    %166 = vector.broadcast %cst_69 : f32 to vector<8x128xf32>
    %167 = arith.addf %166, %165 : vector<8x128xf32>
    %168 = arith.divf %166, %167 : vector<8x128xf32>
    %169 = arith.mulf %160, %107 : vector<8x128xf32>
    %170 = arith.mulf %154, %162 : vector<8x128xf32>
    %171 = arith.addf %169, %170 : vector<8x128xf32>
    %172 = math.tanh %171 : vector<8x128xf32>
    %173 = arith.mulf %168, %172 : vector<8x128xf32>
    %cst_70 = arith.constant dense<0.000000e+00> : vector<8x128xf32>
    %174 = tpu.matmul %173, %12, %cst_70 {dimension_numbers = #tpu.dot_dimension_numbers<[1], [0], [0], [1], [0, 0, 1, 1], [], []>} : vector<8x128xf32>, vector<128x128xf32>, vector<8x128xf32> -> vector<8x128xf32>
    %175 = arith.addf %174, %8 : vector<8x128xf32>
    %cst_71 = arith.constant dense<0xFF800000> : vector<8xf32>
    %176 = vector.multi_reduction <maximumf>, %175, %cst_71 [1] : vector<8x128xf32> to vector<8xf32>
    %177 = vector.shape_cast %176 : vector<8xf32> to vector<8x1xf32>
    %178 = vector.broadcast %177 : vector<8x1xf32> to vector<8x128xf32>
    %179 = arith.subf %175, %178 : vector<8x128xf32>
    %180 = math.exp %179 : vector<8x128xf32>
    %cst_72 = arith.constant dense<0.000000e+00> : vector<8xf32>
    %181 = vector.multi_reduction <add>, %180, %cst_72 [1] : vector<8x128xf32> to vector<8xf32>
    %182 = vector.shape_cast %181 : vector<8xf32> to vector<8x1xf32>
    %183 = math.log %182 : vector<8x1xf32>
    %184 = vector.broadcast %183 : vector<8x1xf32> to vector<8x128xf32>
    %185 = arith.subf %179, %184 : vector<8x128xf32>
    %186 = vector.broadcast %177 : vector<8x1xf32> to vector<8x128xf32>
    %187 = arith.cmpf oeq, %175, %186 : vector<8x128xf32>
    %c128_i32_73 = arith.constant 128 : i32
    %188 = vector.broadcast %c128_i32_73 : i32 to vector<8x128xi32>
    %189 = arith.select %187, %13, %188 : vector<8x128xi1>, vector<8x128xi32>
    %cst_74 = arith.constant dense<2147483647> : vector<8xi32>
    %190 = vector.multi_reduction <minsi>, %189, %cst_74 [1] : vector<8x128xi32> to vector<8xi32>
    %191 = vector.shape_cast %190 : vector<8xi32> to vector<8x1xi32>
    %192 = vector.broadcast %191 : vector<8x1xi32> to vector<8x128xi32>
    %193 = arith.cmpi eq, %13, %192 : vector<8x128xi32>
    %194 = arith.extui %193 : vector<8x128xi1> to vector<8x128xi32>
    %195 = arith.sitofp %194 : vector<8x128xi32> to vector<8x128xf32>
    %cst_75 = arith.constant dense<0.000000e+00> : vector<8x32xf32>
    %196 = tpu.matmul %195, %9, %cst_75 {dimension_numbers = #tpu.dot_dimension_numbers<[1], [0], [0], [1], [0, 0, 1, 1], [], []>} : vector<8x128xf32>, vector<128x32xf32>, vector<8x32xf32> -> vector<8x32xf32>
    %c2 = arith.constant 2 : index
    %c0_76 = arith.constant 0 : index
    %c0_77 = arith.constant 0 : index
    %197 = vector.load %arg10[%c2, %c0_76, %c0_77] : memref<5x8x128xf32, #tpu.memory_space<vmem>>, vector<1x8x128xf32>
    %198 = vector.shape_cast %197 : vector<1x8x128xf32> to vector<8x128xf32>
    %199 = vector.shape_cast %185 : vector<8x128xf32> to vector<1x8x128xf32>
    tpu.vector_store %arg10[%c2, %c0_76, %c0_77], %199 {strides = array<i32>} : memref<5x8x128xf32, #tpu.memory_space<vmem>>, vector<1x8x128xf32>,
    %c2_78 = arith.constant 2 : index
    %c0_79 = arith.constant 0 : index
    %c0_80 = arith.constant 0 : index
    %200 = vector.load %arg11[%c2_78, %c0_79, %c0_80] : memref<5x8x1xi32, #tpu.memory_space<vmem>>, vector<1x8x1xi32>
    %201 = vector.shape_cast %200 : vector<1x8x1xi32> to vector<8x1xi32>
    %202 = vector.shape_cast %191 : vector<8x1xi32> to vector<1x8x1xi32>
    tpu.vector_store %arg11[%c2_78, %c0_79, %c0_80], %202 {strides = array<i32>} : memref<5x8x1xi32, #tpu.memory_space<vmem>>, vector<1x8x1xi32>,
    %c2_81 = arith.constant 2 : index
    %c0_82 = arith.constant 0 : index
    %c0_83 = arith.constant 0 : index
    %203 = vector.load %arg12[%c2_81, %c0_82, %c0_83] : memref<5x8x128xf32, #tpu.memory_space<vmem>>, vector<1x8x128xf32>
    %204 = vector.shape_cast %203 : vector<1x8x128xf32> to vector<8x128xf32>
    %205 = vector.shape_cast %173 : vector<8x128xf32> to vector<1x8x128xf32>
    tpu.vector_store %arg12[%c2_81, %c0_82, %c0_83], %205 {strides = array<i32>} : memref<5x8x128xf32, #tpu.memory_space<vmem>>, vector<1x8x128xf32>,
    %c2_84 = arith.constant 2 : index
    %c0_85 = arith.constant 0 : index
    %c0_86 = arith.constant 0 : index
    %206 = vector.load %arg13[%c2_84, %c0_85, %c0_86] : memref<5x8x128xf32, #tpu.memory_space<vmem>>, vector<1x8x128xf32>
    %207 = vector.shape_cast %206 : vector<1x8x128xf32> to vector<8x128xf32>
    %208 = vector.shape_cast %171 : vector<8x128xf32> to vector<1x8x128xf32>
    tpu.vector_store %arg13[%c2_84, %c0_85, %c0_86], %208 {strides = array<i32>} : memref<5x8x128xf32, #tpu.memory_space<vmem>>, vector<1x8x128xf32>,
    %cst_87 = arith.constant dense<0.000000e+00> : vector<8x512xf32>
    %209 = tpu.matmul %196, %10, %cst_87 {dimension_numbers = #tpu.dot_dimension_numbers<[1], [0], [0], [1], [0, 0, 1, 1], [], []>} : vector<8x32xf32>, vector<32x512xf32>, vector<8x512xf32> -> vector<8x512xf32>
    %cst_88 = arith.constant dense<0.000000e+00> : vector<8x512xf32>
    %210 = tpu.matmul %173, %11, %cst_88 {dimension_numbers = #tpu.dot_dimension_numbers<[1], [0], [0], [1], [0, 0, 1, 1], [], []>} : vector<8x128xf32>, vector<128x512xf32>, vector<8x512xf32> -> vector<8x512xf32>
    %211 = arith.addf %209, %210 : vector<8x512xf32>
    %212 = arith.addf %211, %5 : vector<8x512xf32>
    %213 = vector.extract_strided_slice %212 {offsets = [0, 0], sizes = [8, 128], strides = [1, 1]} : vector<8x512xf32> to vector<8x128xf32>
    %214 = arith.negf %213 : vector<8x128xf32>
    %215 = math.exp %214 : vector<8x128xf32>
    %cst_89 = arith.constant 1.000000e+00 : f32
    %216 = vector.broadcast %cst_89 : f32 to vector<8x128xf32>
    %217 = arith.addf %216, %215 : vector<8x128xf32>
    %218 = arith.divf %216, %217 : vector<8x128xf32>
    %219 = vector.extract_strided_slice %212 {offsets = [0, 128], sizes = [8, 128], strides = [1, 1]} : vector<8x512xf32> to vector<8x128xf32>
    %220 = arith.negf %219 : vector<8x128xf32>
    %221 = math.exp %220 : vector<8x128xf32>
    %cst_90 = arith.constant 1.000000e+00 : f32
    %222 = vector.broadcast %cst_90 : f32 to vector<8x128xf32>
    %223 = arith.addf %222, %221 : vector<8x128xf32>
    %224 = arith.divf %222, %223 : vector<8x128xf32>
    %225 = vector.extract_strided_slice %212 {offsets = [0, 256], sizes = [8, 128], strides = [1, 1]} : vector<8x512xf32> to vector<8x128xf32>
    %226 = math.tanh %225 : vector<8x128xf32>
    %227 = vector.extract_strided_slice %212 {offsets = [0, 384], sizes = [8, 128], strides = [1, 1]} : vector<8x512xf32> to vector<8x128xf32>
    %228 = arith.negf %227 : vector<8x128xf32>
    %229 = math.exp %228 : vector<8x128xf32>
    %cst_91 = arith.constant 1.000000e+00 : f32
    %230 = vector.broadcast %cst_91 : f32 to vector<8x128xf32>
    %231 = arith.addf %230, %229 : vector<8x128xf32>
    %232 = arith.divf %230, %231 : vector<8x128xf32>
    %233 = arith.mulf %224, %171 : vector<8x128xf32>
    %234 = arith.mulf %218, %226 : vector<8x128xf32>
    %235 = arith.addf %233, %234 : vector<8x128xf32>
    %236 = math.tanh %235 : vector<8x128xf32>
    %237 = arith.mulf %232, %236 : vector<8x128xf32>
    %cst_92 = arith.constant dense<0.000000e+00> : vector<8x128xf32>
    %238 = tpu.matmul %237, %12, %cst_92 {dimension_numbers = #tpu.dot_dimension_numbers<[1], [0], [0], [1], [0, 0, 1, 1], [], []>} : vector<8x128xf32>, vector<128x128xf32>, vector<8x128xf32> -> vector<8x128xf32>
    %239 = arith.addf %238, %8 : vector<8x128xf32>
    %cst_93 = arith.constant dense<0xFF800000> : vector<8xf32>
    %240 = vector.multi_reduction <maximumf>, %239, %cst_93 [1] : vector<8x128xf32> to vector<8xf32>
    %241 = vector.shape_cast %240 : vector<8xf32> to vector<8x1xf32>
    %242 = vector.broadcast %241 : vector<8x1xf32> to vector<8x128xf32>
    %243 = arith.subf %239, %242 : vector<8x128xf32>
    %244 = math.exp %243 : vector<8x128xf32>
    %cst_94 = arith.constant dense<0.000000e+00> : vector<8xf32>
    %245 = vector.multi_reduction <add>, %244, %cst_94 [1] : vector<8x128xf32> to vector<8xf32>
    %246 = vector.shape_cast %245 : vector<8xf32> to vector<8x1xf32>
    %247 = math.log %246 : vector<8x1xf32>
    %248 = vector.broadcast %247 : vector<8x1xf32> to vector<8x128xf32>
    %249 = arith.subf %243, %248 : vector<8x128xf32>
    %250 = vector.broadcast %241 : vector<8x1xf32> to vector<8x128xf32>
    %251 = arith.cmpf oeq, %239, %250 : vector<8x128xf32>
    %c128_i32_95 = arith.constant 128 : i32
    %252 = vector.broadcast %c128_i32_95 : i32 to vector<8x128xi32>
    %253 = arith.select %251, %13, %252 : vector<8x128xi1>, vector<8x128xi32>
    %cst_96 = arith.constant dense<2147483647> : vector<8xi32>
    %254 = vector.multi_reduction <minsi>, %253, %cst_96 [1] : vector<8x128xi32> to vector<8xi32>
    %255 = vector.shape_cast %254 : vector<8xi32> to vector<8x1xi32>
    %256 = vector.broadcast %255 : vector<8x1xi32> to vector<8x128xi32>
    %257 = arith.cmpi eq, %13, %256 : vector<8x128xi32>
    %258 = arith.extui %257 : vector<8x128xi1> to vector<8x128xi32>
    %259 = arith.sitofp %258 : vector<8x128xi32> to vector<8x128xf32>
    %cst_97 = arith.constant dense<0.000000e+00> : vector<8x32xf32>
    %260 = tpu.matmul %259, %9, %cst_97 {dimension_numbers = #tpu.dot_dimension_numbers<[1], [0], [0], [1], [0, 0, 1, 1], [], []>} : vector<8x128xf32>, vector<128x32xf32>, vector<8x32xf32> -> vector<8x32xf32>
    %c3 = arith.constant 3 : index
    %c0_98 = arith.constant 0 : index
    %c0_99 = arith.constant 0 : index
    %261 = vector.load %arg10[%c3, %c0_98, %c0_99] : memref<5x8x128xf32, #tpu.memory_space<vmem>>, vector<1x8x128xf32>
    %262 = vector.shape_cast %261 : vector<1x8x128xf32> to vector<8x128xf32>
    %263 = vector.shape_cast %249 : vector<8x128xf32> to vector<1x8x128xf32>
    tpu.vector_store %arg10[%c3, %c0_98, %c0_99], %263 {strides = array<i32>} : memref<5x8x128xf32, #tpu.memory_space<vmem>>, vector<1x8x128xf32>,
    %c3_100 = arith.constant 3 : index
    %c0_101 = arith.constant 0 : index
    %c0_102 = arith.constant 0 : index
    %264 = vector.load %arg11[%c3_100, %c0_101, %c0_102] : memref<5x8x1xi32, #tpu.memory_space<vmem>>, vector<1x8x1xi32>
    %265 = vector.shape_cast %264 : vector<1x8x1xi32> to vector<8x1xi32>
    %266 = vector.shape_cast %255 : vector<8x1xi32> to vector<1x8x1xi32>
    tpu.vector_store %arg11[%c3_100, %c0_101, %c0_102], %266 {strides = array<i32>} : memref<5x8x1xi32, #tpu.memory_space<vmem>>, vector<1x8x1xi32>,
    %c3_103 = arith.constant 3 : index
    %c0_104 = arith.constant 0 : index
    %c0_105 = arith.constant 0 : index
    %267 = vector.load %arg12[%c3_103, %c0_104, %c0_105] : memref<5x8x128xf32, #tpu.memory_space<vmem>>, vector<1x8x128xf32>
    %268 = vector.shape_cast %267 : vector<1x8x128xf32> to vector<8x128xf32>
    %269 = vector.shape_cast %237 : vector<8x128xf32> to vector<1x8x128xf32>
    tpu.vector_store %arg12[%c3_103, %c0_104, %c0_105], %269 {strides = array<i32>} : memref<5x8x128xf32, #tpu.memory_space<vmem>>, vector<1x8x128xf32>,
    %c3_106 = arith.constant 3 : index
    %c0_107 = arith.constant 0 : index
    %c0_108 = arith.constant 0 : index
    %270 = vector.load %arg13[%c3_106, %c0_107, %c0_108] : memref<5x8x128xf32, #tpu.memory_space<vmem>>, vector<1x8x128xf32>
    %271 = vector.shape_cast %270 : vector<1x8x128xf32> to vector<8x128xf32>
    %272 = vector.shape_cast %235 : vector<8x128xf32> to vector<1x8x128xf32>
    tpu.vector_store %arg13[%c3_106, %c0_107, %c0_108], %272 {strides = array<i32>} : memref<5x8x128xf32, #tpu.memory_space<vmem>>, vector<1x8x128xf32>,
    %cst_109 = arith.constant dense<0.000000e+00> : vector<8x512xf32>
    %273 = tpu.matmul %260, %10, %cst_109 {dimension_numbers = #tpu.dot_dimension_numbers<[1], [0], [0], [1], [0, 0, 1, 1], [], []>} : vector<8x32xf32>, vector<32x512xf32>, vector<8x512xf32> -> vector<8x512xf32>
    %cst_110 = arith.constant dense<0.000000e+00> : vector<8x512xf32>
    %274 = tpu.matmul %237, %11, %cst_110 {dimension_numbers = #tpu.dot_dimension_numbers<[1], [0], [0], [1], [0, 0, 1, 1], [], []>} : vector<8x128xf32>, vector<128x512xf32>, vector<8x512xf32> -> vector<8x512xf32>
    %275 = arith.addf %273, %274 : vector<8x512xf32>
    %276 = arith.addf %275, %5 : vector<8x512xf32>
    %277 = vector.extract_strided_slice %276 {offsets = [0, 0], sizes = [8, 128], strides = [1, 1]} : vector<8x512xf32> to vector<8x128xf32>
    %278 = arith.negf %277 : vector<8x128xf32>
    %279 = math.exp %278 : vector<8x128xf32>
    %cst_111 = arith.constant 1.000000e+00 : f32
    %280 = vector.broadcast %cst_111 : f32 to vector<8x128xf32>
    %281 = arith.addf %280, %279 : vector<8x128xf32>
    %282 = arith.divf %280, %281 : vector<8x128xf32>
    %283 = vector.extract_strided_slice %276 {offsets = [0, 128], sizes = [8, 128], strides = [1, 1]} : vector<8x512xf32> to vector<8x128xf32>
    %284 = arith.negf %283 : vector<8x128xf32>
    %285 = math.exp %284 : vector<8x128xf32>
    %cst_112 = arith.constant 1.000000e+00 : f32
    %286 = vector.broadcast %cst_112 : f32 to vector<8x128xf32>
    %287 = arith.addf %286, %285 : vector<8x128xf32>
    %288 = arith.divf %286, %287 : vector<8x128xf32>
    %289 = vector.extract_strided_slice %276 {offsets = [0, 256], sizes = [8, 128], strides = [1, 1]} : vector<8x512xf32> to vector<8x128xf32>
    %290 = math.tanh %289 : vector<8x128xf32>
    %291 = vector.extract_strided_slice %276 {offsets = [0, 384], sizes = [8, 128], strides = [1, 1]} : vector<8x512xf32> to vector<8x128xf32>
    %292 = arith.negf %291 : vector<8x128xf32>
    %293 = math.exp %292 : vector<8x128xf32>
    %cst_113 = arith.constant 1.000000e+00 : f32
    %294 = vector.broadcast %cst_113 : f32 to vector<8x128xf32>
    %295 = arith.addf %294, %293 : vector<8x128xf32>
    %296 = arith.divf %294, %295 : vector<8x128xf32>
    %297 = arith.mulf %288, %235 : vector<8x128xf32>
    %298 = arith.mulf %282, %290 : vector<8x128xf32>
    %299 = arith.addf %297, %298 : vector<8x128xf32>
    %300 = math.tanh %299 : vector<8x128xf32>
    %301 = arith.mulf %296, %300 : vector<8x128xf32>
    %cst_114 = arith.constant dense<0.000000e+00> : vector<8x128xf32>
    %302 = tpu.matmul %301, %12, %cst_114 {dimension_numbers = #tpu.dot_dimension_numbers<[1], [0], [0], [1], [0, 0, 1, 1], [], []>} : vector<8x128xf32>, vector<128x128xf32>, vector<8x128xf32> -> vector<8x128xf32>
    %303 = arith.addf %302, %8 : vector<8x128xf32>
    %cst_115 = arith.constant dense<0xFF800000> : vector<8xf32>
    %304 = vector.multi_reduction <maximumf>, %303, %cst_115 [1] : vector<8x128xf32> to vector<8xf32>
    %305 = vector.shape_cast %304 : vector<8xf32> to vector<8x1xf32>
    %306 = vector.broadcast %305 : vector<8x1xf32> to vector<8x128xf32>
    %307 = arith.subf %303, %306 : vector<8x128xf32>
    %308 = math.exp %307 : vector<8x128xf32>
    %cst_116 = arith.constant dense<0.000000e+00> : vector<8xf32>
    %309 = vector.multi_reduction <add>, %308, %cst_116 [1] : vector<8x128xf32> to vector<8xf32>
    %310 = vector.shape_cast %309 : vector<8xf32> to vector<8x1xf32>
    %311 = math.log %310 : vector<8x1xf32>
    %312 = vector.broadcast %311 : vector<8x1xf32> to vector<8x128xf32>
    %313 = arith.subf %307, %312 : vector<8x128xf32>
    %314 = vector.broadcast %305 : vector<8x1xf32> to vector<8x128xf32>
    %315 = arith.cmpf oeq, %303, %314 : vector<8x128xf32>
    %c128_i32_117 = arith.constant 128 : i32
    %316 = vector.broadcast %c128_i32_117 : i32 to vector<8x128xi32>
    %317 = arith.select %315, %13, %316 : vector<8x128xi1>, vector<8x128xi32>
    %cst_118 = arith.constant dense<2147483647> : vector<8xi32>
    %318 = vector.multi_reduction <minsi>, %317, %cst_118 [1] : vector<8x128xi32> to vector<8xi32>
    %319 = vector.shape_cast %318 : vector<8xi32> to vector<8x1xi32>
    %c4 = arith.constant 4 : index
    %c0_119 = arith.constant 0 : index
    %c0_120 = arith.constant 0 : index
    %320 = vector.load %arg10[%c4, %c0_119, %c0_120] : memref<5x8x128xf32, #tpu.memory_space<vmem>>, vector<1x8x128xf32>
    %321 = vector.shape_cast %320 : vector<1x8x128xf32> to vector<8x128xf32>
    %322 = vector.shape_cast %313 : vector<8x128xf32> to vector<1x8x128xf32>
    tpu.vector_store %arg10[%c4, %c0_119, %c0_120], %322 {strides = array<i32>} : memref<5x8x128xf32, #tpu.memory_space<vmem>>, vector<1x8x128xf32>,
    %c4_121 = arith.constant 4 : index
    %c0_122 = arith.constant 0 : index
    %c0_123 = arith.constant 0 : index
    %323 = vector.load %arg11[%c4_121, %c0_122, %c0_123] : memref<5x8x1xi32, #tpu.memory_space<vmem>>, vector<1x8x1xi32>
    %324 = vector.shape_cast %323 : vector<1x8x1xi32> to vector<8x1xi32>
    %325 = vector.shape_cast %319 : vector<8x1xi32> to vector<1x8x1xi32>
    tpu.vector_store %arg11[%c4_121, %c0_122, %c0_123], %325 {strides = array<i32>} : memref<5x8x1xi32, #tpu.memory_space<vmem>>, vector<1x8x1xi32>,
    %c4_124 = arith.constant 4 : index
    %c0_125 = arith.constant 0 : index
    %c0_126 = arith.constant 0 : index
    %326 = vector.load %arg12[%c4_124, %c0_125, %c0_126] : memref<5x8x128xf32, #tpu.memory_space<vmem>>, vector<1x8x128xf32>
    %327 = vector.shape_cast %326 : vector<1x8x128xf32> to vector<8x128xf32>
    %328 = vector.shape_cast %301 : vector<8x128xf32> to vector<1x8x128xf32>
    tpu.vector_store %arg12[%c4_124, %c0_125, %c0_126], %328 {strides = array<i32>} : memref<5x8x128xf32, #tpu.memory_space<vmem>>, vector<1x8x128xf32>,
    %c4_127 = arith.constant 4 : index
    %c0_128 = arith.constant 0 : index
    %c0_129 = arith.constant 0 : index
    %329 = vector.load %arg13[%c4_127, %c0_128, %c0_129] : memref<5x8x128xf32, #tpu.memory_space<vmem>>, vector<1x8x128xf32>
    %330 = vector.shape_cast %329 : vector<1x8x128xf32> to vector<8x128xf32>
    %331 = vector.shape_cast %299 : vector<8x128xf32> to vector<1x8x128xf32>
    tpu.vector_store %arg13[%c4_127, %c0_128, %c0_129], %331 {strides = array<i32>} : memref<5x8x128xf32, #tpu.memory_space<vmem>>, vector<1x8x128xf32>,
    return
  }
}

</mosaic_0001>

<llo_original>
// kernel: tpu_custom_call.1
$region0: #{tpu_custom_call.1}
  #allocation0 [shape = 'u32[]', space=smem, size = 0x4, offset = 0x4, fixed_abs, tag = 'smem constant byte address 0x4 - core index']
  #allocation1 [shape = 'u32[144,128]{1,0:T(1,128)}', space=vmem, size = 0x12000, scoped, tag = 'internal scratch']
  %s0 = inlined_call_operand.vmem [shape: f32[8,32], index: 0, kind: input, shape index: {}]
  %s1 = inlined_call_operand.vmem [shape: f32[8,128], index: 1, kind: input, shape index: {}]
  %s2 = inlined_call_operand.vmem [shape: f32[8,128], index: 2, kind: input, shape index: {}]
  %s3 = inlined_call_operand.vmem [shape: f32[128,32], index: 3, kind: input, shape index: {}]
  %s4 = inlined_call_operand.vmem [shape: f32[32,512], index: 4, kind: input, shape index: {}]
  %s5 = inlined_call_operand.hbm [shape: f32[128,512], index: 5, kind: input, shape index: {}]
  %s6 = inlined_call_operand.hbm [shape: f32[128,512], index: 6, kind: input, shape index: {}]
  %s7 = inlined_call_operand.vmem [shape: f32[1,512], index: 7, kind: input, shape index: {}]
  %s8 = inlined_call_operand.hbm [shape: f32[128,128], index: 8, kind: input, shape index: {}]
  %s9 = inlined_call_operand.vmem [shape: f32[1,128], index: 9, kind: input, shape index: {}]
  %s10 = inlined_call_operand.hbm [shape: f32[5,8,128], index: 10, kind: output, shape index: {0}]
  %s11 = inlined_call_operand.vmem [shape: s32[5,8,1], index: 11, kind: output, shape index: {1}]
  %s12 = inlined_call_operand.hbm [shape: f32[5,8,128], index: 12, kind: output, shape index: {2}]
  %s13 = inlined_call_operand.hbm [shape: f32[5,8,128], index: 13, kind: output, shape index: {3}]
  %14 = xla_tuple %s10, %s11, %s12, %s13
  %s15 = sld [smem:[#allocation0]]
  $region86: #{tpu_custom_call.1} parent=0
    _
  %s17 = ssub.s32 1, %s15
  %s18 = scalar_select 0, %s17, %s15
  $region1: #{tpu_custom_call.1} parent=0
    #allocation2 [shape = 'u8[262144]{0}', space=vmem, size = 0x40000, scoped, tag = 'input window, operand 5, single buffered']
    #allocation3 [shape = 's32[1]{0}', space=sflag, size = 0x4, scoped, tag = 'scoped memory for tpu_custom_call.1']
    #allocation4 [shape = 's32[1]{0}', space=sflag, size = 0x4, scoped, tag = 'scoped memory for tpu_custom_call.1']
    #allocation5 [shape = 'u8[262144]{0}', space=vmem, size = 0x40000, scoped, tag = 'input window, operand 6, single buffered']
    #allocation6 [shape = 's32[1]{0}', space=sflag, size = 0x4, scoped, tag = 'scoped memory for tpu_custom_call.1']
    #allocation7 [shape = 'u8[65536]{0}', space=vmem, size = 0x10000, scoped, tag = 'input window, operand 8, single buffered']
    #allocation8 [shape = 'u8[20480]{0}', space=vmem, size = 0x5000, scoped, tag = 'output window, operand 0, single buffered']
    #allocation9 [shape = 'u8[20480]{0}', space=vmem, size = 0x5000, scoped, tag = 'output window, operand 2, single buffered']
    #allocation10 [shape = 's32[1]{0}', space=sflag, size = 0x4, scoped, tag = 'scoped memory for tpu_custom_call.1']
    #allocation11 [shape = 'u8[20480]{0}', space=vmem, size = 0x5000, scoped, tag = 'output window, operand 3, single buffered']
    %19 = vsyncpa [#allocation3], 0
    %20 = vsyncpa [#allocation6], 0
    %21 = vsyncpa [#allocation4], 0
    %22 = vsyncpa [#allocation10], 0
    // Predicated region
    $region2: #{tpu_custom_call.1} parent=1 // pred_check
      _
    $region3: #{tpu_custom_call.1} parent=1 // pred_check_branch
      %24 = sbr.rel (0) target = $region5
    $region4: #{tpu_custom_call.1} parent=1 // pred_region
      _
    $region5: #{tpu_custom_call.1} parent=1 // pred_fallthru
      _
    // Predicated region
    $region6: #{tpu_custom_call.1} parent=1 // pred_check
      _
    $region7: #{tpu_custom_call.1} parent=1 // pred_check_branch
      %26 = sbr.rel (0) target = $region9
    $region8: #{tpu_custom_call.1} parent=1 // pred_region
      _
    $region9: #{tpu_custom_call.1} parent=1 // pred_fallthru
      _
    // Predicated region
    $region10: #{tpu_custom_call.1} parent=1 // pred_check
      _
    $region11: #{tpu_custom_call.1} parent=1 // pred_check_branch
      %28 = sbr.rel (0) target = $region13
    $region12: #{tpu_custom_call.1} parent=1 // pred_region
      _
    $region13: #{tpu_custom_call.1} parent=1 // pred_fallthru
      _
    // Predicated region
    $region14: #{tpu_custom_call.1} parent=1 // pred_check
      _
    $region15: #{tpu_custom_call.1} parent=1 // pred_check_branch
      %30 = sbr.rel (0) target = $region17
    $region16: #{tpu_custom_call.1} parent=1 // pred_region
      _
    $region17: #{tpu_custom_call.1} parent=1 // pred_fallthru
      _
    // Predicated region
    $region18: #{tpu_custom_call.1} parent=1 // pred_check
      _
    $region19: #{tpu_custom_call.1} parent=1 // pred_check_branch
      %32 = sbr.rel (0) target = $region21
    $region20: #{tpu_custom_call.1} parent=1 // pred_region
      _
    $region21: #{tpu_custom_call.1} parent=1 // pred_fallthru
      _
    // Predicated region
    $region22: #{tpu_custom_call.1} parent=1 // pred_check
      _
    $region23: #{tpu_custom_call.1} parent=1 // pred_check_branch
      %34 = sbr.rel (0) target = $region25
    $region24: #{tpu_custom_call.1} parent=1 // pred_region
      %s36 = ssub.s32 8192, 8192
      %37 = vsyncadd [#allocation3], %s36
      %s38 = sshll.u32 [#allocation2], 4
      %s39 = int_to_ptr.vmem [resolvable:$true] %s38
      %44 = dma.hbm_to_vmem [thread:$0]  %s5, 8192, %s39, [#allocation3], 512, 512, 32
    $region25: #{tpu_custom_call.1} parent=1 // pred_fallthru
      _
    // Predicated region
    $region26: #{tpu_custom_call.1} parent=1 // pred_check
      _
    $region27: #{tpu_custom_call.1} parent=1 // pred_check_branch
      %46 = sbr.rel (0) target = $region29
    $region28: #{tpu_custom_call.1} parent=1 // pred_region
      %s48 = ssub.s32 8192, 8192
      %49 = vsyncadd [#allocation6], %s48
      %s50 = sshll.u32 [#allocation5], 4
      %s51 = int_to_ptr.vmem [resolvable:$true] %s50
      %56 = dma.hbm_to_vmem [thread:$0]  %s6, 8192, %s51, [#allocation6], 512, 512, 32
    $region29: #{tpu_custom_call.1} parent=1 // pred_fallthru
      _
    // Predicated region
    $region30: #{tpu_custom_call.1} parent=1 // pred_check
      _
    $region31: #{tpu_custom_call.1} parent=1 // pred_check_branch
      %58 = sbr.rel (0) target = $region33
    $region32: #{tpu_custom_call.1} parent=1 // pred_region
      _
    $region33: #{tpu_custom_call.1} parent=1 // pred_fallthru
      _
    // Predicated region
    $region34: #{tpu_custom_call.1} parent=1 // pred_check
      _
    $region35: #{tpu_custom_call.1} parent=1 // pred_check_branch
      %60 = sbr.rel (0) target = $region37
    $region36: #{tpu_custom_call.1} parent=1 // pred_region
      %s62 = ssub.s32 2048, 2048
      %63 = vsyncadd [#allocation6], %s62
      %s64 = sshll.u32 [#allocation7], 4
      %s65 = int_to_ptr.vmem [resolvable:$true] %s64
      %70 = dma.hbm_to_vmem [thread:$0]  %s8, 2048, %s65, [#allocation6], 128, 128, 8
    $region37: #{tpu_custom_call.1} parent=1 // pred_fallthru
      _
    // Predicated region
    $region38: #{tpu_custom_call.1} parent=1 // pred_check
      _
    $region39: #{tpu_custom_call.1} parent=1 // pred_check_branch
      %72 = sbr.rel (0) target = $region41
    $region40: #{tpu_custom_call.1} parent=1 // pred_region
      _
    $region41: #{tpu_custom_call.1} parent=1 // pred_fallthru
      _
    // Predicated region
    $region42: #{tpu_custom_call.1} parent=1 // pred_check
      _
    $region43: #{tpu_custom_call.1} parent=1 // pred_check_branch
      %74 = sbr.rel (0) target = $region45
    $region44: #{tpu_custom_call.1} parent=1 // pred_region
      %75 = dma.done [#allocation3], 8192
    $region45: #{tpu_custom_call.1} parent=1 // pred_fallthru
      _
    // Predicated region
    $region46: #{tpu_custom_call.1} parent=1 // pred_check
      _
    $region47: #{tpu_custom_call.1} parent=1 // pred_check_branch
      %77 = sbr.rel (0) target = $region49
    $region48: #{tpu_custom_call.1} parent=1 // pred_region
      %78 = dma.done [#allocation6], 8192
    $region49: #{tpu_custom_call.1} parent=1 // pred_fallthru
      _
    // Predicated region
    $region50: #{tpu_custom_call.1} parent=1 // pred_check
      _
    $region51: #{tpu_custom_call.1} parent=1 // pred_check_branch
      %80 = sbr.rel (0) target = $region53
    $region52: #{tpu_custom_call.1} parent=1 // pred_region
      %81 = dma.done [#allocation6], 2048
    $region53: #{tpu_custom_call.1} parent=1 // pred_fallthru
      _
    %v82 = vld [vmem:[%s1] sm:$0xff]
    %v83 = vld [vmem:[#allocation2] sm:$0xff]
    %v84 = vld [vmem:[#allocation2 + $0x8] sm:$0xff]
    %v85 = vld [vmem:[#allocation2 + $0x10] sm:$0xff]
    %v86 = vld [vmem:[#allocation2 + $0x18] sm:$0xff]
    %v87 = vld [vmem:[#allocation2 + $0x20] sm:$0xff]
    %v88 = vld [vmem:[#allocation2 + $0x28] sm:$0xff]
    %v89 = vld [vmem:[#allocation2 + $0x30] sm:$0xff]
    %v90 = vld [vmem:[#allocation2 + $0x38] sm:$0xff]
    %v91 = vld [vmem:[#allocation2 + $0x40] sm:$0xff]
    %v92 = vld [vmem:[#allocation2 + $0x48] sm:$0xff]
    %v93 = vld [vmem:[#allocation2 + $0x50] sm:$0xff]
    %v94 = vld [vmem:[#allocation2 + $0x58] sm:$0xff]
    %v95 = vld [vmem:[#allocation2 + $0x60] sm:$0xff]
    %v96 = vld [vmem:[#allocation2 + $0x68] sm:$0xff]
    %v97 = vld [vmem:[#allocation2 + $0x70] sm:$0xff]
    %v98 = vld [vmem:[#allocation2 + $0x78] sm:$0xff]
    %v99 = vld [vmem:[#allocation2 + $0x80] sm:$0xff]
    %v100 = vld [vmem:[#allocation2 + $0x88] sm:$0xff]
    %v101 = vld [vmem:[#allocation2 + $0x90] sm:$0xff]
    %v102 = vld [vmem:[#allocation2 + $0x98] sm:$0xff]
    %v103 = vld [vmem:[#allocation2 + $0xa0] sm:$0xff]
    %v104 = vld [vmem:[#allocation2 + $0xa8] sm:$0xff]
    %v105 = vld [vmem:[#allocation2 + $0xb0] sm:$0xff]
    %v106 = vld [vmem:[#allocation2 + $0xb8] sm:$0xff]
    %v107 = vld [vmem:[#allocation2 + $0xc0] sm:$0xff]
    %v108 = vld [vmem:[#allocation2 + $0xc8] sm:$0xff]
    %v109 = vld [vmem:[#allocation2 + $0xd0] sm:$0xff]
    %v110 = vld [vmem:[#allocation2 + $0xd8] sm:$0xff]
    %v111 = vld [vmem:[#allocation2 + $0xe0] sm:$0xff]
    %v112 = vld [vmem:[#allocation2 + $0xe8] sm:$0xff]
    %v113 = vld [vmem:[#allocation2 + $0xf0] sm:$0xff]
    %v114 = vld [vmem:[#allocation2 + $0xf8] sm:$0xff]
    %v115 = vld [vmem:[#allocation2 + $0x100] sm:$0xff]
    %v116 = vld [vmem:[#allocation2 + $0x108] sm:$0xff]
    %v117 = vld [vmem:[#allocation2 + $0x110] sm:$0xff]
    %v118 = vld [vmem:[#allocation2 + $0x118] sm:$0xff]
    %v119 = vld [vmem:[#allocation2 + $0x120] sm:$0xff]
    %v120 = vld [vmem:[#allocation2 + $0x128] sm:$0xff]
    %v121 = vld [vmem:[#allocation2 + $0x130] sm:$0xff]
    %v122 = vld [vmem:[#allocation2 + $0x138] sm:$0xff]
    %v123 = vld [vmem:[#allocation2 + $0x140] sm:$0xff]
    %v124 = vld [vmem:[#allocation2 + $0x148] sm:$0xff]
    %v125 = vld [vmem:[#allocation2 + $0x150] sm:$0xff]
    %v126 = vld [vmem:[#allocation2 + $0x158] sm:$0xff]
    %v127 = vld [vmem:[#allocation2 + $0x160] sm:$0xff]
    %v128 = vld [vmem:[#allocation2 + $0x168] sm:$0xff]
    %v129 = vld [vmem:[#allocation2 + $0x170] sm:$0xff]
    %v130 = vld [vmem:[#allocation2 + $0x178] sm:$0xff]
    %v131 = vld [vmem:[#allocation2 + $0x180] sm:$0xff]
    %v132 = vld [vmem:[#allocation2 + $0x188] sm:$0xff]
    %v133 = vld [vmem:[#allocation2 + $0x190] sm:$0xff]
    %v134 = vld [vmem:[#allocation2 + $0x198] sm:$0xff]
    %v135 = vld [vmem:[#allocation2 + $0x1a0] sm:$0xff]
    %v136 = vld [vmem:[#allocation2 + $0x1a8] sm:$0xff]
    %v137 = vld [vmem:[#allocation2 + $0x1b0] sm:$0xff]
    %v138 = vld [vmem:[#allocation2 + $0x1b8] sm:$0xff]
    %v139 = vld [vmem:[#allocation2 + $0x1c0] sm:$0xff]
    %v140 = vld [vmem:[#allocation2 + $0x1c8] sm:$0xff]
    %v141 = vld [vmem:[#allocation2 + $0x1d0] sm:$0xff]
    %v142 = vld [vmem:[#allocation2 + $0x1d8] sm:$0xff]
    %v143 = vld [vmem:[#allocation2 + $0x1e0] sm:$0xff]
    %v144 = vld [vmem:[#allocation2 + $0x1e8] sm:$0xff]
    %v145 = vld [vmem:[#allocation2 + $0x1f0] sm:$0xff]
    %v146 = vld [vmem:[#allocation2 + $0x1f8] sm:$0xff]
    %v147 = vld [vmem:[%s7] sm:$0xf]
    %v149 = vlaneseq
    %v150 = vshrl.u32 %v149, 7
    %v151 = vsub.s32 0, %v150
    %v152 = vrot.slane %v147, %v151
    %v153 = vlaneseq
    %v154 = vshrl.u32 %v153, 7
    %v155 = vsub.s32 1, %v154
    %v156 = vrot.slane %v147, %v155
    %v157 = vlaneseq
    %v158 = vshrl.u32 %v157, 7
    %v159 = vsub.s32 2, %v158
    %v160 = vrot.slane %v147, %v159
    %v161 = vlaneseq
    %v162 = vshrl.u32 %v161, 7
    %v163 = vsub.s32 3, %v162
    %v164 = vrot.slane %v147, %v163
    %169 = vmatprep.subr.mxu0 %v84
    %170 = vmatpush1.msra.mxu0 %v83
    %171 = vmatprep.subr.mxu0 %v88
    %172 = vmatpush1.msra.mxu0 %v87
    %173 = vmatprep.subr.mxu0 %v92
    %174 = vmatpush1.msra.mxu0 %v91
    %175 = vmatprep.subr.mxu0 %v96
    %176 = vmatpush1.msra.mxu0 %v95
    %177 = vmatprep.subr.mxu0 %v100
    %178 = vmatpush1.msra.mxu0 %v99
    %179 = vmatprep.subr.mxu0 %v104
    %180 = vmatpush1.msra.mxu0 %v103
    %181 = vmatprep.subr.mxu0 %v108
    %182 = vmatpush1.msra.mxu0 %v107
    %183 = vmatprep.subr.mxu0 %v112
    %184 = vmatpush1.msra.mxu0 %v111
    %185 = vmatprep.subr.mxu0 %v116
    %186 = vmatpush1.msra.mxu0 %v115
    %187 = vmatprep.subr.mxu0 %v120
    %188 = vmatpush1.msra.mxu0 %v119
    %189 = vmatprep.subr.mxu0 %v124
    %190 = vmatpush1.msra.mxu0 %v123
    %191 = vmatprep.subr.mxu0 %v128
    %192 = vmatpush1.msra.mxu0 %v127
    %193 = vmatprep.subr.mxu0 %v132
    %194 = vmatpush1.msra.mxu0 %v131
    %195 = vmatprep.subr.mxu0 %v136
    %196 = vmatpush1.msra.mxu0 %v135
    %197 = vmatprep.subr.mxu0 %v140
    %198 = vmatpush1.msra.mxu0 %v139
    %199 = vmatprep.subr.mxu0 %v144
    %200 = vmatpush1.msra.mxu0 %v143
    %201 = vmatprep.subr.mxu0 0.0
    %202 = vmatpush1.msra.mxu0 0.0
    %203 = vmatprep.subr.mxu0 0.0
    %204 = vmatpush1.msra.mxu0 0.0
    %205 = vmatprep.subr.mxu0 0.0
    %206 = vmatpush1.msra.mxu0 0.0
    %207 = vmatprep.subr.mxu0 0.0
    %208 = vmatpush1.msra.mxu0 0.0
    %209 = vmatprep.subr.mxu0 0.0
    %210 = vmatpush1.msra.mxu0 0.0
    %211 = vmatprep.subr.mxu0 0.0
    %212 = vmatpush1.msra.mxu0 0.0
    %213 = vmatprep.subr.mxu0 0.0
    %214 = vmatpush1.msra.mxu0 0.0
    %215 = vmatprep.subr.mxu0 0.0
    %216 = vmatpush1.msra.mxu0 0.0
    %217 = vmatprep.subr.mxu0 0.0
    %218 = vmatpush1.msra.mxu0 0.0
    %219 = vmatprep.subr.mxu0 0.0
    %220 = vmatpush1.msra.mxu0 0.0
    %221 = vmatprep.subr.mxu0 0.0
    %222 = vmatpush1.msra.mxu0 0.0
    %223 = vmatprep.subr.mxu0 0.0
    %224 = vmatpush1.msra.mxu0 0.0
    %225 = vmatprep.subr.mxu0 0.0
    %226 = vmatpush1.msra.mxu0 0.0
    %227 = vmatprep.subr.mxu0 0.0
    %228 = vmatpush1.msra.mxu0 0.0
    %229 = vmatprep.subr.mxu0 0.0
    %230 = vmatpush1.msra.mxu0 0.0
    %231 = vmatprep.subr.mxu0 0.0
    %232 = vmatpush1.msra.mxu0 0.0
    %233 = vmatprep.mubr.f32.mxu0 0.0
    %234 = vmatmul.mubr.f32.gmra.mrb[0].mxu0 %v82
    %v235 = vpop.f32.mrb[0].mxu0
    %v236 = vadd.f32 %v152, %v235
    %v237 = vpop.f32.mrb[0].mxu0
    %v238 = vadd.f32 %v156, %v237
    %239 = vdwg.mxu0
    %240 = vmatprep.subr.mxu0 %v86
    %241 = vmatpush1.msra.mxu0 %v85
    %242 = vmatprep.subr.mxu0 %v90
    %243 = vmatpush1.msra.mxu0 %v89
    %244 = vmatprep.subr.mxu0 %v94
    %245 = vmatpush1.msra.mxu0 %v93
    %246 = vmatprep.subr.mxu0 %v98
    %247 = vmatpush1.msra.mxu0 %v97
    %248 = vmatprep.subr.mxu0 %v102
    %249 = vmatpush1.msra.mxu0 %v101
    %250 = vmatprep.subr.mxu0 %v106
    %251 = vmatpush1.msra.mxu0 %v105
    %252 = vmatprep.subr.mxu0 %v110
    %253 = vmatpush1.msra.mxu0 %v109
    %254 = vmatprep.subr.mxu0 %v114
    %255 = vmatpush1.msra.mxu0 %v113
    %256 = vmatprep.subr.mxu0 %v118
    %257 = vmatpush1.msra.mxu0 %v117
    %258 = vmatprep.subr.mxu0 %v122
    %259 = vmatpush1.msra.mxu0 %v121
    %260 = vmatprep.subr.mxu0 %v126
    %261 = vmatpush1.msra.mxu0 %v125
    %262 = vmatprep.subr.mxu0 %v130
    %263 = vmatpush1.msra.mxu0 %v129
    %264 = vmatprep.subr.mxu0 %v134
    %265 = vmatpush1.msra.mxu0 %v133
    %266 = vmatprep.subr.mxu0 %v138
    %267 = vmatpush1.msra.mxu0 %v137
    %268 = vmatprep.subr.mxu0 %v142
    %269 = vmatpush1.msra.mxu0 %v141
    %270 = vmatprep.subr.mxu0 %v146
    %271 = vmatpush1.msra.mxu0 %v145
    %272 = vmatprep.subr.mxu0 0.0
    %273 = vmatpush1.msra.mxu0 0.0
    %274 = vmatprep.subr.mxu0 0.0
    %275 = vmatpush1.msra.mxu0 0.0
    %276 = vmatprep.subr.mxu0 0.0
    %277 = vmatpush1.msra.mxu0 0.0
    %278 = vmatprep.subr.mxu0 0.0
    %279 = vmatpush1.msra.mxu0 0.0
    %280 = vmatprep.subr.mxu0 0.0
    %281 = vmatpush1.msra.mxu0 0.0
    %282 = vmatprep.subr.mxu0 0.0
    %283 = vmatpush1.msra.mxu0 0.0
    %284 = vmatprep.subr.mxu0 0.0
    %285 = vmatpush1.msra.mxu0 0.0
    %286 = vmatprep.subr.mxu0 0.0
    %287 = vmatpush1.msra.mxu0 0.0
    %288 = vmatprep.subr.mxu0 0.0
    %289 = vmatpush1.msra.mxu0 0.0
    %290 = vmatprep.subr.mxu0 0.0
    %291 = vmatpush1.msra.mxu0 0.0
    %292 = vmatprep.subr.mxu0 0.0
    %293 = vmatpush1.msra.mxu0 0.0
    %294 = vmatprep.subr.mxu0 0.0
    %295 = vmatpush1.msra.mxu0 0.0
    %296 = vmatprep.subr.mxu0 0.0
    %297 = vmatpush1.msra.mxu0 0.0
    %298 = vmatprep.subr.mxu0 0.0
    %299 = vmatpush1.msra.mxu0 0.0
    %300 = vmatprep.subr.mxu0 0.0
    %301 = vmatpush1.msra.mxu0 0.0
    %302 = vmatprep.subr.mxu0 0.0
    %303 = vmatpush1.msra.mxu0 0.0
    %304 = vmatprep.mubr.f32.mxu0 0.0
    %305 = vmatmul.mubr.f32.gmra.mrb[0].mxu0 %v82
    %v306 = vpop.f32.mrb[0].mxu0
    %v307 = vadd.f32 %v160, %v306
    %v308 = vpop.f32.mrb[0].mxu0
    %v309 = vadd.f32 %v164, %v308
    %310 = vdwg.mxu0
    %v311 = vld [vmem:[%s9] sm:$0x1]
    %v313 = vlaneseq
    %v314 = vshrl.u32 %v313, 7
    %v315 = vsub.s32 0, %v314
    %v316 = vrot.slane %v311, %v315
    %v318 = vld [vmem:[%s3] sm:$0xff]
    %v319 = vld [vmem:[%s3 + $0x8] sm:$0xff]
    %v320 = vld [vmem:[%s3 + $0x10] sm:$0xff]
    %v321 = vld [vmem:[%s3 + $0x18] sm:$0xff]
    %v322 = vld [vmem:[%s3 + $0x20] sm:$0xff]
    %v323 = vld [vmem:[%s3 + $0x28] sm:$0xff]
    %v324 = vld [vmem:[%s3 + $0x30] sm:$0xff]
    %v325 = vld [vmem:[%s3 + $0x38] sm:$0xff]
    %v326 = vld [vmem:[%s3 + $0x40] sm:$0xff]
    %v327 = vld [vmem:[%s3 + $0x48] sm:$0xff]
    %v328 = vld [vmem:[%s3 + $0x50] sm:$0xff]
    %v329 = vld [vmem:[%s3 + $0x58] sm:$0xff]
    %v330 = vld [vmem:[%s3 + $0x60] sm:$0xff]
    %v331 = vld [vmem:[%s3 + $0x68] sm:$0xff]
    %v332 = vld [vmem:[%s3 + $0x70] sm:$0xff]
    %v333 = vld [vmem:[%s3 + $0x78] sm:$0xff]
    %v334 = vld [vmem:[%s4] sm:$0xff]
    %v335 = vld [vmem:[%s4 + $0x8] sm:$0xff]
    %v336 = vld [vmem:[%s4 + $0x10] sm:$0xff]
    %v337 = vld [vmem:[%s4 + $0x18] sm:$0xff]
    %v338 = vld [vmem:[%s4 + $0x20] sm:$0xff]
    %v339 = vld [vmem:[%s4 + $0x28] sm:$0xff]
    %v340 = vld [vmem:[%s4 + $0x30] sm:$0xff]
    %v341 = vld [vmem:[%s4 + $0x38] sm:$0xff]
    %v342 = vld [vmem:[%s4 + $0x40] sm:$0xff]
    %v343 = vld [vmem:[%s4 + $0x48] sm:$0xff]
    %v344 = vld [vmem:[%s4 + $0x50] sm:$0xff]
    %v345 = vld [vmem:[%s4 + $0x58] sm:$0xff]
    %v346 = vld [vmem:[%s4 + $0x60] sm:$0xff]
    %v347 = vld [vmem:[%s4 + $0x68] sm:$0xff]
    %v348 = vld [vmem:[%s4 + $0x70] sm:$0xff]
    %v349 = vld [vmem:[%s4 + $0x78] sm:$0xff]
    %v350 = vld [vmem:[#allocation5] sm:$0xff]
    %v351 = vld [vmem:[#allocation5 + $0x8] sm:$0xff]
    %v352 = vld [vmem:[#allocation5 + $0x10] sm:$0xff]
    %v353 = vld [vmem:[#allocation5 + $0x18] sm:$0xff]
    %v354 = vld [vmem:[#allocation5 + $0x20] sm:$0xff]
    %v355 = vld [vmem:[#allocation5 + $0x28] sm:$0xff]
    %v356 = vld [vmem:[#allocation5 + $0x30] sm:$0xff]
    %v357 = vld [vmem:[#allocation5 + $0x38] sm:$0xff]
    %v358 = vld [vmem:[#allocation5 + $0x40] sm:$0xff]
    %v359 = vld [vmem:[#allocation5 + $0x48] sm:$0xff]
    %v360 = vld [vmem:[#allocation5 + $0x50] sm:$0xff]
    %v361 = vld [vmem:[#allocation5 + $0x58] sm:$0xff]
    %v362 = vld [vmem:[#allocation5 + $0x60] sm:$0xff]
    %v363 = vld [vmem:[#allocation5 + $0x68] sm:$0xff]
    %v364 = vld [vmem:[#allocation5 + $0x70] sm:$0xff]
    %v365 = vld [vmem:[#allocation5 + $0x78] sm:$0xff]
    %v366 = vld [vmem:[#allocation5 + $0x80] sm:$0xff]
    %v367 = vld [vmem:[#allocation5 + $0x88] sm:$0xff]
    %v368 = vld [vmem:[#allocation5 + $0x90] sm:$0xff]
    %v369 = vld [vmem:[#allocation5 + $0x98] sm:$0xff]
    %v370 = vld [vmem:[#allocation5 + $0xa0] sm:$0xff]
    %v371 = vld [vmem:[#allocation5 + $0xa8] sm:$0xff]
    %v372 = vld [vmem:[#allocation5 + $0xb0] sm:$0xff]
    %v373 = vld [vmem:[#allocation5 + $0xb8] sm:$0xff]
    %v374 = vld [vmem:[#allocation5 + $0xc0] sm:$0xff]
    %v375 = vld [vmem:[#allocation5 + $0xc8] sm:$0xff]
    %v376 = vld [vmem:[#allocation5 + $0xd0] sm:$0xff]
    %v377 = vld [vmem:[#allocation5 + $0xd8] sm:$0xff]
    %v378 = vld [vmem:[#allocation5 + $0xe0] sm:$0xff]
    %v379 = vld [vmem:[#allocation5 + $0xe8] sm:$0xff]
    %v380 = vld [vmem:[#allocation5 + $0xf0] sm:$0xff]
    %v381 = vld [vmem:[#allocation5 + $0xf8] sm:$0xff]
    %v382 = vld [vmem:[#allocation5 + $0x100] sm:$0xff]
    %v383 = vld [vmem:[#allocation5 + $0x108] sm:$0xff]
    %v384 = vld [vmem:[#allocation5 + $0x110] sm:$0xff]
    %v385 = vld [vmem:[#allocation5 + $0x118] sm:$0xff]
    %v386 = vld [vmem:[#allocation5 + $0x120] sm:$0xff]
    %v387 = vld [vmem:[#allocation5 + $0x128] sm:$0xff]
    %v388 = vld [vmem:[#allocation5 + $0x130] sm:$0xff]
    %v389 = vld [vmem:[#allocation5 + $0x138] sm:$0xff]
    %v390 = vld [vmem:[#allocation5 + $0x140] sm:$0xff]
    %v391 = vld [vmem:[#allocation5 + $0x148] sm:$0xff]
    %v392 = vld [vmem:[#allocation5 + $0x150] sm:$0xff]
    %v393 = vld [vmem:[#allocation5 + $0x158] sm:$0xff]
    %v394 = vld [vmem:[#allocation5 + $0x160] sm:$0xff]
    %v395 = vld [vmem:[#allocation5 + $0x168] sm:$0xff]
    %v396 = vld [vmem:[#allocation5 + $0x170] sm:$0xff]
    %v397 = vld [vmem:[#allocation5 + $0x178] sm:$0xff]
    %v398 = vld [vmem:[#allocation5 + $0x180] sm:$0xff]
    %v399 = vld [vmem:[#allocation5 + $0x188] sm:$0xff]
    %v400 = vld [vmem:[#allocation5 + $0x190] sm:$0xff]
    %v401 = vld [vmem:[#allocation5 + $0x198] sm:$0xff]
    %v402 = vld [vmem:[#allocation5 + $0x1a0] sm:$0xff]
    %v403 = vld [vmem:[#allocation5 + $0x1a8] sm:$0xff]
    %v404 = vld [vmem:[#allocation5 + $0x1b0] sm:$0xff]
    %v405 = vld [vmem:[#allocation5 + $0x1b8] sm:$0xff]
    %v406 = vld [vmem:[#allocation5 + $0x1c0] sm:$0xff]
    %v407 = vld [vmem:[#allocation5 + $0x1c8] sm:$0xff]
    %v408 = vld [vmem:[#allocation5 + $0x1d0] sm:$0xff]
    %v409 = vld [vmem:[#allocation5 + $0x1d8] sm:$0xff]
    %v410 = vld [vmem:[#allocation5 + $0x1e0] sm:$0xff]
    %v411 = vld [vmem:[#allocation5 + $0x1e8] sm:$0xff]
    %v412 = vld [vmem:[#allocation5 + $0x1f0] sm:$0xff]
    %v413 = vld [vmem:[#allocation5 + $0x1f8] sm:$0xff]
    %v414 = vld [vmem:[#allocation7] sm:$0xff]
    %v415 = vld [vmem:[#allocation7 + $0x8] sm:$0xff]
    %v416 = vld [vmem:[#allocation7 + $0x10] sm:$0xff]
    %v417 = vld [vmem:[#allocation7 + $0x18] sm:$0xff]
    %v418 = vld [vmem:[#allocation7 + $0x20] sm:$0xff]
    %v419 = vld [vmem:[#allocation7 + $0x28] sm:$0xff]
    %v420 = vld [vmem:[#allocation7 + $0x30] sm:$0xff]
    %v421 = vld [vmem:[#allocation7 + $0x38] sm:$0xff]
    %v422 = vld [vmem:[#allocation7 + $0x40] sm:$0xff]
    %v423 = vld [vmem:[#allocation7 + $0x48] sm:$0xff]
    %v424 = vld [vmem:[#allocation7 + $0x50] sm:$0xff]
    %v425 = vld [vmem:[#allocation7 + $0x58] sm:$0xff]
    %v426 = vld [vmem:[#allocation7 + $0x60] sm:$0xff]
    %v427 = vld [vmem:[#allocation7 + $0x68] sm:$0xff]
    %v428 = vld [vmem:[#allocation7 + $0x70] sm:$0xff]
    %v429 = vld [vmem:[#allocation7 + $0x78] sm:$0xff]
    %v430 = vlaneseq
    %v431 = vand.u32 %v430, 127
    %v432 = vld [vmem:[%s2] sm:$0xff]
    %v433 = vld [vmem:[%s0] sm:$0xff]
    %434 = vmatprep.subr.mxu0 %v351
    %435 = vmatpush1.msra.mxu0 %v350
    %436 = vmatprep.subr.mxu0 %v355
    %437 = vmatpush1.msra.mxu0 %v354
    %438 = vmatprep.subr.mxu0 %v359
    %439 = vmatpush1.msra.mxu0 %v358
    %440 = vmatprep.subr.mxu0 %v363
    %441 = vmatpush1.msra.mxu0 %v362
    %442 = vmatprep.subr.mxu0 %v367
    %443 = vmatpush1.msra.mxu0 %v366
    %444 = vmatprep.subr.mxu0 %v371
    %445 = vmatpush1.msra.mxu0 %v370
    %446 = vmatprep.subr.mxu0 %v375
    %447 = vmatpush1.msra.mxu0 %v374
    %448 = vmatprep.subr.mxu0 %v379
    %449 = vmatpush1.msra.mxu0 %v378
    %450 = vmatprep.subr.mxu0 %v383
    %451 = vmatpush1.msra.mxu0 %v382
    %452 = vmatprep.subr.mxu0 %v387
    %453 = vmatpush1.msra.mxu0 %v386
    %454 = vmatprep.subr.mxu0 %v391
    %455 = vmatpush1.msra.mxu0 %v390
    %456 = vmatprep.subr.mxu0 %v395
    %457 = vmatpush1.msra.mxu0 %v394
    %458 = vmatprep.subr.mxu0 %v399
    %459 = vmatpush1.msra.mxu0 %v398
    %460 = vmatprep.subr.mxu0 %v403
    %461 = vmatpush1.msra.mxu0 %v402
    %462 = vmatprep.subr.mxu0 %v407
    %463 = vmatpush1.msra.mxu0 %v406
    %464 = vmatprep.subr.mxu0 %v411
    %465 = vmatpush1.msra.mxu0 %v410
    %466 = vmatprep.subr.mxu0 0.0
    %467 = vmatpush1.msra.mxu0 0.0
    %468 = vmatprep.subr.mxu0 0.0
    %469 = vmatpush1.msra.mxu0 0.0
    %470 = vmatprep.subr.mxu0 0.0
    %471 = vmatpush1.msra.mxu0 0.0
    %472 = vmatprep.subr.mxu0 0.0
    %473 = vmatpush1.msra.mxu0 0.0
    %474 = vmatprep.subr.mxu0 0.0
    %475 = vmatpush1.msra.mxu0 0.0
    %476 = vmatprep.subr.mxu0 0.0
    %477 = vmatpush1.msra.mxu0 0.0
    %478 = vmatprep.subr.mxu0 0.0
    %479 = vmatpush1.msra.mxu0 0.0
    %480 = vmatprep.subr.mxu0 0.0
    %481 = vmatpush1.msra.mxu0 0.0
    %482 = vmatprep.subr.mxu0 0.0
    %483 = vmatpush1.msra.mxu0 0.0
    %484 = vmatprep.subr.mxu0 0.0
    %485 = vmatpush1.msra.mxu0 0.0
    %486 = vmatprep.subr.mxu0 0.0
    %487 = vmatpush1.msra.mxu0 0.0
    %488 = vmatprep.subr.mxu0 0.0
    %489 = vmatpush1.msra.mxu0 0.0
    %490 = vmatprep.subr.mxu0 0.0
    %491 = vmatpush1.msra.mxu0 0.0
    %492 = vmatprep.subr.mxu0 0.0
    %493 = vmatpush1.msra.mxu0 0.0
    %494 = vmatprep.subr.mxu0 0.0
    %495 = vmatpush1.msra.mxu0 0.0
    %496 = vmatprep.subr.mxu0 0.0
    %497 = vmatpush1.msra.mxu0 0.0
    %498 = vmatprep.mubr.f32.mxu0 0.0
    %499 = vmatmul.mubr.f32.gmra.mrb[0].mxu0 %v82
    %v500 = vpop.f32.mrb[0].mxu0
    %v501 = vadd.f32 0.0, %v500
    %v502 = vpop.f32.mrb[0].mxu0
    %v503 = vadd.f32 0.0, %v502
    %504 = vdwg.mxu0
    %505 = vmatprep.subr.mxu0 %v353
    %506 = vmatpush1.msra.mxu0 %v352
    %507 = vmatprep.subr.mxu0 %v357
    %508 = vmatpush1.msra.mxu0 %v356
    %509 = vmatprep.subr.mxu0 %v361
    %510 = vmatpush1.msra.mxu0 %v360
    %511 = vmatprep.subr.mxu0 %v365
    %512 = vmatpush1.msra.mxu0 %v364
    %513 = vmatprep.subr.mxu0 %v369
    %514 = vmatpush1.msra.mxu0 %v368
    %515 = vmatprep.subr.mxu0 %v373
    %516 = vmatpush1.msra.mxu0 %v372
    %517 = vmatprep.subr.mxu0 %v377
    %518 = vmatpush1.msra.mxu0 %v376
    %519 = vmatprep.subr.mxu0 %v381
    %520 = vmatpush1.msra.mxu0 %v380
    %521 = vmatprep.subr.mxu0 %v385
    %522 = vmatpush1.msra.mxu0 %v384
    %523 = vmatprep.subr.mxu0 %v389
    %524 = vmatpush1.msra.mxu0 %v388
    %525 = vmatprep.subr.mxu0 %v393
    %526 = vmatpush1.msra.mxu0 %v392
    %527 = vmatprep.subr.mxu0 %v397
    %528 = vmatpush1.msra.mxu0 %v396
    %529 = vmatprep.subr.mxu0 %v401
    %530 = vmatpush1.msra.mxu0 %v400
    %531 = vmatprep.subr.mxu0 %v405
    %532 = vmatpush1.msra.mxu0 %v404
    %533 = vmatprep.subr.mxu0 %v409
    %534 = vmatpush1.msra.mxu0 %v408
    %535 = vmatprep.subr.mxu0 %v413
    %536 = vmatpush1.msra.mxu0 %v412
    %537 = vmatprep.subr.mxu0 0.0
    %538 = vmatpush1.msra.mxu0 0.0
    %539 = vmatprep.subr.mxu0 0.0
    %540 = vmatpush1.msra.mxu0 0.0
    %541 = vmatprep.subr.mxu0 0.0
    %542 = vmatpush1.msra.mxu0 0.0
    %543 = vmatprep.subr.mxu0 0.0
    %544 = vmatpush1.msra.mxu0 0.0
    %545 = vmatprep.subr.mxu0 0.0
    %546 = vmatpush1.msra.mxu0 0.0
    %547 = vmatprep.subr.mxu0 0.0
    %548 = vmatpush1.msra.mxu0 0.0
    %549 = vmatprep.subr.mxu0 0.0
    %550 = vmatpush1.msra.mxu0 0.0
    %551 = vmatprep.subr.mxu0 0.0
    %552 = vmatpush1.msra.mxu0 0.0
    %553 = vmatprep.subr.mxu0 0.0
    %554 = vmatpush1.msra.mxu0 0.0
    %555 = vmatprep.subr.mxu0 0.0
    %556 = vmatpush1.msra.mxu0 0.0
    %557 = vmatprep.subr.mxu0 0.0
    %558 = vmatpush1.msra.mxu0 0.0
    %559 = vmatprep.subr.mxu0 0.0
    %560 = vmatpush1.msra.mxu0 0.0
    %561 = vmatprep.subr.mxu0 0.0
    %562 = vmatpush1.msra.mxu0 0.0
    %563 = vmatprep.subr.mxu0 0.0
    %564 = vmatpush1.msra.mxu0 0.0
    %565 = vmatprep.subr.mxu0 0.0
    %566 = vmatpush1.msra.mxu0 0.0
    %567 = vmatprep.subr.mxu0 0.0
    %568 = vmatpush1.msra.mxu0 0.0
    %569 = vmatprep.mubr.f32.mxu0 0.0
    %570 = vmatmul.mubr.f32.gmra.mrb[0].mxu0 %v82
    %v571 = vpop.f32.mrb[0].mxu0
    %v572 = vadd.f32 0.0, %v571
    %v573 = vpop.f32.mrb[0].mxu0
    %v574 = vadd.f32 0.0, %v573
    %575 = vdwg.mxu0
    %vm576 = vcmask 261120
    %v578 = vsel %vm576, %v433, 0
    %580 = vmatprep.subr.mxu0 %v335
    %581 = vmatpush1.msra.mxu0 %v334
    %582 = vmatprep.subr.mxu0 %v339
    %583 = vmatpush1.msra.mxu0 %v338
    %584 = vmatprep.subr.mxu0 %v343
    %585 = vmatpush1.msra.mxu0 %v342
    %586 = vmatprep.subr.mxu0 %v347
    %587 = vmatpush1.msra.mxu0 %v346
    %588 = vmatprep.subr.mxu0 0.0
    %589 = vmatpush1.msra.mxu0 0.0
    %590 = vmatprep.subr.mxu0 0.0
    %591 = vmatpush1.msra.mxu0 0.0
    %592 = vmatprep.subr.mxu0 0.0
    %593 = vmatpush1.msra.mxu0 0.0
    %594 = vmatprep.subr.mxu0 0.0
    %595 = vmatpush1.msra.mxu0 0.0
    %596 = vmatprep.subr.mxu0 0.0
    %597 = vmatpush1.msra.mxu0 0.0
    %598 = vmatprep.subr.mxu0 0.0
    %599 = vmatpush1.msra.mxu0 0.0
    %600 = vmatprep.subr.mxu0 0.0
    %601 = vmatpush1.msra.mxu0 0.0
    %602 = vmatprep.subr.mxu0 0.0
    %603 = vmatpush1.msra.mxu0 0.0
    %604 = vmatprep.subr.mxu0 0.0
    %605 = vmatpush1.msra.mxu0 0.0
    %606 = vmatprep.subr.mxu0 0.0
    %607 = vmatpush1.msra.mxu0 0.0
    %608 = vmatprep.subr.mxu0 0.0
    %609 = vmatpush1.msra.mxu0 0.0
    %610 = vmatprep.subr.mxu0 0.0
    %611 = vmatpush1.msra.mxu0 0.0
    %612 = vmatprep.subr.mxu0 0.0
    %613 = vmatpush1.msra.mxu0 0.0
    %614 = vmatprep.subr.mxu0 0.0
    %615 = vmatpush1.msra.mxu0 0.0
    %616 = vmatprep.subr.mxu0 0.0
    %617 = vmatpush1.msra.mxu0 0.0
    %618 = vmatprep.subr.mxu0 0.0
    %619 = vmatpush1.msra.mxu0 0.0
    %620 = vmatprep.subr.mxu0 0.0
    %621 = vmatpush1.msra.mxu0 0.0
    %622 = vmatprep.subr.mxu0 0.0
    %623 = vmatpush1.msra.mxu0 0.0
    %624 = vmatprep.subr.mxu0 0.0
    %625 = vmatpush1.msra.mxu0 0.0
    %626 = vmatprep.subr.mxu0 0.0
    %627 = vmatpush1.msra.mxu0 0.0
    %628 = vmatprep.subr.mxu0 0.0
    %629 = vmatpush1.msra.mxu0 0.0
    %630 = vmatprep.subr.mxu0 0.0
    %631 = vmatpush1.msra.mxu0 0.0
    %632 = vmatprep.subr.mxu0 0.0
    %633 = vmatpush1.msra.mxu0 0.0
    %634 = vmatprep.subr.mxu0 0.0
    %635 = vmatpush1.msra.mxu0 0.0
    %636 = vmatprep.subr.mxu0 0.0
    %637 = vmatpush1.msra.mxu0 0.0
    %638 = vmatprep.subr.mxu0 0.0
    %639 = vmatpush1.msra.mxu0 0.0
    %640 = vmatprep.subr.mxu0 0.0
    %641 = vmatpush1.msra.mxu0 0.0
    %642 = vmatprep.subr.mxu0 0.0
    %643 = vmatpush1.msra.mxu0 0.0
    %644 = vmatprep.mubr.f32.mxu0 0.0
    %645 = vmatmul.mubr.f32.gmra.mrb[0].mxu0 %v578
    %v646 = vpop.f32.mrb[0].mxu0
    %v647 = vadd.f32 %v501, %v646
    %v648 = vpop.f32.mrb[0].mxu0
    %v649 = vadd.f32 %v503, %v648
    %650 = vdwg.mxu0
    %651 = vmatprep.subr.mxu0 %v337
    %652 = vmatpush1.msra.mxu0 %v336
    %653 = vmatprep.subr.mxu0 %v341
    %654 = vmatpush1.msra.mxu0 %v340
    %655 = vmatprep.subr.mxu0 %v345
    %656 = vmatpush1.msra.mxu0 %v344
    %657 = vmatprep.subr.mxu0 %v349
    %658 = vmatpush1.msra.mxu0 %v348
    %659 = vmatprep.subr.mxu0 0.0
    %660 = vmatpush1.msra.mxu0 0.0
    %661 = vmatprep.subr.mxu0 0.0
    %662 = vmatpush1.msra.mxu0 0.0
    %663 = vmatprep.subr.mxu0 0.0
    %664 = vmatpush1.msra.mxu0 0.0
    %665 = vmatprep.subr.mxu0 0.0
    %666 = vmatpush1.msra.mxu0 0.0
    %667 = vmatprep.subr.mxu0 0.0
    %668 = vmatpush1.msra.mxu0 0.0
    %669 = vmatprep.subr.mxu0 0.0
    %670 = vmatpush1.msra.mxu0 0.0
    %671 = vmatprep.subr.mxu0 0.0
    %672 = vmatpush1.msra.mxu0 0.0
    %673 = vmatprep.subr.mxu0 0.0
    %674 = vmatpush1.msra.mxu0 0.0
    %675 = vmatprep.subr.mxu0 0.0
    %676 = vmatpush1.msra.mxu0 0.0
    %677 = vmatprep.subr.mxu0 0.0
    %678 = vmatpush1.msra.mxu0 0.0
    %679 = vmatprep.subr.mxu0 0.0
    %680 = vmatpush1.msra.mxu0 0.0
    %681 = vmatprep.subr.mxu0 0.0
    %682 = vmatpush1.msra.mxu0 0.0
    %683 = vmatprep.subr.mxu0 0.0
    %684 = vmatpush1.msra.mxu0 0.0
    %685 = vmatprep.subr.mxu0 0.0
    %686 = vmatpush1.msra.mxu0 0.0
    %687 = vmatprep.subr.mxu0 0.0
    %688 = vmatpush1.msra.mxu0 0.0
    %689 = vmatprep.subr.mxu0 0.0
    %690 = vmatpush1.msra.mxu0 0.0
    %691 = vmatprep.subr.mxu0 0.0
    %692 = vmatpush1.msra.mxu0 0.0
    %693 = vmatprep.subr.mxu0 0.0
    %694 = vmatpush1.msra.mxu0 0.0
    %695 = vmatprep.subr.mxu0 0.0
    %696 = vmatpush1.msra.mxu0 0.0
    %697 = vmatprep.subr.mxu0 0.0
    %698 = vmatpush1.msra.mxu0 0.0
    %699 = vmatprep.subr.mxu0 0.0
    %700 = vmatpush1.msra.mxu0 0.0
    %701 = vmatprep.subr.mxu0 0.0
    %702 = vmatpush1.msra.mxu0 0.0
    %703 = vmatprep.subr.mxu0 0.0
    %704 = vmatpush1.msra.mxu0 0.0
    %705 = vmatprep.subr.mxu0 0.0
    %706 = vmatpush1.msra.mxu0 0.0
    %707 = vmatprep.subr.mxu0 0.0
    %708 = vmatpush1.msra.mxu0 0.0
    %709 = vmatprep.subr.mxu0 0.0
    %710 = vmatpush1.msra.mxu0 0.0
    %711 = vmatprep.subr.mxu0 0.0
    %712 = vmatpush1.msra.mxu0 0.0
    %713 = vmatprep.subr.mxu0 0.0
    %714 = vmatpush1.msra.mxu0 0.0
    %715 = vmatprep.mubr.f32.mxu0 0.0
    %716 = vmatmul.mubr.f32.gmra.mrb[0].mxu0 %v578
    %v717 = vpop.f32.mrb[0].mxu0
    %v718 = vadd.f32 %v572, %v717
    %v719 = vpop.f32.mrb[0].mxu0
    %v720 = vadd.f32 %v574, %v719
    %721 = vdwg.mxu0
    %v722 = vadd.f32 %v647, %v236
    %v723 = vadd.f32 %v649, %v238
    %v724 = vadd.f32 %v718, %v307
    %v725 = vadd.f32 %v720, %v309
    %v726 = vxor.u32 %v722, 2147483648
    %v727 = vmul.f32 %v726, 1.442695
    %v728 = vpow.pop %v727
    %v729 = vadd.f32 %v728, 1.0
    %v730 = vrcp.pop %v729
    %v731 = vmul.f32 1.0, %v730
    %v732 = vxor.u32 %v723, 2147483648
    %v733 = vmul.f32 %v732, 1.442695
    %v734 = vpow.pop %v733
    %v735 = vadd.f32 %v734, 1.0
    %v736 = vrcp.pop %v735
    %v737 = vmul.f32 1.0, %v736
    %v738 = vtanh.pop %v724
    %v739 = vxor.u32 %v725, 2147483648
    %v740 = vmul.f32 %v739, 1.442695
    %v741 = vpow.pop %v740
    %v742 = vadd.f32 %v741, 1.0
    %v743 = vrcp.pop %v742
    %v744 = vmul.f32 1.0, %v743
    %v745 = vmul.f32 %v737, %v432
    %v746 = vmul.f32 %v731, %v738
    %v747 = vadd.f32 %v745, %v746
    %v748 = vtanh.pop %v747
    %v749 = vmul.f32 %v744, %v748
    %750 = vmatprep.subr.mxu0 0.0
    %751 = vmatpush1.msra.mxu0 %v414
    %752 = vmatprep.subr.mxu0 0.0
    %753 = vmatpush1.msra.mxu0 %v415
    %754 = vmatprep.subr.mxu0 0.0
    %755 = vmatpush1.msra.mxu0 %v416
    %756 = vmatprep.subr.mxu0 0.0
    %757 = vmatpush1.msra.mxu0 %v417
    %758 = vmatprep.subr.mxu0 0.0
    %759 = vmatpush1.msra.mxu0 %v418
    %760 = vmatprep.subr.mxu0 0.0
    %761 = vmatpush1.msra.mxu0 %v419
    %762 = vmatprep.subr.mxu0 0.0
    %763 = vmatpush1.msra.mxu0 %v420
    %764 = vmatprep.subr.mxu0 0.0
    %765 = vmatpush1.msra.mxu0 %v421
    %766 = vmatprep.subr.mxu0 0.0
    %767 = vmatpush1.msra.mxu0 %v422
    %768 = vmatprep.subr.mxu0 0.0
    %769 = vmatpush1.msra.mxu0 %v423
    %770 = vmatprep.subr.mxu0 0.0
    %771 = vmatpush1.msra.mxu0 %v424
    %772 = vmatprep.subr.mxu0 0.0
    %773 = vmatpush1.msra.mxu0 %v425
    %774 = vmatprep.subr.mxu0 0.0
    %775 = vmatpush1.msra.mxu0 %v426
    %776 = vmatprep.subr.mxu0 0.0
    %777 = vmatpush1.msra.mxu0 %v427
    %778 = vmatprep.subr.mxu0 0.0
    %779 = vmatpush1.msra.mxu0 %v428
    %780 = vmatprep.subr.mxu0 0.0
    %781 = vmatpush1.msra.mxu0 %v429
    %782 = vmatprep.subr.mxu0 0.0
    %783 = vmatpush1.msra.mxu0 0.0
    %784 = vmatprep.subr.mxu0 0.0
    %785 = vmatpush1.msra.mxu0 0.0
    %786 = vmatprep.subr.mxu0 0.0
    %787 = vmatpush1.msra.mxu0 0.0
    %788 = vmatprep.subr.mxu0 0.0
    %789 = vmatpush1.msra.mxu0 0.0
    %790 = vmatprep.subr.mxu0 0.0
    %791 = vmatpush1.msra.mxu0 0.0
    %792 = vmatprep.subr.mxu0 0.0
    %793 = vmatpush1.msra.mxu0 0.0
    %794 = vmatprep.subr.mxu0 0.0
    %795 = vmatpush1.msra.mxu0 0.0
    %796 = vmatprep.subr.mxu0 0.0
    %797 = vmatpush1.msra.mxu0 0.0
    %798 = vmatprep.subr.mxu0 0.0
    %799 = vmatpush1.msra.mxu0 0.0
    %800 = vmatprep.subr.mxu0 0.0
    %801 = vmatpush1.msra.mxu0 0.0
    %802 = vmatprep.subr.mxu0 0.0
    %803 = vmatpush1.msra.mxu0 0.0
    %804 = vmatprep.subr.mxu0 0.0
    %805 = vmatpush1.msra.mxu0 0.0
    %806 = vmatprep.subr.mxu0 0.0
    %807 = vmatpush1.msra.mxu0 0.0
    %808 = vmatprep.subr.mxu0 0.0
    %809 = vmatpush1.msra.mxu0 0.0
    %810 = vmatprep.subr.mxu0 0.0
    %811 = vmatpush1.msra.mxu0 0.0
    %812 = vmatprep.subr.mxu0 0.0
    %813 = vmatpush1.msra.mxu0 0.0
    %814 = vmatprep.mubr.f32.mxu0 0.0
    %815 = vmatmul.mubr.f32.gmra.mrb[0].mxu0 %v749
    %v816 = vpop.f32.mrb[0].mxu0
    %v817 = vadd.f32 %v316, %v816
    %v818 = vpop.f32.mrb[0].mxu0
    %819 = vdwg.mxu0
    %820 = vmax.xlane.f32.xlu0 %v817
    %v821 = vpop.xlane.xlu0 %820
    %v822 = vsub.f32 %v817, %v821
    %v823 = vmul.f32 %v822, 1.442695
    %v824 = vpow.pop %v823
    %825 = vadd.xlane.f32.xlu0 %v824
    %v826 = vpop.xlane.xlu0 %825
    %v827 = vlog2.pop %v826
    %v828 = vmul.f32 %v827, 0.6931472
    %v829 = vsub.f32 %v822, %v828
    %vm830 = vcmp.eq.f32.partialorder %v817, %v821
    %v831 = vsel %vm830, %v431, 128
    %v832 = vand.u32 %v831, 65535
    %v833 = vshra.s32 %v831, 16
    %v834 = vcvt.s32.f32 %v832
    %v835 = vcvt.s32.f32 %v833
    %836 = vmin.xlane.f32.xlu0 %v835
    %v837 = vpop.xlane.xlu0 %836
    %vm838 = vcmp.eq.f32.partialorder %v835, %v837
    %v839 = vsel %vm838, %v834, inf
    %840 = vmin.xlane.f32.xlu0 %v839
    %v841 = vpop.xlane.xlu0 %840
    %v842 = vcvt.f32.s32 %v841
    %v843 = vcvt.f32.s32 %v837
    %v844 = vshll.u32 %v843, 16
    %v845 = vadd.s32 %v844, %v842
    %vm846 = vcmp.eq.s32.totalorder %v431, %v845
    %v847 = vsel %vm846, 1, 0
    %v848 = vcvt.s32.f32 %v847
    %849 = vmatprep.subr.mxu0 0.0
    %850 = vmatpush1.msra.mxu0 %v318
    %851 = vmatprep.subr.mxu0 0.0
    %852 = vmatpush1.msra.mxu0 %v319
    %853 = vmatprep.subr.mxu0 0.0
    %854 = vmatpush1.msra.mxu0 %v320
    %855 = vmatprep.subr.mxu0 0.0
    %856 = vmatpush1.msra.mxu0 %v321
    %857 = vmatprep.subr.mxu0 0.0
    %858 = vmatpush1.msra.mxu0 %v322
    %859 = vmatprep.subr.mxu0 0.0
    %860 = vmatpush1.msra.mxu0 %v323
    %861 = vmatprep.subr.mxu0 0.0
    %862 = vmatpush1.msra.mxu0 %v324
    %863 = vmatprep.subr.mxu0 0.0
    %864 = vmatpush1.msra.mxu0 %v325
    %865 = vmatprep.subr.mxu0 0.0
    %866 = vmatpush1.msra.mxu0 %v326
    %867 = vmatprep.subr.mxu0 0.0
    %868 = vmatpush1.msra.mxu0 %v327
    %869 = vmatprep.subr.mxu0 0.0
    %870 = vmatpush1.msra.mxu0 %v328
    %871 = vmatprep.subr.mxu0 0.0
    %872 = vmatpush1.msra.mxu0 %v329
    %873 = vmatprep.subr.mxu0 0.0
    %874 = vmatpush1.msra.mxu0 %v330
    %875 = vmatprep.subr.mxu0 0.0
    %876 = vmatpush1.msra.mxu0 %v331
    %877 = vmatprep.subr.mxu0 0.0
    %878 = vmatpush1.msra.mxu0 %v332
    %879 = vmatprep.subr.mxu0 0.0
    %880 = vmatpush1.msra.mxu0 %v333
    %881 = vmatprep.subr.mxu0 0.0
    %882 = vmatpush1.msra.mxu0 0.0
    %883 = vmatprep.subr.mxu0 0.0
    %884 = vmatpush1.msra.mxu0 0.0
    %885 = vmatprep.subr.mxu0 0.0
    %886 = vmatpush1.msra.mxu0 0.0
    %887 = vmatprep.subr.mxu0 0.0
    %888 = vmatpush1.msra.mxu0 0.0
    %889 = vmatprep.subr.mxu0 0.0
    %890 = vmatpush1.msra.mxu0 0.0
    %891 = vmatprep.subr.mxu0 0.0
    %892 = vmatpush1.msra.mxu0 0.0
    %893 = vmatprep.subr.mxu0 0.0
    %894 = vmatpush1.msra.mxu0 0.0
    %895 = vmatprep.subr.mxu0 0.0
    %896 = vmatpush1.msra.mxu0 0.0
    %897 = vmatprep.subr.mxu0 0.0
    %898 = vmatpush1.msra.mxu0 0.0
    %899 = vmatprep.subr.mxu0 0.0
    %900 = vmatpush1.msra.mxu0 0.0
    %901 = vmatprep.subr.mxu0 0.0
    %902 = vmatpush1.msra.mxu0 0.0
    %903 = vmatprep.subr.mxu0 0.0
    %904 = vmatpush1.msra.mxu0 0.0
    %905 = vmatprep.subr.mxu0 0.0
    %906 = vmatpush1.msra.mxu0 0.0
    %907 = vmatprep.subr.mxu0 0.0
    %908 = vmatpush1.msra.mxu0 0.0
    %909 = vmatprep.subr.mxu0 0.0
    %910 = vmatpush1.msra.mxu0 0.0
    %911 = vmatprep.subr.mxu0 0.0
    %912 = vmatpush1.msra.mxu0 0.0
    %913 = vmatprep.mubr.f32.mxu0 0.0
    %914 = vmatmul.mubr.f32.gmra.mrb[0].mxu0 %v848
    %v915 = vpop.f32.mrb[0].mxu0
    %v916 = vadd.f32 0.0, %v915
    %v917 = vpop.f32.mrb[0].mxu0
    %918 = vdwg.mxu0
    %919 = vst [vmem:[#allocation8] sm:$0xff] %v829
    %vm920 = vcmask 7168
    %921 = vst.msk [vmem:[%s11] sm:$0xff] %vm920, %v845
    %922 = vst [vmem:[#allocation9] sm:$0xff] %v749
    %923 = vst [vmem:[#allocation11] sm:$0xff] %v747
    %924 = vmatprep.subr.mxu0 %v351
    %925 = vmatpush1.msra.mxu0 %v350
    %926 = vmatprep.subr.mxu0 %v355
    %927 = vmatpush1.msra.mxu0 %v354
    %928 = vmatprep.subr.mxu0 %v359
    %929 = vmatpush1.msra.mxu0 %v358
    %930 = vmatprep.subr.mxu0 %v363
    %931 = vmatpush1.msra.mxu0 %v362
    %932 = vmatprep.subr.mxu0 %v367
    %933 = vmatpush1.msra.mxu0 %v366
    %934 = vmatprep.subr.mxu0 %v371
    %935 = vmatpush1.msra.mxu0 %v370
    %936 = vmatprep.subr.mxu0 %v375
    %937 = vmatpush1.msra.mxu0 %v374
    %938 = vmatprep.subr.mxu0 %v379
    %939 = vmatpush1.msra.mxu0 %v378
    %940 = vmatprep.subr.mxu0 %v383
    %941 = vmatpush1.msra.mxu0 %v382
    %942 = vmatprep.subr.mxu0 %v387
    %943 = vmatpush1.msra.mxu0 %v386
    %944 = vmatprep.subr.mxu0 %v391
    %945 = vmatpush1.msra.mxu0 %v390
    %946 = vmatprep.subr.mxu0 %v395
    %947 = vmatpush1.msra.mxu0 %v394
    %948 = vmatprep.subr.mxu0 %v399
    %949 = vmatpush1.msra.mxu0 %v398
    %950 = vmatprep.subr.mxu0 %v403
    %951 = vmatpush1.msra.mxu0 %v402
    %952 = vmatprep.subr.mxu0 %v407
    %953 = vmatpush1.msra.mxu0 %v406
    %954 = vmatprep.subr.mxu0 %v411
    %955 = vmatpush1.msra.mxu0 %v410
    %956 = vmatprep.subr.mxu0 0.0
    %957 = vmatpush1.msra.mxu0 0.0
    %958 = vmatprep.subr.mxu0 0.0
    %959 = vmatpush1.msra.mxu0 0.0
    %960 = vmatprep.subr.mxu0 0.0
    %961 = vmatpush1.msra.mxu0 0.0
    %962 = vmatprep.subr.mxu0 0.0
    %963 = vmatpush1.msra.mxu0 0.0
    %964 = vmatprep.subr.mxu0 0.0
    %965 = vmatpush1.msra.mxu0 0.0
    %966 = vmatprep.subr.mxu0 0.0
    %967 = vmatpush1.msra.mxu0 0.0
    %968 = vmatprep.subr.mxu0 0.0
    %969 = vmatpush1.msra.mxu0 0.0
    %970 = vmatprep.subr.mxu0 0.0
    %971 = vmatpush1.msra.mxu0 0.0
    %972 = vmatprep.subr.mxu0 0.0
    %973 = vmatpush1.msra.mxu0 0.0
    %974 = vmatprep.subr.mxu0 0.0
    %975 = vmatpush1.msra.mxu0 0.0
    %976 = vmatprep.subr.mxu0 0.0
    %977 = vmatpush1.msra.mxu0 0.0
    %978 = vmatprep.subr.mxu0 0.0
    %979 = vmatpush1.msra.mxu0 0.0
    %980 = vmatprep.subr.mxu0 0.0
    %981 = vmatpush1.msra.mxu0 0.0
    %982 = vmatprep.subr.mxu0 0.0
    %983 = vmatpush1.msra.mxu0 0.0
    %984 = vmatprep.subr.mxu0 0.0
    %985 = vmatpush1.msra.mxu0 0.0
    %986 = vmatprep.subr.mxu0 0.0
    %987 = vmatpush1.msra.mxu0 0.0
    %988 = vmatprep.mubr.f32.mxu0 0.0
    %989 = vmatmul.mubr.f32.gmra.mrb[0].mxu0 %v749
    %v990 = vpop.f32.mrb[0].mxu0
    %v991 = vadd.f32 0.0, %v990
    %v992 = vpop.f32.mrb[0].mxu0
    %v993 = vadd.f32 0.0, %v992
    %994 = vdwg.mxu0
    %995 = vmatprep.subr.mxu0 %v353
    %996 = vmatpush1.msra.mxu0 %v352
    %997 = vmatprep.subr.mxu0 %v357
    %998 = vmatpush1.msra.mxu0 %v356
    %999 = vmatprep.subr.mxu0 %v361
    %1000 = vmatpush1.msra.mxu0 %v360
    %1001 = vmatprep.subr.mxu0 %v365
    %1002 = vmatpush1.msra.mxu0 %v364
    %1003 = vmatprep.subr.mxu0 %v369
    %1004 = vmatpush1.msra.mxu0 %v368
    %1005 = vmatprep.subr.mxu0 %v373
    %1006 = vmatpush1.msra.mxu0 %v372
    %1007 = vmatprep.subr.mxu0 %v377
    %1008 = vmatpush1.msra.mxu0 %v376
    %1009 = vmatprep.subr.mxu0 %v381
    %1010 = vmatpush1.msra.mxu0 %v380
    %1011 = vmatprep.subr.mxu0 %v385
    %1012 = vmatpush1.msra.mxu0 %v384
    %1013 = vmatprep.subr.mxu0 %v389
    %1014 = vmatpush1.msra.mxu0 %v388
    %1015 = vmatprep.subr.mxu0 %v393
    %1016 = vmatpush1.msra.mxu0 %v392
    %1017 = vmatprep.subr.mxu0 %v397
    %1018 = vmatpush1.msra.mxu0 %v396
    %1019 = vmatprep.subr.mxu0 %v401
    %1020 = vmatpush1.msra.mxu0 %v400
    %1021 = vmatprep.subr.mxu0 %v405
    %1022 = vmatpush1.msra.mxu0 %v404
    %1023 = vmatprep.subr.mxu0 %v409
    %1024 = vmatpush1.msra.mxu0 %v408
    %1025 = vmatprep.subr.mxu0 %v413
    %1026 = vmatpush1.msra.mxu0 %v412
    %1027 = vmatprep.subr.mxu0 0.0
    %1028 = vmatpush1.msra.mxu0 0.0
    %1029 = vmatprep.subr.mxu0 0.0
    %1030 = vmatpush1.msra.mxu0 0.0
    %1031 = vmatprep.subr.mxu0 0.0
    %1032 = vmatpush1.msra.mxu0 0.0
    %1033 = vmatprep.subr.mxu0 0.0
    %1034 = vmatpush1.msra.mxu0 0.0
    %1035 = vmatprep.subr.mxu0 0.0
    %1036 = vmatpush1.msra.mxu0 0.0
    %1037 = vmatprep.subr.mxu0 0.0
    %1038 = vmatpush1.msra.mxu0 0.0
    %1039 = vmatprep.subr.mxu0 0.0
    %1040 = vmatpush1.msra.mxu0 0.0
    %1041 = vmatprep.subr.mxu0 0.0
    %1042 = vmatpush1.msra.mxu0 0.0
    %1043 = vmatprep.subr.mxu0 0.0
    %1044 = vmatpush1.msra.mxu0 0.0
    %1045 = vmatprep.subr.mxu0 0.0
    %1046 = vmatpush1.msra.mxu0 0.0
    %1047 = vmatprep.subr.mxu0 0.0
    %1048 = vmatpush1.msra.mxu0 0.0
    %1049 = vmatprep.subr.mxu0 0.0
    %1050 = vmatpush1.msra.mxu0 0.0
    %1051 = vmatprep.subr.mxu0 0.0
    %1052 = vmatpush1.msra.mxu0 0.0
    %1053 = vmatprep.subr.mxu0 0.0
    %1054 = vmatpush1.msra.mxu0 0.0
    %1055 = vmatprep.subr.mxu0 0.0
    %1056 = vmatpush1.msra.mxu0 0.0
    %1057 = vmatprep.subr.mxu0 0.0
    %1058 = vmatpush1.msra.mxu0 0.0
    %1059 = vmatprep.mubr.f32.mxu0 0.0
    %1060 = vmatmul.mubr.f32.gmra.mrb[0].mxu0 %v749
    %v1061 = vpop.f32.mrb[0].mxu0
    %v1062 = vadd.f32 0.0, %v1061
    %v1063 = vpop.f32.mrb[0].mxu0
    %v1064 = vadd.f32 0.0, %v1063
    %1065 = vdwg.mxu0
    %v1067 = vsel %vm576, %v916, 0
    %1069 = vmatprep.subr.mxu0 %v335
    %1070 = vmatpush1.msra.mxu0 %v334
    %1071 = vmatprep.subr.mxu0 %v339
    %1072 = vmatpush1.msra.mxu0 %v338
    %1073 = vmatprep.subr.mxu0 %v343
    %1074 = vmatpush1.msra.mxu0 %v342
    %1075 = vmatprep.subr.mxu0 %v347
    %1076 = vmatpush1.msra.mxu0 %v346
    %1077 = vmatprep.subr.mxu0 0.0
    %1078 = vmatpush1.msra.mxu0 0.0
    %1079 = vmatprep.subr.mxu0 0.0
    %1080 = vmatpush1.msra.mxu0 0.0
    %1081 = vmatprep.subr.mxu0 0.0
    %1082 = vmatpush1.msra.mxu0 0.0
    %1083 = vmatprep.subr.mxu0 0.0
    %1084 = vmatpush1.msra.mxu0 0.0
    %1085 = vmatprep.subr.mxu0 0.0
    %1086 = vmatpush1.msra.mxu0 0.0
    %1087 = vmatprep.subr.mxu0 0.0
    %1088 = vmatpush1.msra.mxu0 0.0
    %1089 = vmatprep.subr.mxu0 0.0
    %1090 = vmatpush1.msra.mxu0 0.0
    %1091 = vmatprep.subr.mxu0 0.0
    %1092 = vmatpush1.msra.mxu0 0.0
    %1093 = vmatprep.subr.mxu0 0.0
    %1094 = vmatpush1.msra.mxu0 0.0
    %1095 = vmatprep.subr.mxu0 0.0
    %1096 = vmatpush1.msra.mxu0 0.0
    %1097 = vmatprep.subr.mxu0 0.0
    %1098 = vmatpush1.msra.mxu0 0.0
    %1099 = vmatprep.subr.mxu0 0.0
    %1100 = vmatpush1.msra.mxu0 0.0
    %1101 = vmatprep.subr.mxu0 0.0
    %1102 = vmatpush1.msra.mxu0 0.0
    %1103 = vmatprep.subr.mxu0 0.0
    %1104 = vmatpush1.msra.mxu0 0.0
    %1105 = vmatprep.subr.mxu0 0.0
    %1106 = vmatpush1.msra.mxu0 0.0
    %1107 = vmatprep.subr.mxu0 0.0
    %1108 = vmatpush1.msra.mxu0 0.0
    %1109 = vmatprep.subr.mxu0 0.0
    %1110 = vmatpush1.msra.mxu0 0.0
    %1111 = vmatprep.subr.mxu0 0.0
    %1112 = vmatpush1.msra.mxu0 0.0
    %1113 = vmatprep.subr.mxu0 0.0
    %1114 = vmatpush1.msra.mxu0 0.0
    %1115 = vmatprep.subr.mxu0 0.0
    %1116 = vmatpush1.msra.mxu0 0.0
    %1117 = vmatprep.subr.mxu0 0.0
    %1118 = vmatpush1.msra.mxu0 0.0
    %1119 = vmatprep.subr.mxu0 0.0
    %1120 = vmatpush1.msra.mxu0 0.0
    %1121 = vmatprep.subr.mxu0 0.0
    %1122 = vmatpush1.msra.mxu0 0.0
    %1123 = vmatprep.subr.mxu0 0.0
    %1124 = vmatpush1.msra.mxu0 0.0
    %1125 = vmatprep.subr.mxu0 0.0
    %1126 = vmatpush1.msra.mxu0 0.0
    %1127 = vmatprep.subr.mxu0 0.0
    %1128 = vmatpush1.msra.mxu0 0.0
    %1129 = vmatprep.subr.mxu0 0.0
    %1130 = vmatpush1.msra.mxu0 0.0
    %1131 = vmatprep.subr.mxu0 0.0
    %1132 = vmatpush1.msra.mxu0 0.0
    %1133 = vmatprep.mubr.f32.mxu0 0.0
    %1134 = vmatmul.mubr.f32.gmra.mrb[0].mxu0 %v1067
    %v1135 = vpop.f32.mrb[0].mxu0
    %v1136 = vadd.f32 %v991, %v1135
    %v1137 = vpop.f32.mrb[0].mxu0
    %v1138 = vadd.f32 %v993, %v1137
    %1139 = vdwg.mxu0
    %1140 = vmatprep.subr.mxu0 %v337
    %1141 = vmatpush1.msra.mxu0 %v336
    %1142 = vmatprep.subr.mxu0 %v341
    %1143 = vmatpush1.msra.mxu0 %v340
    %1144 = vmatprep.subr.mxu0 %v345
    %1145 = vmatpush1.msra.mxu0 %v344
    %1146 = vmatprep.subr.mxu0 %v349
    %1147 = vmatpush1.msra.mxu0 %v348
    %1148 = vmatprep.subr.mxu0 0.0
    %1149 = vmatpush1.msra.mxu0 0.0
    %1150 = vmatprep.subr.mxu0 0.0
    %1151 = vmatpush1.msra.mxu0 0.0
    %1152 = vmatprep.subr.mxu0 0.0
    %1153 = vmatpush1.msra.mxu0 0.0
    %1154 = vmatprep.subr.mxu0 0.0
    %1155 = vmatpush1.msra.mxu0 0.0
    %1156 = vmatprep.subr.mxu0 0.0
    %1157 = vmatpush1.msra.mxu0 0.0
    %1158 = vmatprep.subr.mxu0 0.0
    %1159 = vmatpush1.msra.mxu0 0.0
    %1160 = vmatprep.subr.mxu0 0.0
    %1161 = vmatpush1.msra.mxu0 0.0
    %1162 = vmatprep.subr.mxu0 0.0
    %1163 = vmatpush1.msra.mxu0 0.0
    %1164 = vmatprep.subr.mxu0 0.0
    %1165 = vmatpush1.msra.mxu0 0.0
    %1166 = vmatprep.subr.mxu0 0.0
    %1167 = vmatpush1.msra.mxu0 0.0
    %1168 = vmatprep.subr.mxu0 0.0
    %1169 = vmatpush1.msra.mxu0 0.0
    %1170 = vmatprep.subr.mxu0 0.0
    %1171 = vmatpush1.msra.mxu0 0.0
    %1172 = vmatprep.subr.mxu0 0.0
    %1173 = vmatpush1.msra.mxu0 0.0
    %1174 = vmatprep.subr.mxu0 0.0
    %1175 = vmatpush1.msra.mxu0 0.0
    %1176 = vmatprep.subr.mxu0 0.0
    %1177 = vmatpush1.msra.mxu0 0.0
    %1178 = vmatprep.subr.mxu0 0.0
    %1179 = vmatpush1.msra.mxu0 0.0
    %1180 = vmatprep.subr.mxu0 0.0
    %1181 = vmatpush1.msra.mxu0 0.0
    %1182 = vmatprep.subr.mxu0 0.0
    %1183 = vmatpush1.msra.mxu0 0.0
    %1184 = vmatprep.subr.mxu0 0.0
    %1185 = vmatpush1.msra.mxu0 0.0
    %1186 = vmatprep.subr.mxu0 0.0
    %1187 = vmatpush1.msra.mxu0 0.0
    %1188 = vmatprep.subr.mxu0 0.0
    %1189 = vmatpush1.msra.mxu0 0.0
    %1190 = vmatprep.subr.mxu0 0.0
    %1191 = vmatpush1.msra.mxu0 0.0
    %1192 = vmatprep.subr.mxu0 0.0
    %1193 = vmatpush1.msra.mxu0 0.0
    %1194 = vmatprep.subr.mxu0 0.0
    %1195 = vmatpush1.msra.mxu0 0.0
    %1196 = vmatprep.subr.mxu0 0.0
    %1197 = vmatpush1.msra.mxu0 0.0
    %1198 = vmatprep.subr.mxu0 0.0
    %1199 = vmatpush1.msra.mxu0 0.0
    %1200 = vmatprep.subr.mxu0 0.0
    %1201 = vmatpush1.msra.mxu0 0.0
    %1202 = vmatprep.subr.mxu0 0.0
    %1203 = vmatpush1.msra.mxu0 0.0
    %1204 = vmatprep.mubr.f32.mxu0 0.0
    %1205 = vmatmul.mubr.f32.gmra.mrb[0].mxu0 %v1067
    %v1206 = vpop.f32.mrb[0].mxu0
    %v1207 = vadd.f32 %v1062, %v1206
    %v1208 = vpop.f32.mrb[0].mxu0
    %v1209 = vadd.f32 %v1064, %v1208
    %1210 = vdwg.mxu0
    %v1211 = vadd.f32 %v1136, %v236
    %v1212 = vadd.f32 %v1138, %v238
    %v1213 = vadd.f32 %v1207, %v307
    %v1214 = vadd.f32 %v1209, %v309
    %v1215 = vxor.u32 %v1211, 2147483648
    %v1216 = vmul.f32 %v1215, 1.442695
    %v1217 = vpow.pop %v1216
    %v1218 = vadd.f32 %v1217, 1.0
    %v1219 = vrcp.pop %v1218
    %v1220 = vmul.f32 1.0, %v1219
    %v1221 = vxor.u32 %v1212, 2147483648
    %v1222 = vmul.f32 %v1221, 1.442695
    %v1223 = vpow.pop %v1222
    %v1224 = vadd.f32 %v1223, 1.0
    %v1225 = vrcp.pop %v1224
    %v1226 = vmul.f32 1.0, %v1225
    %v1227 = vtanh.pop %v1213
    %v1228 = vxor.u32 %v1214, 2147483648
    %v1229 = vmul.f32 %v1228, 1.442695
    %v1230 = vpow.pop %v1229
    %v1231 = vadd.f32 %v1230, 1.0
    %v1232 = vrcp.pop %v1231
    %v1233 = vmul.f32 1.0, %v1232
    %v1234 = vmul.f32 %v1226, %v747
    %v1235 = vmul.f32 %v1220, %v1227
    %v1236 = vadd.f32 %v1234, %v1235
    %v1237 = vtanh.pop %v1236
    %v1238 = vmul.f32 %v1233, %v1237
    %1239 = vmatprep.subr.mxu0 0.0
    %1240 = vmatpush1.msra.mxu0 %v414
    %1241 = vmatprep.subr.mxu0 0.0
    %1242 = vmatpush1.msra.mxu0 %v415
    %1243 = vmatprep.subr.mxu0 0.0
    %1244 = vmatpush1.msra.mxu0 %v416
    %1245 = vmatprep.subr.mxu0 0.0
    %1246 = vmatpush1.msra.mxu0 %v417
    %1247 = vmatprep.subr.mxu0 0.0
    %1248 = vmatpush1.msra.mxu0 %v418
    %1249 = vmatprep.subr.mxu0 0.0
    %1250 = vmatpush1.msra.mxu0 %v419
    %1251 = vmatprep.subr.mxu0 0.0
    %1252 = vmatpush1.msra.mxu0 %v420
    %1253 = vmatprep.subr.mxu0 0.0
    %1254 = vmatpush1.msra.mxu0 %v421
    %1255 = vmatprep.subr.mxu0 0.0
    %1256 = vmatpush1.msra.mxu0 %v422
    %1257 = vmatprep.subr.mxu0 0.0
    %1258 = vmatpush1.msra.mxu0 %v423
    %1259 = vmatprep.subr.mxu0 0.0
    %1260 = vmatpush1.msra.mxu0 %v424
    %1261 = vmatprep.subr.mxu0 0.0
    %1262 = vmatpush1.msra.mxu0 %v425
    %1263 = vmatprep.subr.mxu0 0.0
    %1264 = vmatpush1.msra.mxu0 %v426
    %1265 = vmatprep.subr.mxu0 0.0
    %1266 = vmatpush1.msra.mxu0 %v427
    %1267 = vmatprep.subr.mxu0 0.0
    %1268 = vmatpush1.msra.mxu0 %v428
    %1269 = vmatprep.subr.mxu0 0.0
    %1270 = vmatpush1.msra.mxu0 %v429
    %1271 = vmatprep.subr.mxu0 0.0
    %1272 = vmatpush1.msra.mxu0 0.0
    %1273 = vmatprep.subr.mxu0 0.0
    %1274 = vmatpush1.msra.mxu0 0.0
    %1275 = vmatprep.subr.mxu0 0.0
    %1276 = vmatpush1.msra.mxu0 0.0
    %1277 = vmatprep.subr.mxu0 0.0
    %1278 = vmatpush1.msra.mxu0 0.0
    %1279 = vmatprep.subr.mxu0 0.0
    %1280 = vmatpush1.msra.mxu0 0.0
    %1281 = vmatprep.subr.mxu0 0.0
    %1282 = vmatpush1.msra.mxu0 0.0
    %1283 = vmatprep.subr.mxu0 0.0
    %1284 = vmatpush1.msra.mxu0 0.0
    %1285 = vmatprep.subr.mxu0 0.0
    %1286 = vmatpush1.msra.mxu0 0.0
    %1287 = vmatprep.subr.mxu0 0.0
    %1288 = vmatpush1.msra.mxu0 0.0
    %1289 = vmatprep.subr.mxu0 0.0
    %1290 = vmatpush1.msra.mxu0 0.0
    %1291 = vmatprep.subr.mxu0 0.0
    %1292 = vmatpush1.msra.mxu0 0.0
    %1293 = vmatprep.subr.mxu0 0.0
    %1294 = vmatpush1.msra.mxu0 0.0
    %1295 = vmatprep.subr.mxu0 0.0
    %1296 = vmatpush1.msra.mxu0 0.0
    %1297 = vmatprep.subr.mxu0 0.0
    %1298 = vmatpush1.msra.mxu0 0.0
    %1299 = vmatprep.subr.mxu0 0.0
    %1300 = vmatpush1.msra.mxu0 0.0
    %1301 = vmatprep.subr.mxu0 0.0
    %1302 = vmatpush1.msra.mxu0 0.0
    %1303 = vmatprep.mubr.f32.mxu0 0.0
    %1304 = vmatmul.mubr.f32.gmra.mrb[0].mxu0 %v1238
    %v1305 = vpop.f32.mrb[0].mxu0
    %v1306 = vadd.f32 %v316, %v1305
    %v1307 = vpop.f32.mrb[0].mxu0
    %1308 = vdwg.mxu0
    %1309 = vmax.xlane.f32.xlu0 %v1306
    %v1310 = vpop.xlane.xlu0 %1309
    %v1311 = vsub.f32 %v1306, %v1310
    %v1312 = vmul.f32 %v1311, 1.442695
    %v1313 = vpow.pop %v1312
    %1314 = vadd.xlane.f32.xlu0 %v1313
    %v1315 = vpop.xlane.xlu0 %1314
    %v1316 = vlog2.pop %v1315
    %v1317 = vmul.f32 %v1316, 0.6931472
    %v1318 = vsub.f32 %v1311, %v1317
    %vm1319 = vcmp.eq.f32.partialorder %v1306, %v1310
    %v1320 = vsel %vm1319, %v431, 128
    %v1321 = vand.u32 %v1320, 65535
    %v1322 = vshra.s32 %v1320, 16
    %v1323 = vcvt.s32.f32 %v1321
    %v1324 = vcvt.s32.f32 %v1322
    %1325 = vmin.xlane.f32.xlu0 %v1324
    %v1326 = vpop.xlane.xlu0 %1325
    %vm1327 = vcmp.eq.f32.partialorder %v1324, %v1326
    %v1328 = vsel %vm1327, %v1323, inf
    %1329 = vmin.xlane.f32.xlu0 %v1328
    %v1330 = vpop.xlane.xlu0 %1329
    %v1331 = vcvt.f32.s32 %v1330
    %v1332 = vcvt.f32.s32 %v1326
    %v1333 = vshll.u32 %v1332, 16
    %v1334 = vadd.s32 %v1333, %v1331
    %vm1335 = vcmp.eq.s32.totalorder %v431, %v1334
    %v1336 = vsel %vm1335, 1, 0
    %v1337 = vcvt.s32.f32 %v1336
    %1338 = vmatprep.subr.mxu0 0.0
    %1339 = vmatpush1.msra.mxu0 %v318
    %1340 = vmatprep.subr.mxu0 0.0
    %1341 = vmatpush1.msra.mxu0 %v319
    %1342 = vmatprep.subr.mxu0 0.0
    %1343 = vmatpush1.msra.mxu0 %v320
    %1344 = vmatprep.subr.mxu0 0.0
    %1345 = vmatpush1.msra.mxu0 %v321
    %1346 = vmatprep.subr.mxu0 0.0
    %1347 = vmatpush1.msra.mxu0 %v322
    %1348 = vmatprep.subr.mxu0 0.0
    %1349 = vmatpush1.msra.mxu0 %v323
    %1350 = vmatprep.subr.mxu0 0.0
    %1351 = vmatpush1.msra.mxu0 %v324
    %1352 = vmatprep.subr.mxu0 0.0
    %1353 = vmatpush1.msra.mxu0 %v325
    %1354 = vmatprep.subr.mxu0 0.0
    %1355 = vmatpush1.msra.mxu0 %v326
    %1356 = vmatprep.subr.mxu0 0.0
    %1357 = vmatpush1.msra.mxu0 %v327
    %1358 = vmatprep.subr.mxu0 0.0
    %1359 = vmatpush1.msra.mxu0 %v328
    %1360 = vmatprep.subr.mxu0 0.0
    %1361 = vmatpush1.msra.mxu0 %v329
    %1362 = vmatprep.subr.mxu0 0.0
    %1363 = vmatpush1.msra.mxu0 %v330
    %1364 = vmatprep.subr.mxu0 0.0
    %1365 = vmatpush1.msra.mxu0 %v331
    %1366 = vmatprep.subr.mxu0 0.0
    %1367 = vmatpush1.msra.mxu0 %v332
    %1368 = vmatprep.subr.mxu0 0.0
    %1369 = vmatpush1.msra.mxu0 %v333
    %1370 = vmatprep.subr.mxu0 0.0
    %1371 = vmatpush1.msra.mxu0 0.0
    %1372 = vmatprep.subr.mxu0 0.0
    %1373 = vmatpush1.msra.mxu0 0.0
    %1374 = vmatprep.subr.mxu0 0.0
    %1375 = vmatpush1.msra.mxu0 0.0
    %1376 = vmatprep.subr.mxu0 0.0
    %1377 = vmatpush1.msra.mxu0 0.0
    %1378 = vmatprep.subr.mxu0 0.0
    %1379 = vmatpush1.msra.mxu0 0.0
    %1380 = vmatprep.subr.mxu0 0.0
    %1381 = vmatpush1.msra.mxu0 0.0
    %1382 = vmatprep.subr.mxu0 0.0
    %1383 = vmatpush1.msra.mxu0 0.0
    %1384 = vmatprep.subr.mxu0 0.0
    %1385 = vmatpush1.msra.mxu0 0.0
    %1386 = vmatprep.subr.mxu0 0.0
    %1387 = vmatpush1.msra.mxu0 0.0
    %1388 = vmatprep.subr.mxu0 0.0
    %1389 = vmatpush1.msra.mxu0 0.0
    %1390 = vmatprep.subr.mxu0 0.0
    %1391 = vmatpush1.msra.mxu0 0.0
    %1392 = vmatprep.subr.mxu0 0.0
    %1393 = vmatpush1.msra.mxu0 0.0
    %1394 = vmatprep.subr.mxu0 0.0
    %1395 = vmatpush1.msra.mxu0 0.0
    %1396 = vmatprep.subr.mxu0 0.0
    %1397 = vmatpush1.msra.mxu0 0.0
    %1398 = vmatprep.subr.mxu0 0.0
    %1399 = vmatpush1.msra.mxu0 0.0
    %1400 = vmatprep.subr.mxu0 0.0
    %1401 = vmatpush1.msra.mxu0 0.0
    %1402 = vmatprep.mubr.f32.mxu0 0.0
    %1403 = vmatmul.mubr.f32.gmra.mrb[0].mxu0 %v1337
    %v1404 = vpop.f32.mrb[0].mxu0
    %v1405 = vadd.f32 0.0, %v1404
    %v1406 = vpop.f32.mrb[0].mxu0
    %1407 = vdwg.mxu0
    %s1408 = scalar_lea.vmem [#allocation8], 8
    %1409 = vst [vmem:[%s1408] sm:$0xff] %v1318
    %s1410 = scalar_lea.vmem %s11, 8
    %1411 = vst.msk [vmem:[%s1410] sm:$0xff] %vm920, %v1334
    %s1412 = scalar_lea.vmem [#allocation9], 8
    %1413 = vst [vmem:[%s1412] sm:$0xff] %v1238
    %s1414 = scalar_lea.vmem [#allocation11], 8
    %1415 = vst [vmem:[%s1414] sm:$0xff] %v1236
    %1416 = vmatprep.subr.mxu0 %v351
    %1417 = vmatpush1.msra.mxu0 %v350
    %1418 = vmatprep.subr.mxu0 %v355
    %1419 = vmatpush1.msra.mxu0 %v354
    %1420 = vmatprep.subr.mxu0 %v359
    %1421 = vmatpush1.msra.mxu0 %v358
    %1422 = vmatprep.subr.mxu0 %v363
    %1423 = vmatpush1.msra.mxu0 %v362
    %1424 = vmatprep.subr.mxu0 %v367
    %1425 = vmatpush1.msra.mxu0 %v366
    %1426 = vmatprep.subr.mxu0 %v371
    %1427 = vmatpush1.msra.mxu0 %v370
    %1428 = vmatprep.subr.mxu0 %v375
    %1429 = vmatpush1.msra.mxu0 %v374
    %1430 = vmatprep.subr.mxu0 %v379
    %1431 = vmatpush1.msra.mxu0 %v378
    %1432 = vmatprep.subr.mxu0 %v383
    %1433 = vmatpush1.msra.mxu0 %v382
    %1434 = vmatprep.subr.mxu0 %v387
    %1435 = vmatpush1.msra.mxu0 %v386
    %1436 = vmatprep.subr.mxu0 %v391
    %1437 = vmatpush1.msra.mxu0 %v390
    %1438 = vmatprep.subr.mxu0 %v395
    %1439 = vmatpush1.msra.mxu0 %v394
    %1440 = vmatprep.subr.mxu0 %v399
    %1441 = vmatpush1.msra.mxu0 %v398
    %1442 = vmatprep.subr.mxu0 %v403
    %1443 = vmatpush1.msra.mxu0 %v402
    %1444 = vmatprep.subr.mxu0 %v407
    %1445 = vmatpush1.msra.mxu0 %v406
    %1446 = vmatprep.subr.mxu0 %v411
    %1447 = vmatpush1.msra.mxu0 %v410
    %1448 = vmatprep.subr.mxu0 0.0
    %1449 = vmatpush1.msra.mxu0 0.0
    %1450 = vmatprep.subr.mxu0 0.0
    %1451 = vmatpush1.msra.mxu0 0.0
    %1452 = vmatprep.subr.mxu0 0.0
    %1453 = vmatpush1.msra.mxu0 0.0
    %1454 = vmatprep.subr.mxu0 0.0
    %1455 = vmatpush1.msra.mxu0 0.0
    %1456 = vmatprep.subr.mxu0 0.0
    %1457 = vmatpush1.msra.mxu0 0.0
    %1458 = vmatprep.subr.mxu0 0.0
    %1459 = vmatpush1.msra.mxu0 0.0
    %1460 = vmatprep.subr.mxu0 0.0
    %1461 = vmatpush1.msra.mxu0 0.0
    %1462 = vmatprep.subr.mxu0 0.0
    %1463 = vmatpush1.msra.mxu0 0.0
    %1464 = vmatprep.subr.mxu0 0.0
    %1465 = vmatpush1.msra.mxu0 0.0
    %1466 = vmatprep.subr.mxu0 0.0
    %1467 = vmatpush1.msra.mxu0 0.0
    %1468 = vmatprep.subr.mxu0 0.0
    %1469 = vmatpush1.msra.mxu0 0.0
    %1470 = vmatprep.subr.mxu0 0.0
    %1471 = vmatpush1.msra.mxu0 0.0
    %1472 = vmatprep.subr.mxu0 0.0
    %1473 = vmatpush1.msra.mxu0 0.0
    %1474 = vmatprep.subr.mxu0 0.0
    %1475 = vmatpush1.msra.mxu0 0.0
    %1476 = vmatprep.subr.mxu0 0.0
    %1477 = vmatpush1.msra.mxu0 0.0
    %1478 = vmatprep.subr.mxu0 0.0
    %1479 = vmatpush1.msra.mxu0 0.0
    %1480 = vmatprep.mubr.f32.mxu0 0.0
    %1481 = vmatmul.mubr.f32.gmra.mrb[0].mxu0 %v1238
    %v1482 = vpop.f32.mrb[0].mxu0
    %v1483 = vadd.f32 0.0, %v1482
    %v1484 = vpop.f32.mrb[0].mxu0
    %v1485 = vadd.f32 0.0, %v1484
    %1486 = vdwg.mxu0
    %1487 = vmatprep.subr.mxu0 %v353
    %1488 = vmatpush1.msra.mxu0 %v352
    %1489 = vmatprep.subr.mxu0 %v357
    %1490 = vmatpush1.msra.mxu0 %v356
    %1491 = vmatprep.subr.mxu0 %v361
    %1492 = vmatpush1.msra.mxu0 %v360
    %1493 = vmatprep.subr.mxu0 %v365
    %1494 = vmatpush1.msra.mxu0 %v364
    %1495 = vmatprep.subr.mxu0 %v369
    %1496 = vmatpush1.msra.mxu0 %v368
    %1497 = vmatprep.subr.mxu0 %v373
    %1498 = vmatpush1.msra.mxu0 %v372
    %1499 = vmatprep.subr.mxu0 %v377
    %1500 = vmatpush1.msra.mxu0 %v376
    %1501 = vmatprep.subr.mxu0 %v381
    %1502 = vmatpush1.msra.mxu0 %v380
    %1503 = vmatprep.subr.mxu0 %v385
    %1504 = vmatpush1.msra.mxu0 %v384
    %1505 = vmatprep.subr.mxu0 %v389
    %1506 = vmatpush1.msra.mxu0 %v388
    %1507 = vmatprep.subr.mxu0 %v393
    %1508 = vmatpush1.msra.mxu0 %v392
    %1509 = vmatprep.subr.mxu0 %v397
    %1510 = vmatpush1.msra.mxu0 %v396
    %1511 = vmatprep.subr.mxu0 %v401
    %1512 = vmatpush1.msra.mxu0 %v400
    %1513 = vmatprep.subr.mxu0 %v405
    %1514 = vmatpush1.msra.mxu0 %v404
    %1515 = vmatprep.subr.mxu0 %v409
    %1516 = vmatpush1.msra.mxu0 %v408
    %1517 = vmatprep.subr.mxu0 %v413
    %1518 = vmatpush1.msra.mxu0 %v412
    %1519 = vmatprep.subr.mxu0 0.0
    %1520 = vmatpush1.msra.mxu0 0.0
    %1521 = vmatprep.subr.mxu0 0.0
    %1522 = vmatpush1.msra.mxu0 0.0
    %1523 = vmatprep.subr.mxu0 0.0
    %1524 = vmatpush1.msra.mxu0 0.0
    %1525 = vmatprep.subr.mxu0 0.0
    %1526 = vmatpush1.msra.mxu0 0.0
    %1527 = vmatprep.subr.mxu0 0.0
    %1528 = vmatpush1.msra.mxu0 0.0
    %1529 = vmatprep.subr.mxu0 0.0
    %1530 = vmatpush1.msra.mxu0 0.0
    %1531 = vmatprep.subr.mxu0 0.0
    %1532 = vmatpush1.msra.mxu0 0.0
    %1533 = vmatprep.subr.mxu0 0.0
    %1534 = vmatpush1.msra.mxu0 0.0
    %1535 = vmatprep.subr.mxu0 0.0
    %1536 = vmatpush1.msra.mxu0 0.0
    %1537 = vmatprep.subr.mxu0 0.0
    %1538 = vmatpush1.msra.mxu0 0.0
    %1539 = vmatprep.subr.mxu0 0.0
    %1540 = vmatpush1.msra.mxu0 0.0
    %1541 = vmatprep.subr.mxu0 0.0
    %1542 = vmatpush1.msra.mxu0 0.0
    %1543 = vmatprep.subr.mxu0 0.0
    %1544 = vmatpush1.msra.mxu0 0.0
    %1545 = vmatprep.subr.mxu0 0.0
    %1546 = vmatpush1.msra.mxu0 0.0
    %1547 = vmatprep.subr.mxu0 0.0
    %1548 = vmatpush1.msra.mxu0 0.0
    %1549 = vmatprep.subr.mxu0 0.0
    %1550 = vmatpush1.msra.mxu0 0.0
    %1551 = vmatprep.mubr.f32.mxu0 0.0
    %1552 = vmatmul.mubr.f32.gmra.mrb[0].mxu0 %v1238
    %v1553 = vpop.f32.mrb[0].mxu0
    %v1554 = vadd.f32 0.0, %v1553
    %v1555 = vpop.f32.mrb[0].mxu0
    %v1556 = vadd.f32 0.0, %v1555
    %1557 = vdwg.mxu0
    %v1559 = vsel %vm576, %v1405, 0
    %1561 = vmatprep.subr.mxu0 %v335
    %1562 = vmatpush1.msra.mxu0 %v334
    %1563 = vmatprep.subr.mxu0 %v339
    %1564 = vmatpush1.msra.mxu0 %v338
    %1565 = vmatprep.subr.mxu0 %v343
    %1566 = vmatpush1.msra.mxu0 %v342
    %1567 = vmatprep.subr.mxu0 %v347
    %1568 = vmatpush1.msra.mxu0 %v346
    %1569 = vmatprep.subr.mxu0 0.0
    %1570 = vmatpush1.msra.mxu0 0.0
    %1571 = vmatprep.subr.mxu0 0.0
    %1572 = vmatpush1.msra.mxu0 0.0
    %1573 = vmatprep.subr.mxu0 0.0
    %1574 = vmatpush1.msra.mxu0 0.0
    %1575 = vmatprep.subr.mxu0 0.0
    %1576 = vmatpush1.msra.mxu0 0.0
    %1577 = vmatprep.subr.mxu0 0.0
    %1578 = vmatpush1.msra.mxu0 0.0
    %1579 = vmatprep.subr.mxu0 0.0
    %1580 = vmatpush1.msra.mxu0 0.0
    %1581 = vmatprep.subr.mxu0 0.0
    %1582 = vmatpush1.msra.mxu0 0.0
    %1583 = vmatprep.subr.mxu0 0.0
    %1584 = vmatpush1.msra.mxu0 0.0
    %1585 = vmatprep.subr.mxu0 0.0
    %1586 = vmatpush1.msra.mxu0 0.0
    %1587 = vmatprep.subr.mxu0 0.0
    %1588 = vmatpush1.msra.mxu0 0.0
    %1589 = vmatprep.subr.mxu0 0.0
    %1590 = vmatpush1.msra.mxu0 0.0
    %1591 = vmatprep.subr.mxu0 0.0
    %1592 = vmatpush1.msra.mxu0 0.0
    %1593 = vmatprep.subr.mxu0 0.0
    %1594 = vmatpush1.msra.mxu0 0.0
    %1595 = vmatprep.subr.mxu0 0.0
    %1596 = vmatpush1.msra.mxu0 0.0
    %1597 = vmatprep.subr.mxu0 0.0
    %1598 = vmatpush1.msra.mxu0 0.0
    %1599 = vmatprep.subr.mxu0 0.0
    %1600 = vmatpush1.msra.mxu0 0.0
    %1601 = vmatprep.subr.mxu0 0.0
    %1602 = vmatpush1.msra.mxu0 0.0
    %1603 = vmatprep.subr.mxu0 0.0
    %1604 = vmatpush1.msra.mxu0 0.0
    %1605 = vmatprep.subr.mxu0 0.0
    %1606 = vmatpush1.msra.mxu0 0.0
    %1607 = vmatprep.subr.mxu0 0.0
    %1608 = vmatpush1.msra.mxu0 0.0
    %1609 = vmatprep.subr.mxu0 0.0
    %1610 = vmatpush1.msra.mxu0 0.0
    %1611 = vmatprep.subr.mxu0 0.0
    %1612 = vmatpush1.msra.mxu0 0.0
    %1613 = vmatprep.subr.mxu0 0.0
    %1614 = vmatpush1.msra.mxu0 0.0
    %1615 = vmatprep.subr.mxu0 0.0
    %1616 = vmatpush1.msra.mxu0 0.0
    %1617 = vmatprep.subr.mxu0 0.0
    %1618 = vmatpush1.msra.mxu0 0.0
    %1619 = vmatprep.subr.mxu0 0.0
    %1620 = vmatpush1.msra.mxu0 0.0
    %1621 = vmatprep.subr.mxu0 0.0
    %1622 = vmatpush1.msra.mxu0 0.0
    %1623 = vmatprep.subr.mxu0 0.0
    %1624 = vmatpush1.msra.mxu0 0.0
    %1625 = vmatprep.mubr.f32.mxu0 0.0
    %1626 = vmatmul.mubr.f32.gmra.mrb[0].mxu0 %v1559
    %v1627 = vpop.f32.mrb[0].mxu0
    %v1628 = vadd.f32 %v1483, %v1627
    %v1629 = vpop.f32.mrb[0].mxu0
    %v1630 = vadd.f32 %v1485, %v1629
    %1631 = vdwg.mxu0
    %1632 = vmatprep.subr.mxu0 %v337
    %1633 = vmatpush1.msra.mxu0 %v336
    %1634 = vmatprep.subr.mxu0 %v341
    %1635 = vmatpush1.msra.mxu0 %v340
    %1636 = vmatprep.subr.mxu0 %v345
    %1637 = vmatpush1.msra.mxu0 %v344
    %1638 = vmatprep.subr.mxu0 %v349
    %1639 = vmatpush1.msra.mxu0 %v348
    %1640 = vmatprep.subr.mxu0 0.0
    %1641 = vmatpush1.msra.mxu0 0.0
    %1642 = vmatprep.subr.mxu0 0.0
    %1643 = vmatpush1.msra.mxu0 0.0
    %1644 = vmatprep.subr.mxu0 0.0
    %1645 = vmatpush1.msra.mxu0 0.0
    %1646 = vmatprep.subr.mxu0 0.0
    %1647 = vmatpush1.msra.mxu0 0.0
    %1648 = vmatprep.subr.mxu0 0.0
    %1649 = vmatpush1.msra.mxu0 0.0
    %1650 = vmatprep.subr.mxu0 0.0
    %1651 = vmatpush1.msra.mxu0 0.0
    %1652 = vmatprep.subr.mxu0 0.0
    %1653 = vmatpush1.msra.mxu0 0.0
    %1654 = vmatprep.subr.mxu0 0.0
    %1655 = vmatpush1.msra.mxu0 0.0
    %1656 = vmatprep.subr.mxu0 0.0
    %1657 = vmatpush1.msra.mxu0 0.0
    %1658 = vmatprep.subr.mxu0 0.0
    %1659 = vmatpush1.msra.mxu0 0.0
    %1660 = vmatprep.subr.mxu0 0.0
    %1661 = vmatpush1.msra.mxu0 0.0
    %1662 = vmatprep.subr.mxu0 0.0
    %1663 = vmatpush1.msra.mxu0 0.0
    %1664 = vmatprep.subr.mxu0 0.0
    %1665 = vmatpush1.msra.mxu0 0.0
    %1666 = vmatprep.subr.mxu0 0.0
    %1667 = vmatpush1.msra.mxu0 0.0
    %1668 = vmatprep.subr.mxu0 0.0
    %1669 = vmatpush1.msra.mxu0 0.0
    %1670 = vmatprep.subr.mxu0 0.0
    %1671 = vmatpush1.msra.mxu0 0.0
    %1672 = vmatprep.subr.mxu0 0.0
    %1673 = vmatpush1.msra.mxu0 0.0
    %1674 = vmatprep.subr.mxu0 0.0
    %1675 = vmatpush1.msra.mxu0 0.0
    %1676 = vmatprep.subr.mxu0 0.0
    %1677 = vmatpush1.msra.mxu0 0.0
    %1678 = vmatprep.subr.mxu0 0.0
    %1679 = vmatpush1.msra.mxu0 0.0
    %1680 = vmatprep.subr.mxu0 0.0
    %1681 = vmatpush1.msra.mxu0 0.0
    %1682 = vmatprep.subr.mxu0 0.0
    %1683 = vmatpush1.msra.mxu0 0.0
    %1684 = vmatprep.subr.mxu0 0.0
    %1685 = vmatpush1.msra.mxu0 0.0
    %1686 = vmatprep.subr.mxu0 0.0
    %1687 = vmatpush1.msra.mxu0 0.0
    %1688 = vmatprep.subr.mxu0 0.0
    %1689 = vmatpush1.msra.mxu0 0.0
    %1690 = vmatprep.subr.mxu0 0.0
    %1691 = vmatpush1.msra.mxu0 0.0
    %1692 = vmatprep.subr.mxu0 0.0
    %1693 = vmatpush1.msra.mxu0 0.0
    %1694 = vmatprep.subr.mxu0 0.0
    %1695 = vmatpush1.msra.mxu0 0.0
    %1696 = vmatprep.mubr.f32.mxu0 0.0
    %1697 = vmatmul.mubr.f32.gmra.mrb[0].mxu0 %v1559
    %v1698 = vpop.f32.mrb[0].mxu0
    %v1699 = vadd.f32 %v1554, %v1698
    %v1700 = vpop.f32.mrb[0].mxu0
    %v1701 = vadd.f32 %v1556, %v1700
    %1702 = vdwg.mxu0
    %v1703 = vadd.f32 %v1628, %v236
    %v1704 = vadd.f32 %v1630, %v238
    %v1705 = vadd.f32 %v1699, %v307
    %v1706 = vadd.f32 %v1701, %v309
    %v1707 = vxor.u32 %v1703, 2147483648
    %v1708 = vmul.f32 %v1707, 1.442695
    %v1709 = vpow.pop %v1708
    %v1710 = vadd.f32 %v1709, 1.0
    %v1711 = vrcp.pop %v1710
    %v1712 = vmul.f32 1.0, %v1711
    %v1713 = vxor.u32 %v1704, 2147483648
    %v1714 = vmul.f32 %v1713, 1.442695
    %v1715 = vpow.pop %v1714
    %v1716 = vadd.f32 %v1715, 1.0
    %v1717 = vrcp.pop %v1716
    %v1718 = vmul.f32 1.0, %v1717
    %v1719 = vtanh.pop %v1705
    %v1720 = vxor.u32 %v1706, 2147483648
    %v1721 = vmul.f32 %v1720, 1.442695
    %v1722 = vpow.pop %v1721
    %v1723 = vadd.f32 %v1722, 1.0
    %v1724 = vrcp.pop %v1723
    %v1725 = vmul.f32 1.0, %v1724
    %v1726 = vmul.f32 %v1718, %v1236
    %v1727 = vmul.f32 %v1712, %v1719
    %v1728 = vadd.f32 %v1726, %v1727
    %v1729 = vtanh.pop %v1728
    %v1730 = vmul.f32 %v1725, %v1729
    %1731 = vmatprep.subr.mxu0 0.0
    %1732 = vmatpush1.msra.mxu0 %v414
    %1733 = vmatprep.subr.mxu0 0.0
    %1734 = vmatpush1.msra.mxu0 %v415
    %1735 = vmatprep.subr.mxu0 0.0
    %1736 = vmatpush1.msra.mxu0 %v416
    %1737 = vmatprep.subr.mxu0 0.0
    %1738 = vmatpush1.msra.mxu0 %v417
    %1739 = vmatprep.subr.mxu0 0.0
    %1740 = vmatpush1.msra.mxu0 %v418
    %1741 = vmatprep.subr.mxu0 0.0
    %1742 = vmatpush1.msra.mxu0 %v419
    %1743 = vmatprep.subr.mxu0 0.0
    %1744 = vmatpush1.msra.mxu0 %v420
    %1745 = vmatprep.subr.mxu0 0.0
    %1746 = vmatpush1.msra.mxu0 %v421
    %1747 = vmatprep.subr.mxu0 0.0
    %1748 = vmatpush1.msra.mxu0 %v422
    %1749 = vmatprep.subr.mxu0 0.0
    %1750 = vmatpush1.msra.mxu0 %v423
    %1751 = vmatprep.subr.mxu0 0.0
    %1752 = vmatpush1.msra.mxu0 %v424
    %1753 = vmatprep.subr.mxu0 0.0
    %1754 = vmatpush1.msra.mxu0 %v425
    %1755 = vmatprep.subr.mxu0 0.0
    %1756 = vmatpush1.msra.mxu0 %v426
    %1757 = vmatprep.subr.mxu0 0.0
    %1758 = vmatpush1.msra.mxu0 %v427
    %1759 = vmatprep.subr.mxu0 0.0
    %1760 = vmatpush1.msra.mxu0 %v428
    %1761 = vmatprep.subr.mxu0 0.0
    %1762 = vmatpush1.msra.mxu0 %v429
    %1763 = vmatprep.subr.mxu0 0.0
    %1764 = vmatpush1.msra.mxu0 0.0
    %1765 = vmatprep.subr.mxu0 0.0
    %1766 = vmatpush1.msra.mxu0 0.0
    %1767 = vmatprep.subr.mxu0 0.0
    %1768 = vmatpush1.msra.mxu0 0.0
    %1769 = vmatprep.subr.mxu0 0.0
    %1770 = vmatpush1.msra.mxu0 0.0
    %1771 = vmatprep.subr.mxu0 0.0
    %1772 = vmatpush1.msra.mxu0 0.0
    %1773 = vmatprep.subr.mxu0 0.0
    %1774 = vmatpush1.msra.mxu0 0.0
    %1775 = vmatprep.subr.mxu0 0.0
    %1776 = vmatpush1.msra.mxu0 0.0
    %1777 = vmatprep.subr.mxu0 0.0
    %1778 = vmatpush1.msra.mxu0 0.0
    %1779 = vmatprep.subr.mxu0 0.0
    %1780 = vmatpush1.msra.mxu0 0.0
    %1781 = vmatprep.subr.mxu0 0.0
    %1782 = vmatpush1.msra.mxu0 0.0
    %1783 = vmatprep.subr.mxu0 0.0
    %1784 = vmatpush1.msra.mxu0 0.0
    %1785 = vmatprep.subr.mxu0 0.0
    %1786 = vmatpush1.msra.mxu0 0.0
    %1787 = vmatprep.subr.mxu0 0.0
    %1788 = vmatpush1.msra.mxu0 0.0
    %1789 = vmatprep.subr.mxu0 0.0
    %1790 = vmatpush1.msra.mxu0 0.0
    %1791 = vmatprep.subr.mxu0 0.0
    %1792 = vmatpush1.msra.mxu0 0.0
    %1793 = vmatprep.subr.mxu0 0.0
    %1794 = vmatpush1.msra.mxu0 0.0
    %1795 = vmatprep.mubr.f32.mxu0 0.0
    %1796 = vmatmul.mubr.f32.gmra.mrb[0].mxu0 %v1730
    %v1797 = vpop.f32.mrb[0].mxu0
    %v1798 = vadd.f32 %v316, %v1797
    %v1799 = vpop.f32.mrb[0].mxu0
    %1800 = vdwg.mxu0
    %1801 = vmax.xlane.f32.xlu0 %v1798
    %v1802 = vpop.xlane.xlu0 %1801
    %v1803 = vsub.f32 %v1798, %v1802
    %v1804 = vmul.f32 %v1803, 1.442695
    %v1805 = vpow.pop %v1804
    %1806 = vadd.xlane.f32.xlu0 %v1805
    %v1807 = vpop.xlane.xlu0 %1806
    %v1808 = vlog2.pop %v1807
    %v1809 = vmul.f32 %v1808, 0.6931472
    %v1810 = vsub.f32 %v1803, %v1809
    %vm1811 = vcmp.eq.f32.partialorder %v1798, %v1802
    %v1812 = vsel %vm1811, %v431, 128
    %v1813 = vand.u32 %v1812, 65535
    %v1814 = vshra.s32 %v1812, 16
    %v1815 = vcvt.s32.f32 %v1813
    %v1816 = vcvt.s32.f32 %v1814
    %1817 = vmin.xlane.f32.xlu0 %v1816
    %v1818 = vpop.xlane.xlu0 %1817
    %vm1819 = vcmp.eq.f32.partialorder %v1816, %v1818
    %v1820 = vsel %vm1819, %v1815, inf
    %1821 = vmin.xlane.f32.xlu0 %v1820
    %v1822 = vpop.xlane.xlu0 %1821
    %v1823 = vcvt.f32.s32 %v1822
    %v1824 = vcvt.f32.s32 %v1818
    %v1825 = vshll.u32 %v1824, 16
    %v1826 = vadd.s32 %v1825, %v1823
    %vm1827 = vcmp.eq.s32.totalorder %v431, %v1826
    %v1828 = vsel %vm1827, 1, 0
    %v1829 = vcvt.s32.f32 %v1828
    %1830 = vmatprep.subr.mxu0 0.0
    %1831 = vmatpush1.msra.mxu0 %v318
    %1832 = vmatprep.subr.mxu0 0.0
    %1833 = vmatpush1.msra.mxu0 %v319
    %1834 = vmatprep.subr.mxu0 0.0
    %1835 = vmatpush1.msra.mxu0 %v320
    %1836 = vmatprep.subr.mxu0 0.0
    %1837 = vmatpush1.msra.mxu0 %v321
    %1838 = vmatprep.subr.mxu0 0.0
    %1839 = vmatpush1.msra.mxu0 %v322
    %1840 = vmatprep.subr.mxu0 0.0
    %1841 = vmatpush1.msra.mxu0 %v323
    %1842 = vmatprep.subr.mxu0 0.0
    %1843 = vmatpush1.msra.mxu0 %v324
    %1844 = vmatprep.subr.mxu0 0.0
    %1845 = vmatpush1.msra.mxu0 %v325
    %1846 = vmatprep.subr.mxu0 0.0
    %1847 = vmatpush1.msra.mxu0 %v326
    %1848 = vmatprep.subr.mxu0 0.0
    %1849 = vmatpush1.msra.mxu0 %v327
    %1850 = vmatprep.subr.mxu0 0.0
    %1851 = vmatpush1.msra.mxu0 %v328
    %1852 = vmatprep.subr.mxu0 0.0
    %1853 = vmatpush1.msra.mxu0 %v329
    %1854 = vmatprep.subr.mxu0 0.0
    %1855 = vmatpush1.msra.mxu0 %v330
    %1856 = vmatprep.subr.mxu0 0.0
    %1857 = vmatpush1.msra.mxu0 %v331
    %1858 = vmatprep.subr.mxu0 0.0
    %1859 = vmatpush1.msra.mxu0 %v332
    %1860 = vmatprep.subr.mxu0 0.0
    %1861 = vmatpush1.msra.mxu0 %v333
    %1862 = vmatprep.subr.mxu0 0.0
    %1863 = vmatpush1.msra.mxu0 0.0
    %1864 = vmatprep.subr.mxu0 0.0
    %1865 = vmatpush1.msra.mxu0 0.0
    %1866 = vmatprep.subr.mxu0 0.0
    %1867 = vmatpush1.msra.mxu0 0.0
    %1868 = vmatprep.subr.mxu0 0.0
    %1869 = vmatpush1.msra.mxu0 0.0
    %1870 = vmatprep.subr.mxu0 0.0
    %1871 = vmatpush1.msra.mxu0 0.0
    %1872 = vmatprep.subr.mxu0 0.0
    %1873 = vmatpush1.msra.mxu0 0.0
    %1874 = vmatprep.subr.mxu0 0.0
    %1875 = vmatpush1.msra.mxu0 0.0
    %1876 = vmatprep.subr.mxu0 0.0
    %1877 = vmatpush1.msra.mxu0 0.0
    %1878 = vmatprep.subr.mxu0 0.0
    %1879 = vmatpush1.msra.mxu0 0.0
    %1880 = vmatprep.subr.mxu0 0.0
    %1881 = vmatpush1.msra.mxu0 0.0
    %1882 = vmatprep.subr.mxu0 0.0
    %1883 = vmatpush1.msra.mxu0 0.0
    %1884 = vmatprep.subr.mxu0 0.0
    %1885 = vmatpush1.msra.mxu0 0.0
    %1886 = vmatprep.subr.mxu0 0.0
    %1887 = vmatpush1.msra.mxu0 0.0
    %1888 = vmatprep.subr.mxu0 0.0
    %1889 = vmatpush1.msra.mxu0 0.0
    %1890 = vmatprep.subr.mxu0 0.0
    %1891 = vmatpush1.msra.mxu0 0.0
    %1892 = vmatprep.subr.mxu0 0.0
    %1893 = vmatpush1.msra.mxu0 0.0
    %1894 = vmatprep.mubr.f32.mxu0 0.0
    %1895 = vmatmul.mubr.f32.gmra.mrb[0].mxu0 %v1829
    %v1896 = vpop.f32.mrb[0].mxu0
    %v1897 = vadd.f32 0.0, %v1896
    %v1898 = vpop.f32.mrb[0].mxu0
    %1899 = vdwg.mxu0
    %s1900 = scalar_lea.vmem [#allocation8], 16
    %1901 = vst [vmem:[%s1900] sm:$0xff] %v1810
    %s1902 = scalar_lea.vmem %s11, 16
    %1903 = vst.msk [vmem:[%s1902] sm:$0xff] %vm920, %v1826
    %s1904 = scalar_lea.vmem [#allocation9], 16
    %1905 = vst [vmem:[%s1904] sm:$0xff] %v1730
    %s1906 = scalar_lea.vmem [#allocation11], 16
    %1907 = vst [vmem:[%s1906] sm:$0xff] %v1728
    %1908 = vmatprep.subr.mxu0 %v351
    %1909 = vmatpush1.msra.mxu0 %v350
    %1910 = vmatprep.subr.mxu0 %v355
    %1911 = vmatpush1.msra.mxu0 %v354
    %1912 = vmatprep.subr.mxu0 %v359
    %1913 = vmatpush1.msra.mxu0 %v358
    %1914 = vmatprep.subr.mxu0 %v363
    %1915 = vmatpush1.msra.mxu0 %v362
    %1916 = vmatprep.subr.mxu0 %v367
    %1917 = vmatpush1.msra.mxu0 %v366
    %1918 = vmatprep.subr.mxu0 %v371
    %1919 = vmatpush1.msra.mxu0 %v370
    %1920 = vmatprep.subr.mxu0 %v375
    %1921 = vmatpush1.msra.mxu0 %v374
    %1922 = vmatprep.subr.mxu0 %v379
    %1923 = vmatpush1.msra.mxu0 %v378
    %1924 = vmatprep.subr.mxu0 %v383
    %1925 = vmatpush1.msra.mxu0 %v382
    %1926 = vmatprep.subr.mxu0 %v387
    %1927 = vmatpush1.msra.mxu0 %v386
    %1928 = vmatprep.subr.mxu0 %v391
    %1929 = vmatpush1.msra.mxu0 %v390
    %1930 = vmatprep.subr.mxu0 %v395
    %1931 = vmatpush1.msra.mxu0 %v394
    %1932 = vmatprep.subr.mxu0 %v399
    %1933 = vmatpush1.msra.mxu0 %v398
    %1934 = vmatprep.subr.mxu0 %v403
    %1935 = vmatpush1.msra.mxu0 %v402
    %1936 = vmatprep.subr.mxu0 %v407
    %1937 = vmatpush1.msra.mxu0 %v406
    %1938 = vmatprep.subr.mxu0 %v411
    %1939 = vmatpush1.msra.mxu0 %v410
    %1940 = vmatprep.subr.mxu0 0.0
    %1941 = vmatpush1.msra.mxu0 0.0
    %1942 = vmatprep.subr.mxu0 0.0
    %1943 = vmatpush1.msra.mxu0 0.0
    %1944 = vmatprep.subr.mxu0 0.0
    %1945 = vmatpush1.msra.mxu0 0.0
    %1946 = vmatprep.subr.mxu0 0.0
    %1947 = vmatpush1.msra.mxu0 0.0
    %1948 = vmatprep.subr.mxu0 0.0
    %1949 = vmatpush1.msra.mxu0 0.0
    %1950 = vmatprep.subr.mxu0 0.0
    %1951 = vmatpush1.msra.mxu0 0.0
    %1952 = vmatprep.subr.mxu0 0.0
    %1953 = vmatpush1.msra.mxu0 0.0
    %1954 = vmatprep.subr.mxu0 0.0
    %1955 = vmatpush1.msra.mxu0 0.0
    %1956 = vmatprep.subr.mxu0 0.0
    %1957 = vmatpush1.msra.mxu0 0.0
    %1958 = vmatprep.subr.mxu0 0.0
    %1959 = vmatpush1.msra.mxu0 0.0
    %1960 = vmatprep.subr.mxu0 0.0
    %1961 = vmatpush1.msra.mxu0 0.0
    %1962 = vmatprep.subr.mxu0 0.0
    %1963 = vmatpush1.msra.mxu0 0.0
    %1964 = vmatprep.subr.mxu0 0.0
    %1965 = vmatpush1.msra.mxu0 0.0
    %1966 = vmatprep.subr.mxu0 0.0
    %1967 = vmatpush1.msra.mxu0 0.0
    %1968 = vmatprep.subr.mxu0 0.0
    %1969 = vmatpush1.msra.mxu0 0.0
    %1970 = vmatprep.subr.mxu0 0.0
    %1971 = vmatpush1.msra.mxu0 0.0
    %1972 = vmatprep.mubr.f32.mxu0 0.0
    %1973 = vmatmul.mubr.f32.gmra.mrb[0].mxu0 %v1730
    %v1974 = vpop.f32.mrb[0].mxu0
    %v1975 = vadd.f32 0.0, %v1974
    %v1976 = vpop.f32.mrb[0].mxu0
    %v1977 = vadd.f32 0.0, %v1976
    %1978 = vdwg.mxu0
    %1979 = vmatprep.subr.mxu0 %v353
    %1980 = vmatpush1.msra.mxu0 %v352
    %1981 = vmatprep.subr.mxu0 %v357
    %1982 = vmatpush1.msra.mxu0 %v356
    %1983 = vmatprep.subr.mxu0 %v361
    %1984 = vmatpush1.msra.mxu0 %v360
    %1985 = vmatprep.subr.mxu0 %v365
    %1986 = vmatpush1.msra.mxu0 %v364
    %1987 = vmatprep.subr.mxu0 %v369
    %1988 = vmatpush1.msra.mxu0 %v368
    %1989 = vmatprep.subr.mxu0 %v373
    %1990 = vmatpush1.msra.mxu0 %v372
    %1991 = vmatprep.subr.mxu0 %v377
    %1992 = vmatpush1.msra.mxu0 %v376
    %1993 = vmatprep.subr.mxu0 %v381
    %1994 = vmatpush1.msra.mxu0 %v380
    %1995 = vmatprep.subr.mxu0 %v385
    %1996 = vmatpush1.msra.mxu0 %v384
    %1997 = vmatprep.subr.mxu0 %v389
    %1998 = vmatpush1.msra.mxu0 %v388
    %1999 = vmatprep.subr.mxu0 %v393
    %2000 = vmatpush1.msra.mxu0 %v392
    %2001 = vmatprep.subr.mxu0 %v397
    %2002 = vmatpush1.msra.mxu0 %v396
    %2003 = vmatprep.subr.mxu0 %v401
    %2004 = vmatpush1.msra.mxu0 %v400
    %2005 = vmatprep.subr.mxu0 %v405
    %2006 = vmatpush1.msra.mxu0 %v404
    %2007 = vmatprep.subr.mxu0 %v409
    %2008 = vmatpush1.msra.mxu0 %v408
    %2009 = vmatprep.subr.mxu0 %v413
    %2010 = vmatpush1.msra.mxu0 %v412
    %2011 = vmatprep.subr.mxu0 0.0
    %2012 = vmatpush1.msra.mxu0 0.0
    %2013 = vmatprep.subr.mxu0 0.0
    %2014 = vmatpush1.msra.mxu0 0.0
    %2015 = vmatprep.subr.mxu0 0.0
    %2016 = vmatpush1.msra.mxu0 0.0
    %2017 = vmatprep.subr.mxu0 0.0
    %2018 = vmatpush1.msra.mxu0 0.0
    %2019 = vmatprep.subr.mxu0 0.0
    %2020 = vmatpush1.msra.mxu0 0.0
    %2021 = vmatprep.subr.mxu0 0.0
    %2022 = vmatpush1.msra.mxu0 0.0
    %2023 = vmatprep.subr.mxu0 0.0
    %2024 = vmatpush1.msra.mxu0 0.0
    %2025 = vmatprep.subr.mxu0 0.0
    %2026 = vmatpush1.msra.mxu0 0.0
    %2027 = vmatprep.subr.mxu0 0.0
    %2028 = vmatpush1.msra.mxu0 0.0
    %2029 = vmatprep.subr.mxu0 0.0
    %2030 = vmatpush1.msra.mxu0 0.0
    %2031 = vmatprep.subr.mxu0 0.0
    %2032 = vmatpush1.msra.mxu0 0.0
    %2033 = vmatprep.subr.mxu0 0.0
    %2034 = vmatpush1.msra.mxu0 0.0
    %2035 = vmatprep.subr.mxu0 0.0
    %2036 = vmatpush1.msra.mxu0 0.0
    %2037 = vmatprep.subr.mxu0 0.0
    %2038 = vmatpush1.msra.mxu0 0.0
    %2039 = vmatprep.subr.mxu0 0.0
    %2040 = vmatpush1.msra.mxu0 0.0
    %2041 = vmatprep.subr.mxu0 0.0
    %2042 = vmatpush1.msra.mxu0 0.0
    %2043 = vmatprep.mubr.f32.mxu0 0.0
    %2044 = vmatmul.mubr.f32.gmra.mrb[0].mxu0 %v1730
    %v2045 = vpop.f32.mrb[0].mxu0
    %v2046 = vadd.f32 0.0, %v2045
    %v2047 = vpop.f32.mrb[0].mxu0
    %v2048 = vadd.f32 0.0, %v2047
    %2049 = vdwg.mxu0
    %v2051 = vsel %vm576, %v1897, 0
    %2053 = vmatprep.subr.mxu0 %v335
    %2054 = vmatpush1.msra.mxu0 %v334
    %2055 = vmatprep.subr.mxu0 %v339
    %2056 = vmatpush1.msra.mxu0 %v338
    %2057 = vmatprep.subr.mxu0 %v343
    %2058 = vmatpush1.msra.mxu0 %v342
    %2059 = vmatprep.subr.mxu0 %v347
    %2060 = vmatpush1.msra.mxu0 %v346
    %2061 = vmatprep.subr.mxu0 0.0
    %2062 = vmatpush1.msra.mxu0 0.0
    %2063 = vmatprep.subr.mxu0 0.0
    %2064 = vmatpush1.msra.mxu0 0.0
    %2065 = vmatprep.subr.mxu0 0.0
    %2066 = vmatpush1.msra.mxu0 0.0
    %2067 = vmatprep.subr.mxu0 0.0
    %2068 = vmatpush1.msra.mxu0 0.0
    %2069 = vmatprep.subr.mxu0 0.0
    %2070 = vmatpush1.msra.mxu0 0.0
    %2071 = vmatprep.subr.mxu0 0.0
    %2072 = vmatpush1.msra.mxu0 0.0
    %2073 = vmatprep.subr.mxu0 0.0
    %2074 = vmatpush1.msra.mxu0 0.0
    %2075 = vmatprep.subr.mxu0 0.0
    %2076 = vmatpush1.msra.mxu0 0.0
    %2077 = vmatprep.subr.mxu0 0.0
    %2078 = vmatpush1.msra.mxu0 0.0
    %2079 = vmatprep.subr.mxu0 0.0
    %2080 = vmatpush1.msra.mxu0 0.0
    %2081 = vmatprep.subr.mxu0 0.0
    %2082 = vmatpush1.msra.mxu0 0.0
    %2083 = vmatprep.subr.mxu0 0.0
    %2084 = vmatpush1.msra.mxu0 0.0
    %2085 = vmatprep.subr.mxu0 0.0
    %2086 = vmatpush1.msra.mxu0 0.0
    %2087 = vmatprep.subr.mxu0 0.0
    %2088 = vmatpush1.msra.mxu0 0.0
    %2089 = vmatprep.subr.mxu0 0.0
    %2090 = vmatpush1.msra.mxu0 0.0
    %2091 = vmatprep.subr.mxu0 0.0
    %2092 = vmatpush1.msra.mxu0 0.0
    %2093 = vmatprep.subr.mxu0 0.0
    %2094 = vmatpush1.msra.mxu0 0.0
    %2095 = vmatprep.subr.mxu0 0.0
    %2096 = vmatpush1.msra.mxu0 0.0
    %2097 = vmatprep.subr.mxu0 0.0
    %2098 = vmatpush1.msra.mxu0 0.0
    %2099 = vmatprep.subr.mxu0 0.0
    %2100 = vmatpush1.msra.mxu0 0.0
    %2101 = vmatprep.subr.mxu0 0.0
    %2102 = vmatpush1.msra.mxu0 0.0
    %2103 = vmatprep.subr.mxu0 0.0
    %2104 = vmatpush1.msra.mxu0 0.0
    %2105 = vmatprep.subr.mxu0 0.0
    %2106 = vmatpush1.msra.mxu0 0.0
    %2107 = vmatprep.subr.mxu0 0.0
    %2108 = vmatpush1.msra.mxu0 0.0
    %2109 = vmatprep.subr.mxu0 0.0
    %2110 = vmatpush1.msra.mxu0 0.0
    %2111 = vmatprep.subr.mxu0 0.0
    %2112 = vmatpush1.msra.mxu0 0.0
    %2113 = vmatprep.subr.mxu0 0.0
    %2114 = vmatpush1.msra.mxu0 0.0
    %2115 = vmatprep.subr.mxu0 0.0
    %2116 = vmatpush1.msra.mxu0 0.0
    %2117 = vmatprep.mubr.f32.mxu0 0.0
    %2118 = vmatmul.mubr.f32.gmra.mrb[0].mxu0 %v2051
    %v2119 = vpop.f32.mrb[0].mxu0
    %v2120 = vadd.f32 %v1975, %v2119
    %v2121 = vpop.f32.mrb[0].mxu0
    %v2122 = vadd.f32 %v1977, %v2121
    %2123 = vdwg.mxu0
    %2124 = vmatprep.subr.mxu0 %v337
    %2125 = vmatpush1.msra.mxu0 %v336
    %2126 = vmatprep.subr.mxu0 %v341
    %2127 = vmatpush1.msra.mxu0 %v340
    %2128 = vmatprep.subr.mxu0 %v345
    %2129 = vmatpush1.msra.mxu0 %v344
    %2130 = vmatprep.subr.mxu0 %v349
    %2131 = vmatpush1.msra.mxu0 %v348
    %2132 = vmatprep.subr.mxu0 0.0
    %2133 = vmatpush1.msra.mxu0 0.0
    %2134 = vmatprep.subr.mxu0 0.0
    %2135 = vmatpush1.msra.mxu0 0.0
    %2136 = vmatprep.subr.mxu0 0.0
    %2137 = vmatpush1.msra.mxu0 0.0
    %2138 = vmatprep.subr.mxu0 0.0
    %2139 = vmatpush1.msra.mxu0 0.0
    %2140 = vmatprep.subr.mxu0 0.0
    %2141 = vmatpush1.msra.mxu0 0.0
    %2142 = vmatprep.subr.mxu0 0.0
    %2143 = vmatpush1.msra.mxu0 0.0
    %2144 = vmatprep.subr.mxu0 0.0
    %2145 = vmatpush1.msra.mxu0 0.0
    %2146 = vmatprep.subr.mxu0 0.0
    %2147 = vmatpush1.msra.mxu0 0.0
    %2148 = vmatprep.subr.mxu0 0.0
    %2149 = vmatpush1.msra.mxu0 0.0
    %2150 = vmatprep.subr.mxu0 0.0
    %2151 = vmatpush1.msra.mxu0 0.0
    %2152 = vmatprep.subr.mxu0 0.0
    %2153 = vmatpush1.msra.mxu0 0.0
    %2154 = vmatprep.subr.mxu0 0.0
    %2155 = vmatpush1.msra.mxu0 0.0
    %2156 = vmatprep.subr.mxu0 0.0
    %2157 = vmatpush1.msra.mxu0 0.0
    %2158 = vmatprep.subr.mxu0 0.0
    %2159 = vmatpush1.msra.mxu0 0.0
    %2160 = vmatprep.subr.mxu0 0.0
    %2161 = vmatpush1.msra.mxu0 0.0
    %2162 = vmatprep.subr.mxu0 0.0
    %2163 = vmatpush1.msra.mxu0 0.0
    %2164 = vmatprep.subr.mxu0 0.0
    %2165 = vmatpush1.msra.mxu0 0.0
    %2166 = vmatprep.subr.mxu0 0.0
    %2167 = vmatpush1.msra.mxu0 0.0
    %2168 = vmatprep.subr.mxu0 0.0
    %2169 = vmatpush1.msra.mxu0 0.0
    %2170 = vmatprep.subr.mxu0 0.0
    %2171 = vmatpush1.msra.mxu0 0.0
    %2172 = vmatprep.subr.mxu0 0.0
    %2173 = vmatpush1.msra.mxu0 0.0
    %2174 = vmatprep.subr.mxu0 0.0
    %2175 = vmatpush1.msra.mxu0 0.0
    %2176 = vmatprep.subr.mxu0 0.0
    %2177 = vmatpush1.msra.mxu0 0.0
    %2178 = vmatprep.subr.mxu0 0.0
    %2179 = vmatpush1.msra.mxu0 0.0
    %2180 = vmatprep.subr.mxu0 0.0
    %2181 = vmatpush1.msra.mxu0 0.0
    %2182 = vmatprep.subr.mxu0 0.0
    %2183 = vmatpush1.msra.mxu0 0.0
    %2184 = vmatprep.subr.mxu0 0.0
    %2185 = vmatpush1.msra.mxu0 0.0
    %2186 = vmatprep.subr.mxu0 0.0
    %2187 = vmatpush1.msra.mxu0 0.0
    %2188 = vmatprep.mubr.f32.mxu0 0.0
    %2189 = vmatmul.mubr.f32.gmra.mrb[0].mxu0 %v2051
    %v2190 = vpop.f32.mrb[0].mxu0
    %v2191 = vadd.f32 %v2046, %v2190
    %v2192 = vpop.f32.mrb[0].mxu0
    %v2193 = vadd.f32 %v2048, %v2192
    %2194 = vdwg.mxu0
    %v2195 = vadd.f32 %v2120, %v236
    %v2196 = vadd.f32 %v2122, %v238
    %v2197 = vadd.f32 %v2191, %v307
    %v2198 = vadd.f32 %v2193, %v309
    %v2199 = vxor.u32 %v2195, 2147483648
    %v2200 = vmul.f32 %v2199, 1.442695
    %v2201 = vpow.pop %v2200
    %v2202 = vadd.f32 %v2201, 1.0
    %v2203 = vrcp.pop %v2202
    %v2204 = vmul.f32 1.0, %v2203
    %v2205 = vxor.u32 %v2196, 2147483648
    %v2206 = vmul.f32 %v2205, 1.442695
    %v2207 = vpow.pop %v2206
    %v2208 = vadd.f32 %v2207, 1.0
    %v2209 = vrcp.pop %v2208
    %v2210 = vmul.f32 1.0, %v2209
    %v2211 = vtanh.pop %v2197
    %v2212 = vxor.u32 %v2198, 2147483648
    %v2213 = vmul.f32 %v2212, 1.442695
    %v2214 = vpow.pop %v2213
    %v2215 = vadd.f32 %v2214, 1.0
    %v2216 = vrcp.pop %v2215
    %v2217 = vmul.f32 1.0, %v2216
    %v2218 = vmul.f32 %v2210, %v1728
    %v2219 = vmul.f32 %v2204, %v2211
    %v2220 = vadd.f32 %v2218, %v2219
    %v2221 = vtanh.pop %v2220
    %v2222 = vmul.f32 %v2217, %v2221
    %2223 = vmatprep.subr.mxu0 0.0
    %2224 = vmatpush1.msra.mxu0 %v414
    %2225 = vmatprep.subr.mxu0 0.0
    %2226 = vmatpush1.msra.mxu0 %v415
    %2227 = vmatprep.subr.mxu0 0.0
    %2228 = vmatpush1.msra.mxu0 %v416
    %2229 = vmatprep.subr.mxu0 0.0
    %2230 = vmatpush1.msra.mxu0 %v417
    %2231 = vmatprep.subr.mxu0 0.0
    %2232 = vmatpush1.msra.mxu0 %v418
    %2233 = vmatprep.subr.mxu0 0.0
    %2234 = vmatpush1.msra.mxu0 %v419
    %2235 = vmatprep.subr.mxu0 0.0
    %2236 = vmatpush1.msra.mxu0 %v420
    %2237 = vmatprep.subr.mxu0 0.0
    %2238 = vmatpush1.msra.mxu0 %v421
    %2239 = vmatprep.subr.mxu0 0.0
    %2240 = vmatpush1.msra.mxu0 %v422
    %2241 = vmatprep.subr.mxu0 0.0
    %2242 = vmatpush1.msra.mxu0 %v423
    %2243 = vmatprep.subr.mxu0 0.0
    %2244 = vmatpush1.msra.mxu0 %v424
    %2245 = vmatprep.subr.mxu0 0.0
    %2246 = vmatpush1.msra.mxu0 %v425
    %2247 = vmatprep.subr.mxu0 0.0
    %2248 = vmatpush1.msra.mxu0 %v426
    %2249 = vmatprep.subr.mxu0 0.0
    %2250 = vmatpush1.msra.mxu0 %v427
    %2251 = vmatprep.subr.mxu0 0.0
    %2252 = vmatpush1.msra.mxu0 %v428
    %2253 = vmatprep.subr.mxu0 0.0
    %2254 = vmatpush1.msra.mxu0 %v429
    %2255 = vmatprep.subr.mxu0 0.0
    %2256 = vmatpush1.msra.mxu0 0.0
    %2257 = vmatprep.subr.mxu0 0.0
    %2258 = vmatpush1.msra.mxu0 0.0
    %2259 = vmatprep.subr.mxu0 0.0
    %2260 = vmatpush1.msra.mxu0 0.0
    %2261 = vmatprep.subr.mxu0 0.0
    %2262 = vmatpush1.msra.mxu0 0.0
    %2263 = vmatprep.subr.mxu0 0.0
    %2264 = vmatpush1.msra.mxu0 0.0
    %2265 = vmatprep.subr.mxu0 0.0
    %2266 = vmatpush1.msra.mxu0 0.0
    %2267 = vmatprep.subr.mxu0 0.0
    %2268 = vmatpush1.msra.mxu0 0.0
    %2269 = vmatprep.subr.mxu0 0.0
    %2270 = vmatpush1.msra.mxu0 0.0
    %2271 = vmatprep.subr.mxu0 0.0
    %2272 = vmatpush1.msra.mxu0 0.0
    %2273 = vmatprep.subr.mxu0 0.0
    %2274 = vmatpush1.msra.mxu0 0.0
    %2275 = vmatprep.subr.mxu0 0.0
    %2276 = vmatpush1.msra.mxu0 0.0
    %2277 = vmatprep.subr.mxu0 0.0
    %2278 = vmatpush1.msra.mxu0 0.0
    %2279 = vmatprep.subr.mxu0 0.0
    %2280 = vmatpush1.msra.mxu0 0.0
    %2281 = vmatprep.subr.mxu0 0.0
    %2282 = vmatpush1.msra.mxu0 0.0
    %2283 = vmatprep.subr.mxu0 0.0
    %2284 = vmatpush1.msra.mxu0 0.0
    %2285 = vmatprep.subr.mxu0 0.0
    %2286 = vmatpush1.msra.mxu0 0.0
    %2287 = vmatprep.mubr.f32.mxu0 0.0
    %2288 = vmatmul.mubr.f32.gmra.mrb[0].mxu0 %v2222
    %v2289 = vpop.f32.mrb[0].mxu0
    %v2290 = vadd.f32 %v316, %v2289
    %v2291 = vpop.f32.mrb[0].mxu0
    %2292 = vdwg.mxu0
    %2293 = vmax.xlane.f32.xlu0 %v2290
    %v2294 = vpop.xlane.xlu0 %2293
    %v2295 = vsub.f32 %v2290, %v2294
    %v2296 = vmul.f32 %v2295, 1.442695
    %v2297 = vpow.pop %v2296
    %2298 = vadd.xlane.f32.xlu0 %v2297
    %v2299 = vpop.xlane.xlu0 %2298
    %v2300 = vlog2.pop %v2299
    %v2301 = vmul.f32 %v2300, 0.6931472
    %v2302 = vsub.f32 %v2295, %v2301
    %vm2303 = vcmp.eq.f32.partialorder %v2290, %v2294
    %v2304 = vsel %vm2303, %v431, 128
    %v2305 = vand.u32 %v2304, 65535
    %v2306 = vshra.s32 %v2304, 16
    %v2307 = vcvt.s32.f32 %v2305
    %v2308 = vcvt.s32.f32 %v2306
    %2309 = vmin.xlane.f32.xlu0 %v2308
    %v2310 = vpop.xlane.xlu0 %2309
    %vm2311 = vcmp.eq.f32.partialorder %v2308, %v2310
    %v2312 = vsel %vm2311, %v2307, inf
    %2313 = vmin.xlane.f32.xlu0 %v2312
    %v2314 = vpop.xlane.xlu0 %2313
    %v2315 = vcvt.f32.s32 %v2314
    %v2316 = vcvt.f32.s32 %v2310
    %v2317 = vshll.u32 %v2316, 16
    %v2318 = vadd.s32 %v2317, %v2315
    %vm2319 = vcmp.eq.s32.totalorder %v431, %v2318
    %v2320 = vsel %vm2319, 1, 0
    %v2321 = vcvt.s32.f32 %v2320
    %2322 = vmatprep.subr.mxu0 0.0
    %2323 = vmatpush1.msra.mxu0 %v318
    %2324 = vmatprep.subr.mxu0 0.0
    %2325 = vmatpush1.msra.mxu0 %v319
    %2326 = vmatprep.subr.mxu0 0.0
    %2327 = vmatpush1.msra.mxu0 %v320
    %2328 = vmatprep.subr.mxu0 0.0
    %2329 = vmatpush1.msra.mxu0 %v321
    %2330 = vmatprep.subr.mxu0 0.0
    %2331 = vmatpush1.msra.mxu0 %v322
    %2332 = vmatprep.subr.mxu0 0.0
    %2333 = vmatpush1.msra.mxu0 %v323
    %2334 = vmatprep.subr.mxu0 0.0
    %2335 = vmatpush1.msra.mxu0 %v324
    %2336 = vmatprep.subr.mxu0 0.0
    %2337 = vmatpush1.msra.mxu0 %v325
    %2338 = vmatprep.subr.mxu0 0.0
    %2339 = vmatpush1.msra.mxu0 %v326
    %2340 = vmatprep.subr.mxu0 0.0
    %2341 = vmatpush1.msra.mxu0 %v327
    %2342 = vmatprep.subr.mxu0 0.0
    %2343 = vmatpush1.msra.mxu0 %v328
    %2344 = vmatprep.subr.mxu0 0.0
    %2345 = vmatpush1.msra.mxu0 %v329
    %2346 = vmatprep.subr.mxu0 0.0
    %2347 = vmatpush1.msra.mxu0 %v330
    %2348 = vmatprep.subr.mxu0 0.0
    %2349 = vmatpush1.msra.mxu0 %v331
    %2350 = vmatprep.subr.mxu0 0.0
    %2351 = vmatpush1.msra.mxu0 %v332
    %2352 = vmatprep.subr.mxu0 0.0
    %2353 = vmatpush1.msra.mxu0 %v333
    %2354 = vmatprep.subr.mxu0 0.0
    %2355 = vmatpush1.msra.mxu0 0.0
    %2356 = vmatprep.subr.mxu0 0.0
    %2357 = vmatpush1.msra.mxu0 0.0
    %2358 = vmatprep.subr.mxu0 0.0
    %2359 = vmatpush1.msra.mxu0 0.0
    %2360 = vmatprep.subr.mxu0 0.0
    %2361 = vmatpush1.msra.mxu0 0.0
    %2362 = vmatprep.subr.mxu0 0.0
    %2363 = vmatpush1.msra.mxu0 0.0
    %2364 = vmatprep.subr.mxu0 0.0
    %2365 = vmatpush1.msra.mxu0 0.0
    %2366 = vmatprep.subr.mxu0 0.0
    %2367 = vmatpush1.msra.mxu0 0.0
    %2368 = vmatprep.subr.mxu0 0.0
    %2369 = vmatpush1.msra.mxu0 0.0
    %2370 = vmatprep.subr.mxu0 0.0
    %2371 = vmatpush1.msra.mxu0 0.0
    %2372 = vmatprep.subr.mxu0 0.0
    %2373 = vmatpush1.msra.mxu0 0.0
    %2374 = vmatprep.subr.mxu0 0.0
    %2375 = vmatpush1.msra.mxu0 0.0
    %2376 = vmatprep.subr.mxu0 0.0
    %2377 = vmatpush1.msra.mxu0 0.0
    %2378 = vmatprep.subr.mxu0 0.0
    %2379 = vmatpush1.msra.mxu0 0.0
    %2380 = vmatprep.subr.mxu0 0.0
    %2381 = vmatpush1.msra.mxu0 0.0
    %2382 = vmatprep.subr.mxu0 0.0
    %2383 = vmatpush1.msra.mxu0 0.0
    %2384 = vmatprep.subr.mxu0 0.0
    %2385 = vmatpush1.msra.mxu0 0.0
    %2386 = vmatprep.mubr.f32.mxu0 0.0
    %2387 = vmatmul.mubr.f32.gmra.mrb[0].mxu0 %v2321
    %v2388 = vpop.f32.mrb[0].mxu0
    %v2389 = vadd.f32 0.0, %v2388
    %v2390 = vpop.f32.mrb[0].mxu0
    %2391 = vdwg.mxu0
    %s2392 = scalar_lea.vmem [#allocation8], 24
    %2393 = vst [vmem:[%s2392] sm:$0xff] %v2302
    %s2394 = scalar_lea.vmem %s11, 24
    %2395 = vst.msk [vmem:[%s2394] sm:$0xff] %vm920, %v2318
    %s2396 = scalar_lea.vmem [#allocation9], 24
    %2397 = vst [vmem:[%s2396] sm:$0xff] %v2222
    %s2398 = scalar_lea.vmem [#allocation11], 24
    %2399 = vst [vmem:[%s2398] sm:$0xff] %v2220
    %2400 = vmatprep.subr.mxu0 %v351
    %2401 = vmatpush1.msra.mxu0 %v350
    %2402 = vmatprep.subr.mxu0 %v355
    %2403 = vmatpush1.msra.mxu0 %v354
    %2404 = vmatprep.subr.mxu0 %v359
    %2405 = vmatpush1.msra.mxu0 %v358
    %2406 = vmatprep.subr.mxu0 %v363
    %2407 = vmatpush1.msra.mxu0 %v362
    %2408 = vmatprep.subr.mxu0 %v367
    %2409 = vmatpush1.msra.mxu0 %v366
    %2410 = vmatprep.subr.mxu0 %v371
    %2411 = vmatpush1.msra.mxu0 %v370
    %2412 = vmatprep.subr.mxu0 %v375
    %2413 = vmatpush1.msra.mxu0 %v374
    %2414 = vmatprep.subr.mxu0 %v379
    %2415 = vmatpush1.msra.mxu0 %v378
    %2416 = vmatprep.subr.mxu0 %v383
    %2417 = vmatpush1.msra.mxu0 %v382
    %2418 = vmatprep.subr.mxu0 %v387
    %2419 = vmatpush1.msra.mxu0 %v386
    %2420 = vmatprep.subr.mxu0 %v391
    %2421 = vmatpush1.msra.mxu0 %v390
    %2422 = vmatprep.subr.mxu0 %v395
    %2423 = vmatpush1.msra.mxu0 %v394
    %2424 = vmatprep.subr.mxu0 %v399
    %2425 = vmatpush1.msra.mxu0 %v398
    %2426 = vmatprep.subr.mxu0 %v403
    %2427 = vmatpush1.msra.mxu0 %v402
    %2428 = vmatprep.subr.mxu0 %v407
    %2429 = vmatpush1.msra.mxu0 %v406
    %2430 = vmatprep.subr.mxu0 %v411
    %2431 = vmatpush1.msra.mxu0 %v410
    %2432 = vmatprep.subr.mxu0 0.0
    %2433 = vmatpush1.msra.mxu0 0.0
    %2434 = vmatprep.subr.mxu0 0.0
    %2435 = vmatpush1.msra.mxu0 0.0
    %2436 = vmatprep.subr.mxu0 0.0
    %2437 = vmatpush1.msra.mxu0 0.0
    %2438 = vmatprep.subr.mxu0 0.0
    %2439 = vmatpush1.msra.mxu0 0.0
    %2440 = vmatprep.subr.mxu0 0.0
    %2441 = vmatpush1.msra.mxu0 0.0
    %2442 = vmatprep.subr.mxu0 0.0
    %2443 = vmatpush1.msra.mxu0 0.0
    %2444 = vmatprep.subr.mxu0 0.0
    %2445 = vmatpush1.msra.mxu0 0.0
    %2446 = vmatprep.subr.mxu0 0.0
    %2447 = vmatpush1.msra.mxu0 0.0
    %2448 = vmatprep.subr.mxu0 0.0
    %2449 = vmatpush1.msra.mxu0 0.0
    %2450 = vmatprep.subr.mxu0 0.0
    %2451 = vmatpush1.msra.mxu0 0.0
    %2452 = vmatprep.subr.mxu0 0.0
    %2453 = vmatpush1.msra.mxu0 0.0
    %2454 = vmatprep.subr.mxu0 0.0
    %2455 = vmatpush1.msra.mxu0 0.0
    %2456 = vmatprep.subr.mxu0 0.0
    %2457 = vmatpush1.msra.mxu0 0.0
    %2458 = vmatprep.subr.mxu0 0.0
    %2459 = vmatpush1.msra.mxu0 0.0
    %2460 = vmatprep.subr.mxu0 0.0
    %2461 = vmatpush1.msra.mxu0 0.0
    %2462 = vmatprep.subr.mxu0 0.0
    %2463 = vmatpush1.msra.mxu0 0.0
    %2464 = vmatprep.mubr.f32.mxu0 0.0
    %2465 = vmatmul.mubr.f32.gmra.mrb[0].mxu0 %v2222
    %v2466 = vpop.f32.mrb[0].mxu0
    %v2467 = vadd.f32 0.0, %v2466
    %v2468 = vpop.f32.mrb[0].mxu0
    %v2469 = vadd.f32 0.0, %v2468
    %2470 = vdwg.mxu0
    %2471 = vmatprep.subr.mxu0 %v353
    %2472 = vmatpush1.msra.mxu0 %v352
    %2473 = vmatprep.subr.mxu0 %v357
    %2474 = vmatpush1.msra.mxu0 %v356
    %2475 = vmatprep.subr.mxu0 %v361
    %2476 = vmatpush1.msra.mxu0 %v360
    %2477 = vmatprep.subr.mxu0 %v365
    %2478 = vmatpush1.msra.mxu0 %v364
    %2479 = vmatprep.subr.mxu0 %v369
    %2480 = vmatpush1.msra.mxu0 %v368
    %2481 = vmatprep.subr.mxu0 %v373
    %2482 = vmatpush1.msra.mxu0 %v372
    %2483 = vmatprep.subr.mxu0 %v377
    %2484 = vmatpush1.msra.mxu0 %v376
    %2485 = vmatprep.subr.mxu0 %v381
    %2486 = vmatpush1.msra.mxu0 %v380
    %2487 = vmatprep.subr.mxu0 %v385
    %2488 = vmatpush1.msra.mxu0 %v384
    %2489 = vmatprep.subr.mxu0 %v389
    %2490 = vmatpush1.msra.mxu0 %v388
    %2491 = vmatprep.subr.mxu0 %v393
    %2492 = vmatpush1.msra.mxu0 %v392
    %2493 = vmatprep.subr.mxu0 %v397
    %2494 = vmatpush1.msra.mxu0 %v396
    %2495 = vmatprep.subr.mxu0 %v401
    %2496 = vmatpush1.msra.mxu0 %v400
    %2497 = vmatprep.subr.mxu0 %v405
    %2498 = vmatpush1.msra.mxu0 %v404
    %2499 = vmatprep.subr.mxu0 %v409
    %2500 = vmatpush1.msra.mxu0 %v408
    %2501 = vmatprep.subr.mxu0 %v413
    %2502 = vmatpush1.msra.mxu0 %v412
    %2503 = vmatprep.subr.mxu0 0.0
    %2504 = vmatpush1.msra.mxu0 0.0
    %2505 = vmatprep.subr.mxu0 0.0
    %2506 = vmatpush1.msra.mxu0 0.0
    %2507 = vmatprep.subr.mxu0 0.0
    %2508 = vmatpush1.msra.mxu0 0.0
    %2509 = vmatprep.subr.mxu0 0.0
    %2510 = vmatpush1.msra.mxu0 0.0
    %2511 = vmatprep.subr.mxu0 0.0
    %2512 = vmatpush1.msra.mxu0 0.0
    %2513 = vmatprep.subr.mxu0 0.0
    %2514 = vmatpush1.msra.mxu0 0.0
    %2515 = vmatprep.subr.mxu0 0.0
    %2516 = vmatpush1.msra.mxu0 0.0
    %2517 = vmatprep.subr.mxu0 0.0
    %2518 = vmatpush1.msra.mxu0 0.0
    %2519 = vmatprep.subr.mxu0 0.0
    %2520 = vmatpush1.msra.mxu0 0.0
    %2521 = vmatprep.subr.mxu0 0.0
    %2522 = vmatpush1.msra.mxu0 0.0
    %2523 = vmatprep.subr.mxu0 0.0
    %2524 = vmatpush1.msra.mxu0 0.0
    %2525 = vmatprep.subr.mxu0 0.0
    %2526 = vmatpush1.msra.mxu0 0.0
    %2527 = vmatprep.subr.mxu0 0.0
    %2528 = vmatpush1.msra.mxu0 0.0
    %2529 = vmatprep.subr.mxu0 0.0
    %2530 = vmatpush1.msra.mxu0 0.0
    %2531 = vmatprep.subr.mxu0 0.0
    %2532 = vmatpush1.msra.mxu0 0.0
    %2533 = vmatprep.subr.mxu0 0.0
    %2534 = vmatpush1.msra.mxu0 0.0
    %2535 = vmatprep.mubr.f32.mxu0 0.0
    %2536 = vmatmul.mubr.f32.gmra.mrb[0].mxu0 %v2222
    %v2537 = vpop.f32.mrb[0].mxu0
    %v2538 = vadd.f32 0.0, %v2537
    %v2539 = vpop.f32.mrb[0].mxu0
    %v2540 = vadd.f32 0.0, %v2539
    %2541 = vdwg.mxu0
    %v2543 = vsel %vm576, %v2389, 0
    %2545 = vmatprep.subr.mxu0 %v335
    %2546 = vmatpush1.msra.mxu0 %v334
    %2547 = vmatprep.subr.mxu0 %v339
    %2548 = vmatpush1.msra.mxu0 %v338
    %2549 = vmatprep.subr.mxu0 %v343
    %2550 = vmatpush1.msra.mxu0 %v342
    %2551 = vmatprep.subr.mxu0 %v347
    %2552 = vmatpush1.msra.mxu0 %v346
    %2553 = vmatprep.subr.mxu0 0.0
    %2554 = vmatpush1.msra.mxu0 0.0
    %2555 = vmatprep.subr.mxu0 0.0
    %2556 = vmatpush1.msra.mxu0 0.0
    %2557 = vmatprep.subr.mxu0 0.0
    %2558 = vmatpush1.msra.mxu0 0.0
    %2559 = vmatprep.subr.mxu0 0.0
    %2560 = vmatpush1.msra.mxu0 0.0
    %2561 = vmatprep.subr.mxu0 0.0
    %2562 = vmatpush1.msra.mxu0 0.0
    %2563 = vmatprep.subr.mxu0 0.0
    %2564 = vmatpush1.msra.mxu0 0.0
    %2565 = vmatprep.subr.mxu0 0.0
    %2566 = vmatpush1.msra.mxu0 0.0
    %2567 = vmatprep.subr.mxu0 0.0
    %2568 = vmatpush1.msra.mxu0 0.0
    %2569 = vmatprep.subr.mxu0 0.0
    %2570 = vmatpush1.msra.mxu0 0.0
    %2571 = vmatprep.subr.mxu0 0.0
    %2572 = vmatpush1.msra.mxu0 0.0
    %2573 = vmatprep.subr.mxu0 0.0
    %2574 = vmatpush1.msra.mxu0 0.0
    %2575 = vmatprep.subr.mxu0 0.0
    %2576 = vmatpush1.msra.mxu0 0.0
    %2577 = vmatprep.subr.mxu0 0.0
    %2578 = vmatpush1.msra.mxu0 0.0
    %2579 = vmatprep.subr.mxu0 0.0
    %2580 = vmatpush1.msra.mxu0 0.0
    %2581 = vmatprep.subr.mxu0 0.0
    %2582 = vmatpush1.msra.mxu0 0.0
    %2583 = vmatprep.subr.mxu0 0.0
    %2584 = vmatpush1.msra.mxu0 0.0
    %2585 = vmatprep.subr.mxu0 0.0
    %2586 = vmatpush1.msra.mxu0 0.0
    %2587 = vmatprep.subr.mxu0 0.0
    %2588 = vmatpush1.msra.mxu0 0.0
    %2589 = vmatprep.subr.mxu0 0.0
    %2590 = vmatpush1.msra.mxu0 0.0
    %2591 = vmatprep.subr.mxu0 0.0
    %2592 = vmatpush1.msra.mxu0 0.0
    %2593 = vmatprep.subr.mxu0 0.0
    %2594 = vmatpush1.msra.mxu0 0.0
    %2595 = vmatprep.subr.mxu0 0.0
    %2596 = vmatpush1.msra.mxu0 0.0
    %2597 = vmatprep.subr.mxu0 0.0
    %2598 = vmatpush1.msra.mxu0 0.0
    %2599 = vmatprep.subr.mxu0 0.0
    %2600 = vmatpush1.msra.mxu0 0.0
    %2601 = vmatprep.subr.mxu0 0.0
    %2602 = vmatpush1.msra.mxu0 0.0
    %2603 = vmatprep.subr.mxu0 0.0
    %2604 = vmatpush1.msra.mxu0 0.0
    %2605 = vmatprep.subr.mxu0 0.0
    %2606 = vmatpush1.msra.mxu0 0.0
    %2607 = vmatprep.subr.mxu0 0.0
    %2608 = vmatpush1.msra.mxu0 0.0
    %2609 = vmatprep.mubr.f32.mxu0 0.0
    %2610 = vmatmul.mubr.f32.gmra.mrb[0].mxu0 %v2543
    %v2611 = vpop.f32.mrb[0].mxu0
    %v2612 = vadd.f32 %v2467, %v2611
    %v2613 = vpop.f32.mrb[0].mxu0
    %v2614 = vadd.f32 %v2469, %v2613
    %2615 = vdwg.mxu0
    %2616 = vmatprep.subr.mxu0 %v337
    %2617 = vmatpush1.msra.mxu0 %v336
    %2618 = vmatprep.subr.mxu0 %v341
    %2619 = vmatpush1.msra.mxu0 %v340
    %2620 = vmatprep.subr.mxu0 %v345
    %2621 = vmatpush1.msra.mxu0 %v344
    %2622 = vmatprep.subr.mxu0 %v349
    %2623 = vmatpush1.msra.mxu0 %v348
    %2624 = vmatprep.subr.mxu0 0.0
    %2625 = vmatpush1.msra.mxu0 0.0
    %2626 = vmatprep.subr.mxu0 0.0
    %2627 = vmatpush1.msra.mxu0 0.0
    %2628 = vmatprep.subr.mxu0 0.0
    %2629 = vmatpush1.msra.mxu0 0.0
    %2630 = vmatprep.subr.mxu0 0.0
    %2631 = vmatpush1.msra.mxu0 0.0
    %2632 = vmatprep.subr.mxu0 0.0
    %2633 = vmatpush1.msra.mxu0 0.0
    %2634 = vmatprep.subr.mxu0 0.0
    %2635 = vmatpush1.msra.mxu0 0.0
    %2636 = vmatprep.subr.mxu0 0.0
    %2637 = vmatpush1.msra.mxu0 0.0
    %2638 = vmatprep.subr.mxu0 0.0
    %2639 = vmatpush1.msra.mxu0 0.0
    %2640 = vmatprep.subr.mxu0 0.0
    %2641 = vmatpush1.msra.mxu0 0.0
    %2642 = vmatprep.subr.mxu0 0.0
    %2643 = vmatpush1.msra.mxu0 0.0
    %2644 = vmatprep.subr.mxu0 0.0
    %2645 = vmatpush1.msra.mxu0 0.0
    %2646 = vmatprep.subr.mxu0 0.0
    %2647 = vmatpush1.msra.mxu0 0.0
    %2648 = vmatprep.subr.mxu0 0.0
    %2649 = vmatpush1.msra.mxu0 0.0
    %2650 = vmatprep.subr.mxu0 0.0
    %2651 = vmatpush1.msra.mxu0 0.0
    %2652 = vmatprep.subr.mxu0 0.0
    %2653 = vmatpush1.msra.mxu0 0.0
    %2654 = vmatprep.subr.mxu0 0.0
    %2655 = vmatpush1.msra.mxu0 0.0
    %2656 = vmatprep.subr.mxu0 0.0
    %2657 = vmatpush1.msra.mxu0 0.0
    %2658 = vmatprep.subr.mxu0 0.0
    %2659 = vmatpush1.msra.mxu0 0.0
    %2660 = vmatprep.subr.mxu0 0.0
    %2661 = vmatpush1.msra.mxu0 0.0
    %2662 = vmatprep.subr.mxu0 0.0
    %2663 = vmatpush1.msra.mxu0 0.0
    %2664 = vmatprep.subr.mxu0 0.0
    %2665 = vmatpush1.msra.mxu0 0.0
    %2666 = vmatprep.subr.mxu0 0.0
    %2667 = vmatpush1.msra.mxu0 0.0
    %2668 = vmatprep.subr.mxu0 0.0
    %2669 = vmatpush1.msra.mxu0 0.0
    %2670 = vmatprep.subr.mxu0 0.0
    %2671 = vmatpush1.msra.mxu0 0.0
    %2672 = vmatprep.subr.mxu0 0.0
    %2673 = vmatpush1.msra.mxu0 0.0
    %2674 = vmatprep.subr.mxu0 0.0
    %2675 = vmatpush1.msra.mxu0 0.0
    %2676 = vmatprep.subr.mxu0 0.0
    %2677 = vmatpush1.msra.mxu0 0.0
    %2678 = vmatprep.subr.mxu0 0.0
    %2679 = vmatpush1.msra.mxu0 0.0
    %2680 = vmatprep.mubr.f32.mxu0 0.0
    %2681 = vmatmul.mubr.f32.gmra.mrb[0].mxu0 %v2543
    %v2682 = vpop.f32.mrb[0].mxu0
    %v2683 = vadd.f32 %v2538, %v2682
    %v2684 = vpop.f32.mrb[0].mxu0
    %v2685 = vadd.f32 %v2540, %v2684
    %2686 = vdwg.mxu0
    %v2687 = vadd.f32 %v2612, %v236
    %v2688 = vadd.f32 %v2614, %v238
    %v2689 = vadd.f32 %v2683, %v307
    %v2690 = vadd.f32 %v2685, %v309
    %v2691 = vxor.u32 %v2687, 2147483648
    %v2692 = vmul.f32 %v2691, 1.442695
    %v2693 = vpow.pop %v2692
    %v2694 = vadd.f32 %v2693, 1.0
    %v2695 = vrcp.pop %v2694
    %v2696 = vmul.f32 1.0, %v2695
    %v2697 = vxor.u32 %v2688, 2147483648
    %v2698 = vmul.f32 %v2697, 1.442695
    %v2699 = vpow.pop %v2698
    %v2700 = vadd.f32 %v2699, 1.0
    %v2701 = vrcp.pop %v2700
    %v2702 = vmul.f32 1.0, %v2701
    %v2703 = vtanh.pop %v2689
    %v2704 = vxor.u32 %v2690, 2147483648
    %v2705 = vmul.f32 %v2704, 1.442695
    %v2706 = vpow.pop %v2705
    %v2707 = vadd.f32 %v2706, 1.0
    %v2708 = vrcp.pop %v2707
    %v2709 = vmul.f32 1.0, %v2708
    %v2710 = vmul.f32 %v2702, %v2220
    %v2711 = vmul.f32 %v2696, %v2703
    %v2712 = vadd.f32 %v2710, %v2711
    %v2713 = vtanh.pop %v2712
    %v2714 = vmul.f32 %v2709, %v2713
    %2715 = vmatprep.subr.mxu0 0.0
    %2716 = vmatpush1.msra.mxu0 %v414
    %2717 = vmatprep.subr.mxu0 0.0
    %2718 = vmatpush1.msra.mxu0 %v415
    %2719 = vmatprep.subr.mxu0 0.0
    %2720 = vmatpush1.msra.mxu0 %v416
    %2721 = vmatprep.subr.mxu0 0.0
    %2722 = vmatpush1.msra.mxu0 %v417
    %2723 = vmatprep.subr.mxu0 0.0
    %2724 = vmatpush1.msra.mxu0 %v418
    %2725 = vmatprep.subr.mxu0 0.0
    %2726 = vmatpush1.msra.mxu0 %v419
    %2727 = vmatprep.subr.mxu0 0.0
    %2728 = vmatpush1.msra.mxu0 %v420
    %2729 = vmatprep.subr.mxu0 0.0
    %2730 = vmatpush1.msra.mxu0 %v421
    %2731 = vmatprep.subr.mxu0 0.0
    %2732 = vmatpush1.msra.mxu0 %v422
    %2733 = vmatprep.subr.mxu0 0.0
    %2734 = vmatpush1.msra.mxu0 %v423
    %2735 = vmatprep.subr.mxu0 0.0
    %2736 = vmatpush1.msra.mxu0 %v424
    %2737 = vmatprep.subr.mxu0 0.0
    %2738 = vmatpush1.msra.mxu0 %v425
    %2739 = vmatprep.subr.mxu0 0.0
    %2740 = vmatpush1.msra.mxu0 %v426
    %2741 = vmatprep.subr.mxu0 0.0
    %2742 = vmatpush1.msra.mxu0 %v427
    %2743 = vmatprep.subr.mxu0 0.0
    %2744 = vmatpush1.msra.mxu0 %v428
    %2745 = vmatprep.subr.mxu0 0.0
    %2746 = vmatpush1.msra.mxu0 %v429
    %2747 = vmatprep.subr.mxu0 0.0
    %2748 = vmatpush1.msra.mxu0 0.0
    %2749 = vmatprep.subr.mxu0 0.0
    %2750 = vmatpush1.msra.mxu0 0.0
    %2751 = vmatprep.subr.mxu0 0.0
    %2752 = vmatpush1.msra.mxu0 0.0
    %2753 = vmatprep.subr.mxu0 0.0
    %2754 = vmatpush1.msra.mxu0 0.0
    %2755 = vmatprep.subr.mxu0 0.0
    %2756 = vmatpush1.msra.mxu0 0.0
    %2757 = vmatprep.subr.mxu0 0.0
    %2758 = vmatpush1.msra.mxu0 0.0
    %2759 = vmatprep.subr.mxu0 0.0
    %2760 = vmatpush1.msra.mxu0 0.0
    %2761 = vmatprep.subr.mxu0 0.0
    %2762 = vmatpush1.msra.mxu0 0.0
    %2763 = vmatprep.subr.mxu0 0.0
    %2764 = vmatpush1.msra.mxu0 0.0
    %2765 = vmatprep.subr.mxu0 0.0
    %2766 = vmatpush1.msra.mxu0 0.0
    %2767 = vmatprep.subr.mxu0 0.0
    %2768 = vmatpush1.msra.mxu0 0.0
    %2769 = vmatprep.subr.mxu0 0.0
    %2770 = vmatpush1.msra.mxu0 0.0
    %2771 = vmatprep.subr.mxu0 0.0
    %2772 = vmatpush1.msra.mxu0 0.0
    %2773 = vmatprep.subr.mxu0 0.0
    %2774 = vmatpush1.msra.mxu0 0.0
    %2775 = vmatprep.subr.mxu0 0.0
    %2776 = vmatpush1.msra.mxu0 0.0
    %2777 = vmatprep.subr.mxu0 0.0
    %2778 = vmatpush1.msra.mxu0 0.0
    %2779 = vmatprep.mubr.f32.mxu0 0.0
    %2780 = vmatmul.mubr.f32.gmra.mrb[0].mxu0 %v2714
    %v2781 = vpop.f32.mrb[0].mxu0
    %v2782 = vadd.f32 %v316, %v2781
    %v2783 = vpop.f32.mrb[0].mxu0
    %2784 = vdwg.mxu0
    %2785 = vmax.xlane.f32.xlu0 %v2782
    %v2786 = vpop.xlane.xlu0 %2785
    %v2787 = vsub.f32 %v2782, %v2786
    %v2788 = vmul.f32 %v2787, 1.442695
    %v2789 = vpow.pop %v2788
    %2790 = vadd.xlane.f32.xlu0 %v2789
    %v2791 = vpop.xlane.xlu0 %2790
    %v2792 = vlog2.pop %v2791
    %v2793 = vmul.f32 %v2792, 0.6931472
    %v2794 = vsub.f32 %v2787, %v2793
    %vm2795 = vcmp.eq.f32.partialorder %v2782, %v2786
    %v2796 = vsel %vm2795, %v431, 128
    %v2797 = vand.u32 %v2796, 65535
    %v2798 = vshra.s32 %v2796, 16
    %v2799 = vcvt.s32.f32 %v2797
    %v2800 = vcvt.s32.f32 %v2798
    %2801 = vmin.xlane.f32.xlu0 %v2800
    %v2802 = vpop.xlane.xlu0 %2801
    %vm2803 = vcmp.eq.f32.partialorder %v2800, %v2802
    %v2804 = vsel %vm2803, %v2799, inf
    %2805 = vmin.xlane.f32.xlu0 %v2804
    %v2806 = vpop.xlane.xlu0 %2805
    %v2807 = vcvt.f32.s32 %v2806
    %v2808 = vcvt.f32.s32 %v2802
    %v2809 = vshll.u32 %v2808, 16
    %v2810 = vadd.s32 %v2809, %v2807
    %s2811 = scalar_lea.vmem [#allocation8], 32
    %2812 = vst [vmem:[%s2811] sm:$0xff] %v2794
    %s2813 = scalar_lea.vmem %s11, 32
    %2814 = vst.msk [vmem:[%s2813] sm:$0xff] %vm920, %v2810
    %s2815 = scalar_lea.vmem [#allocation9], 32
    %2816 = vst [vmem:[%s2815] sm:$0xff] %v2714
    %s2817 = scalar_lea.vmem [#allocation11], 32
    %2818 = vst [vmem:[%s2817] sm:$0xff] %v2712
    // Predicated region
    $region54: #{tpu_custom_call.1} parent=1 // pred_check
      _
    $region55: #{tpu_custom_call.1} parent=1 // pred_check_branch
      %2820 = sbr.rel (0) target = $region57
    $region56: #{tpu_custom_call.1} parent=1 // pred_region
      %s2822 = ssub.s32 640, 640
      %2823 = vsyncadd [#allocation4], %s2822
      %s2824 = sshll.u32 [#allocation8], 4
      %s2825 = int_to_ptr.vmem [resolvable:$true] %s2824
      %2830 = dma.vmem_to_hbm [thread:$0]  %s2825, 640, %s10, [#allocation4], 128, 128, 8
    $region57: #{tpu_custom_call.1} parent=1 // pred_fallthru
      _
    // Predicated region
    $region58: #{tpu_custom_call.1} parent=1 // pred_check
      _
    $region59: #{tpu_custom_call.1} parent=1 // pred_check_branch
      %2832 = sbr.rel (0) target = $region61
    $region60: #{tpu_custom_call.1} parent=1 // pred_region
      _
    $region61: #{tpu_custom_call.1} parent=1 // pred_fallthru
      _
    // Predicated region
    $region62: #{tpu_custom_call.1} parent=1 // pred_check
      _
    $region63: #{tpu_custom_call.1} parent=1 // pred_check_branch
      %2834 = sbr.rel (0) target = $region65
    $region64: #{tpu_custom_call.1} parent=1 // pred_region
      %s2836 = ssub.s32 640, 640
      %2837 = vsyncadd [#allocation10], %s2836
      %s2838 = sshll.u32 [#allocation9], 4
      %s2839 = int_to_ptr.vmem [resolvable:$true] %s2838
      %2844 = dma.vmem_to_hbm [thread:$0]  %s2839, 640, %s12, [#allocation10], 128, 128, 8
    $region65: #{tpu_custom_call.1} parent=1 // pred_fallthru
      _
    // Predicated region
    $region66: #{tpu_custom_call.1} parent=1 // pred_check
      _
    $region67: #{tpu_custom_call.1} parent=1 // pred_check_branch
      %2846 = sbr.rel (0) target = $region69
    $region68: #{tpu_custom_call.1} parent=1 // pred_region
      %s2848 = ssub.s32 640, 640
      %2849 = vsyncadd [#allocation10], %s2848
      %s2850 = sshll.u32 [#allocation11], 4
      %s2851 = int_to_ptr.vmem [resolvable:$true] %s2850
      %2856 = dma.vmem_to_hbm [thread:$0]  %s2851, 640, %s13, [#allocation10], 128, 128, 8
    $region69: #{tpu_custom_call.1} parent=1 // pred_fallthru
      _
    // Predicated region
    $region70: #{tpu_custom_call.1} parent=1 // pred_check
      _
    $region71: #{tpu_custom_call.1} parent=1 // pred_check_branch
      %2858 = sbr.rel (0) target = $region73
    $region72: #{tpu_custom_call.1} parent=1 // pred_region
      %2859 = dma.done [#allocation4], 640
    $region73: #{tpu_custom_call.1} parent=1 // pred_fallthru
      _
    // Predicated region
    $region74: #{tpu_custom_call.1} parent=1 // pred_check
      _
    $region75: #{tpu_custom_call.1} parent=1 // pred_check_branch
      %2861 = sbr.rel (0) target = $region77
    $region76: #{tpu_custom_call.1} parent=1 // pred_region
      _
    $region77: #{tpu_custom_call.1} parent=1 // pred_fallthru
      _
    // Predicated region
    $region78: #{tpu_custom_call.1} parent=1 // pred_check
      _
    $region79: #{tpu_custom_call.1} parent=1 // pred_check_branch
      %2863 = sbr.rel (0) target = $region81
    $region80: #{tpu_custom_call.1} parent=1 // pred_region
      %2864 = dma.done [#allocation10], 640
    $region81: #{tpu_custom_call.1} parent=1 // pred_fallthru
      _
    // Predicated region
    $region82: #{tpu_custom_call.1} parent=1 // pred_check
      _
    $region83: #{tpu_custom_call.1} parent=1 // pred_check_branch
      %2866 = sbr.rel (0) target = $region85
    $region84: #{tpu_custom_call.1} parent=1 // pred_region
      %2867 = dma.done [#allocation10], 640
    $region85: #{tpu_custom_call.1} parent=1 // pred_fallthru
      _
    %2868 = vsyncpa [#allocation3], 1
    %2869 = vsyncpa [#allocation6], 1
    %2870 = vsyncpa [#allocation4], 1
    %2871 = vsyncpa [#allocation10], 1

</llo_original>
